<compile_context>
chip_gen: v5e
topology: v5e:2x2
jax: 0.10.0
libtpu: 0.0.40
codegen_flags: <defaults>
</compile_context>

<pallas_src>
import functools

import jax
import jax.numpy as jnp
from jax.experimental import pallas as pl
from jax.experimental.pallas import tpu as pltpu

Z_DIM = 240          # logical embedding dim (matches the PyTorch module)
Z_PAD = 256          # lane-padded embedding dim used inside the kernels
LANE = 128

_ADAM_LR, _ADAM_B1, _ADAM_B2, _ADAM_EPS = 1e-3, 0.9, 0.999, 1e-8
_META_STEPS = 11     # 1 + 10 optimizer.step() calls in meta_forward
_PREVAL_STEPS = 3    # 1 + 2 fast-weight updates in preval_forward
_PREVAL_LR = 0.005


# --------------------------------------------------------------------------
# In-kernel math helpers (traced inside the Pallas kernel bodies).
# --------------------------------------------------------------------------
def _softmax0(z, *, approx):
    # softmax over axis 0 (class axis, class-major layout)
    e = jnp.exp(z - jnp.max(z, axis=0, keepdims=True))
    return e * pl.reciprocal(jnp.sum(e, axis=0, keepdims=True), approx=approx)


def _softmax1(z, *, approx):
    # softmax over axis 1 (sample-major layout)
    e = jnp.exp(z - jnp.max(z, axis=1, keepdims=True))
    return e * pl.reciprocal(jnp.sum(e, axis=1, keepdims=True), approx=approx)


def _encode(x_ref, encw, encb):
    # f32 pixels -> bf16 (VPU cast, in-kernel) -> MXU matmul, f32 accumulation
    return (jnp.dot(x_ref[...].astype(jnp.bfloat16), encw,
                    preferred_element_type=jnp.float32) + encb)


def _grads_cm(xs, xs_t, y_t, w, bt, inv_n):
    """Class-major analytic grads of F.cross_entropy(softmax(linear(xs)), y).

    F.cross_entropy applies log_softmax to its input, and the input here is
    *already* softmax probabilities (BaseLearner.forward), so the chain is
    softmax -> softmax -> NLL, exactly as in the PyTorch code.

    xs   : [Ns, Zp]    (sample-major, loop-invariant)
    xs_t : [Zp, Ns]    (transposed once, outside the unrolled loop)
    y_t  : [way, Ns]   one-hot, class-major
    w    : [way, Zp]   (PyTorch fc2_w layout, feature-padded)
    bt   : [way, 1]
    """
    z_t = jnp.dot(w, xs_t, preferred_element_type=jnp.float32) + bt   # [way, Ns]
    p_t = _softmax0(z_t, approx=True)    # BaseLearner output (probs), EUP recip
    q_t = _softmax0(p_t, approx=False)   # cross_entropy's log_softmax -> exact,
                                         # limits drift compounding over steps
    dp_t = (q_t - y_t) * inv_n           # dL/dp (mean reduction)
    dz_t = p_t * (dp_t - jnp.sum(dp_t * p_t, axis=0, keepdims=True))
    dw = jnp.dot(dz_t, xs, preferred_element_type=jnp.float32)        # [way, Zp]
    db = jnp.sum(dz_t, axis=1, keepdims=True)                         # [way, 1]
    return dw, db


def _query_probs_cm(w, bt, xq):
    # query forward with adapted weights (class-major, exact softmax)
    zq_t = jnp.dot(w, xq.T, preferred_element_type=jnp.float32) + bt  # [way, Nq]
    return _softmax0(zq_t, approx=False)


# --------------------------------------------------------------------------
# Pallas kernels (one fused kernel per forward mode; one grid step = episode).
# --------------------------------------------------------------------------
def _meta_kernel(xs_ref, xq_ref, yt_ref, encw_ref, encb_ref, w_ref, b_ref,
                 o_ref, wb_ref, *, steps, lr, beta1, beta2, eps):
    encw = encw_ref[...]                           # [D, Zp] bf16 (VMEM-resident)
    encb = encb_ref[...]                           # [1, Zp]
    xs = _encode(xs_ref, encw, encb)               # [Ns, Zp] f32
    xq = _encode(xq_ref, encw, encb)               # [Nq, Zp] f32
    xs_t = xs.T                                    # [Zp, Ns] (hoisted, once)
    y_t = yt_ref[...]                              # [way, Ns]
    w = w_ref[...]                                 # [way, Zp]
    bt = b_ref[...]                                # [way, 1]
    inv_n = 1.0 / xs.shape[0]

    # Adam state (PyTorch defaults), statically unrolled steps.
    mw = jnp.zeros_like(w)
    vw = jnp.zeros_like(w)
    mb = jnp.zeros_like(bt)
    vb = jnp.zeros_like(bt)
    for t in range(1, steps + 1):
        dw, db = _grads_cm(xs, xs_t, y_t, w, bt, inv_n)
        mw = beta1 * mw + (1.0 - beta1) * dw
        vw = beta2 * vw + (1.0 - beta2) * dw * dw
        mb = beta1 * mb + (1.0 - beta1) * db
        vb = beta2 * vb + (1.0 - beta2) * db * db
        s1 = lr / (1.0 - beta1 ** t)               # bias-corrected step size
        ic2 = 1.0 / (1.0 - beta2 ** t)
        # eps stays OUTSIDE the sqrt (PyTorch Adam).  EUP approx reciprocal
        # replaces serially-dependent VALU divides on the unrolled chain;
        # padded feature columns (dw == mw == vw == 0) stay exactly zero.
        w = w - s1 * mw * pl.reciprocal(jnp.sqrt(vw * ic2) + eps, approx=True)
        bt = bt - s1 * mb * pl.reciprocal(jnp.sqrt(vb * ic2) + eps, approx=True)

    pq_t = _query_probs_cm(w, bt, xq)              # [way, Nq], exact softmax

    # lane-dense output slab (wrapper slices the tiny valid region)
    o_ref[...] = jnp.zeros_like(o_ref)
    o_ref[:, :pq_t.shape[1]] = pq_t

    # adapted weights + bias merged into one lane-dense slab:
    # lanes [0, Z_PAD) = w, lanes [Z_PAD, Z_PAD+128) = bias broadcast
    # -> both stores are 128-lane aligned and unmasked, no (way,1) output.
    wb_ref[:, :Z_PAD] = w
    wb_ref[:, Z_PAD:] = jnp.broadcast_to(bt, (bt.shape[0], LANE))


def _preval_kernel(xs_ref, xq_ref, yt_ref, encw_ref, encb_ref, w_ref, b_ref,
                   o_ref, *, steps, lr):
    encw = encw_ref[...]
    encb = encb_ref[...]
    xs = _encode(xs_ref, encw, encb)
    xq = _encode(xq_ref, encw, encb)
    xs_t = xs.T
    y_t = yt_ref[...]
    w = w_ref[...]
    bt = b_ref[...]
    inv_n = 1.0 / xs.shape[0]
    for _ in range(steps):                         # statically unrolled SGD
        dw, db = _grads_cm(xs, xs_t, y_t, w, bt, inv_n)
        w = w - lr * dw
        bt = bt - lr * db
    pq_t = _query_probs_cm(w, bt, xq)
    o_ref[...] = jnp.zeros_like(o_ref)
    o_ref[:, :pq_t.shape[1]] = pq_t


def _pretrain_kernel(x_ref, encw_ref, encb_ref, pw_ref, pb_ref, o_ref):
    emb = _encode(x_ref, encw_ref[...], encb_ref[...])             # [N, Zp]
    z = (jnp.dot(emb, pw_ref[...], preferred_element_type=jnp.float32)
         + pb_ref[...])                                            # [N, ncls]
    p = _softmax1(z, approx=False)
    o_ref[...] = jnp.zeros_like(o_ref)
    o_ref[:, :p.shape[1]] = p


# --------------------------------------------------------------------------
# Grid plumbing: one grid step per episode ("parallel" -> megacore on v7x).
# Weights use constant index_maps -> DMA'd once per call, VMEM-resident.
# Total VMEM footprint < 1.5 MB (double-buffered), well inside every limit.
# --------------------------------------------------------------------------
def _episode_grid_spec(E, ns, nq, way, D, out_block_shapes):
    const2 = lambda e: (0, 0)
    per_ep = lambda e: (e, 0, 0)
    in_specs = [
        pl.BlockSpec((None, ns, D), per_ep),       # shot pixels  [E, Ns, D] f32
        pl.BlockSpec((None, nq, D), per_ep),       # query pixels [E, Nq, D] f32
        pl.BlockSpec((None, way, ns), per_ep),     # one-hot labels^T
        pl.BlockSpec((D, Z_PAD), const2),          # enc_w bf16 (resident)
        pl.BlockSpec((1, Z_PAD), const2),          # enc_b
        pl.BlockSpec((way, Z_PAD), const2),        # fc2_w
        pl.BlockSpec((way, 1), const2),            # fc2_b
    ]
    out_specs = [pl.BlockSpec((None,) + bs, per_ep) for bs in out_block_shapes]
    if len(out_specs) == 1:
        out_specs = out_specs[0]
    return pltpu.PrefetchScalarGridSpec(
        num_scalar_prefetch=0, grid=(E,),
        in_specs=in_specs, out_specs=out_specs)


def _out_width(nq):
    return ((nq + LANE - 1) // LANE) * LANE


# --------------------------------------------------------------------------
# Functional, jitted forwards (all wrapper ops fuse with the pallas_call).
# --------------------------------------------------------------------------
@jax.jit
def _meta_forward_batched(data_shot, label_shot, data_query,
                          enc_w, enc_b, fc2_w, fc2_b):
    E, ns = data_shot.shape[:2]
    nq = data_query.shape[1]
    way, D = fc2_w.shape[0], enc_w.shape[0]
    out_w = _out_width(nq)
    xs = data_shot.reshape(E, ns, -1)
    xq = data_query.reshape(E, nq, -1)
    y_t = jnp.transpose(jax.nn.one_hot(label_shot, way, dtype=jnp.float32),
                        (0, 2, 1))                                  # [E, way, Ns]
    kern = functools.partial(_meta_kernel, steps=_META_STEPS, lr=_ADAM_LR,
                             beta1=_ADAM_B1, beta2=_ADAM_B2, eps=_ADAM_EPS)
    probs_cm, wb = pl.pallas_call(
        kern,
        out_shape=(jax.ShapeDtypeStruct((E, way, out_w), jnp.float32),
                   jax.ShapeDtypeStruct((E, way, Z_PAD + LANE), jnp.float32)),
        grid_spec=_episode_grid_spec(E, ns, nq, way, D,
                                     [(way, out_w), (way, Z_PAD + LANE)]),
        compiler_params=pltpu.CompilerParams(
            dimension_semantics=("parallel",)),
    )(xs, xq, y_t, enc_w, enc_b, fc2_w, fc2_b)
    logits_q = jnp.transpose(probs_cm[:, :, :nq], (0, 2, 1))        # [E, Nq, way]
    w_new = wb[:, :, :Z_PAD]                                        # [E, way, Zp]
    b_new = wb[:, :, Z_PAD:Z_PAD + 1]                               # [E, way, 1]
    return logits_q, w_new, b_new


@jax.jit
def _preval_forward_batched(data_shot, label_shot, data_query,
                            enc_w, enc_b, fc2_w, fc2_b):
    E, ns = data_shot.shape[:2]
    nq = data_query.shape[1]
    way, D = fc2_w.shape[0], enc_w.shape[0]
    out_w = _out_width(nq)
    xs = data_shot.reshape(E, ns, -1)
    xq = data_query.reshape(E, nq, -1)
    y_t = jnp.transpose(jax.nn.one_hot(label_shot, way, dtype=jnp.float32),
                        (0, 2, 1))
    kern = functools.partial(_preval_kernel, steps=_PREVAL_STEPS, lr=_PREVAL_LR)
    probs_cm = pl.pallas_call(
        kern,
        out_shape=jax.ShapeDtypeStruct((E, way, out_w), jnp.float32),
        grid_spec=_episode_grid_spec(E, ns, nq, way, D, [(way, out_w)]),
        compiler_params=pltpu.CompilerParams(
            dimension_semantics=("parallel",)),
    )(xs, xq, y_t, enc_w, enc_b, fc2_w, fc2_b)
    return jnp.transpose(probs_cm[:, :, :nq], (0, 2, 1))            # [E, Nq, way]


@jax.jit
def _pretrain_forward(x, enc_w, enc_b, pre_w_t, pre_b):
    n = x.shape[0]
    num_cls = pre_b.shape[1]
    xf = x.reshape(n, -1)
    out = pl.pallas_call(
        _pretrain_kernel,
        out_shape=jax.ShapeDtypeStruct((n, LANE), jnp.float32),
        in_specs=[pl.BlockSpec(memory_space=pltpu.MemorySpace.VMEM)
                  for _ in range(5)],
        out_specs=pl.BlockSpec(memory_space=pltpu.MemorySpace.VMEM),
    )(xf, enc_w, enc_b, pre_w_t, pre_b)
    return out[:, :num_cls]


# --------------------------------------------------------------------------
# MtlLearner in JAX (parameters initialized deterministically in-script).
# --------------------------------------------------------------------------
class MtlLearner:
    def __init__(self, config, mode='meta', key=None, in_features=4 * 16 * 16):
        self.config = config
        self.mode = mode
        self.update_lr = config['base_lr']
        self.update_step = config['update_step']
        self.z_dim = Z_DIM
        self.way = config['way']
        if config['clstype'] == 'legs':
            num_cls = 2
        elif config['clstype'] == 'multiclass':
            num_cls = 4
        else:
            raise ValueError('unknown clstype')
        self.num_cls = num_cls

        if key is None:
            key = jax.random.PRNGKey(0)
        k_w, k_enc, k_pw, k_pb = jax.random.split(key, 4)

        # BaseLearner params: kaiming_normal_ (fan_in=z_dim, gain=sqrt(2)),
        # zero bias.  PyTorch layout [way, z_dim], zero-padded to Z_PAD on the
        # feature axis (padded columns stay exactly zero through the inner
        # loop because the padded embedding features are zero).
        w0 = (jax.random.normal(k_w, (self.way, Z_DIM), jnp.float32)
              * (2.0 / Z_DIM) ** 0.5)
        self.fc2_w = jnp.pad(w0, ((0, 0), (0, Z_PAD - Z_DIM)))      # [way, Zp]
        self.fc2_b = jnp.zeros((self.way, 1), jnp.float32)          # column

        # Stand-in FeatureExtractor: flatten + bf16 linear -> Z_PAD (zero pad).
        enc_w = (jax.random.normal(k_enc, (in_features, Z_DIM), jnp.float32)
                 * 0.02)
        self.enc_w = jnp.pad(enc_w, ((0, 0), (0, Z_PAD - Z_DIM))
                             ).astype(jnp.bfloat16)                 # [D, Zp]
        self.enc_b = jnp.zeros((1, Z_PAD), jnp.float32)

        # pre_fc: nn.Linear(z_dim, num_cls) default init, stored transposed
        # + feature-padded so the kernel matmul is a plain [N,Zp]@[Zp,C] dot.
        bound = 1.0 / (Z_DIM ** 0.5)
        pw = jax.random.uniform(k_pw, (num_cls, Z_DIM), jnp.float32,
                                -bound, bound)
        self.pre_fc_w_t = jnp.pad(pw.T, ((0, Z_PAD - Z_DIM), (0, 0)))
        self.pre_fc_b = jax.random.uniform(k_pb, (1, num_cls), jnp.float32,
                                           -bound, bound)

    # ---- public forward, same dispatch as the PyTorch module ----
    def __call__(self, inp):
        if self.mode == 'pre' or self.mode == 'origval':
            return self.pretrain_forward(inp)
        elif self.mode == 'meta':
            data_shot, label_shot, data_query, type_ = inp
            return self.meta_forward(data_shot, label_shot, data_query, type_)
        elif self.mode == 'preval':
            data_shot, label_shot, data_query = inp
            return self.preval_forward(data_shot, label_shot, data_query)
        else:
            raise ValueError('Please set the correct mode.')

    def pretrain_forward(self, inp):
        return _pretrain_forward(inp, self.enc_w, self.enc_b,
                                 self.pre_fc_w_t, self.pre_fc_b)

    def preval_forward(self, data_shot, label_shot, data_query):
        logits = _preval_forward_batched(
            data_shot[None], label_shot[None], data_query[None],
            self.enc_w, self.enc_b, self.fc2_w, self.fc2_b)
        return logits[0]                          # [Nq, way]

    def meta_forward(self, data_shot, label_shot, data_query, type_=None):
        logits, w_new, b_new = _meta_forward_batched(
            data_shot[None], label_shot[None], data_query[None],
            self.enc_w, self.enc_b, self.fc2_w, self.fc2_b)
        logits_q, w_new, b_new = logits[0], w_new[0], b_new[0]
        # Mirror optimizer.step()'s in-place parameter update.  The jitted
        # path is purely functional; mutation happens here, outside jit.
        self.fc2_w = w_new
        self.fc2_b = b_new
        if type_ == 'test':
            return logits_q, {'fc2_w': w_new[:, :Z_DIM], 'fc2_b': b_new[:, 0]}
        return logits_q

    def meta_forward_batch(self, data_shot_b, label_shot_b, data_query_b):
        """Independent-episodes extension (v7x megacore / DMA amortization).

        Every episode adapts from the CURRENT base weights; base weights are
        not mutated (evaluation-style batching).
        """
        return _meta_forward_batched(data_shot_b, label_shot_b, data_query_b,
                                     self.enc_w, self.enc_b,
                                     self.fc2_w, self.fc2_b)


# --------------------------------------------------------------------------
# Pure-JAX references (sample-major, exact softmax) for correctness checks.
# --------------------------------------------------------------------------
def _ref_softmax(z, axis=1):
    z = z - jnp.max(z, axis=axis, keepdims=True)
    e = jnp.exp(z)
    return e / jnp.sum(e, axis=axis, keepdims=True)


def _ref_encode(model, x):
    xb = x.reshape(x.shape[0], -1).astype(jnp.bfloat16).astype(jnp.float32)
    return xb @ model.enc_w.astype(jnp.float32) + model.enc_b


def _ref_grads(xs, y1h, w, b):
    p = _ref_softmax(xs @ w.T + b)
    q = _ref_softmax(p)
    dp = (q - y1h) / xs.shape[0]
    dz = p * (dp - jnp.sum(dp * p, axis=1, keepdims=True))
    return dz.T @ xs, jnp.sum(dz, axis=0, keepdims=True)


def _ref_meta(model, w0, b0, data_shot, label_shot, data_query,
              steps=_META_STEPS, lr=_ADAM_LR, b1=_ADAM_B1, b2=_ADAM_B2,
              eps=_ADAM_EPS):
    xs = _ref_encode(model, data_shot)
    xq = _ref_encode(model, data_query)
    y1h = jax.nn.one_hot(label_shot, model.way, dtype=jnp.float32)
    w, b = w0, b0.T
    mw = jnp.zeros_like(w); vw = jnp.zeros_like(w)
    mb = jnp.zeros_like(b); vb = jnp.zeros_like(b)
    for t in range(1, steps + 1):
        dw, db = _ref_grads(xs, y1h, w, b)
        mw = b1 * mw + (1 - b1) * dw
        vw = b2 * vw + (1 - b2) * dw * dw
        mb = b1 * mb + (1 - b1) * db
        vb = b2 * vb + (1 - b2) * db * db
        w = w - lr * (mw / (1 - b1 ** t)) / (jnp.sqrt(vw / (1 - b2 ** t)) + eps)
        b = b - lr * (mb / (1 - b1 ** t)) / (jnp.sqrt(vb / (1 - b2 ** t)) + eps)
    return _ref_softmax(xq @ w.T + b), w, b


def _ref_preval(model, w0, b0, data_shot, label_shot, data_query,
                steps=_PREVAL_STEPS, lr=_PREVAL_LR):
    xs = _ref_encode(model, data_shot)
    xq = _ref_encode(model, data_query)
    y1h = jax.nn.one_hot(label_shot, model.way, dtype=jnp.float32)
    w, b = w0, b0.T
    for _ in range(steps):
        dw, db = _ref_grads(xs, y1h, w, b)
        w = w - lr * dw
        b = b - lr * db
    return _ref_softmax(xq @ w.T + b)


def _ref_pretrain(model, x):
    emb = _ref_encode(model, x)
    return _ref_softmax(emb @ model.pre_fc_w_t + model.pre_fc_b)


# --------------------------------------------------------------------------
if __name__ == "__main__":
    key = jax.random.PRNGKey(0)
    k1, k2, k3, k4, k5, k6, k7 = jax.random.split(key, 7)

    config = {'way': 4, 'base_lr': 0.005, 'update_step': 3,
              'clstype': 'multiclass'}
    Ns, Nq, C, H, W = 8, 8, 4, 16, 16

    data_shot = jax.random.normal(k1, (Ns, C, H, W), jnp.float32)
    data_query = jax.random.normal(k2, (Nq, C, H, W), jnp.float32)
    label_shot = jax.random.randint(k3, (Ns,), 0, config['way'])

    ok = True

    # --- meta mode: fused encoder + 11 Adam steps + query head (E=1) ---
    meta = MtlLearner(config, mode='meta', key=k4, in_features=C * H * W)
    w0, b0 = meta.fc2_w, meta.fc2_b
    logits_q = meta((data_shot, label_shot, data_query, None))
    logits_q = jax.block_until_ready(logits_q)
    ref_q, ref_w, ref_b = _ref_meta(meta, w0, b0,
                                    data_shot, label_shot, data_query)
    ok &= bool(jnp.allclose(logits_q, ref_q, atol=5e-3))
    ok &= bool(jnp.allclose(meta.fc2_w, ref_w, atol=5e-3))
    ok &= bool(jnp.allclose(meta.fc2_b[:, 0], ref_b[0], atol=5e-3))

    # --- batched episodes (E=2): exercises the parallel episode grid axis ---
    data_shot2 = jax.random.normal(k5, (Ns, C, H, W), jnp.float32)
    data_query2 = jax.random.normal(k6, (Nq, C, H, W), jnp.float32)
    label_shot2 = jax.random.randint(k7, (Ns,), 0, config['way'])
    meta_b = MtlLearner(config, mode='meta', key=k4, in_features=C * H * W)
    logits_b, w_b, b_b = meta_b.meta_forward_batch(
        jnp.stack([data_shot, data_shot2]),
        jnp.stack([label_shot, label_shot2]),
        jnp.stack([data_query, data_query2]))
    logits_b = jax.block_until_ready(logits_b)
    ref_q2, _, _ = _ref_meta(meta_b, meta_b.fc2_w, meta_b.fc2_b,
                             data_shot2, label_shot2, data_query2)
    ok &= bool(jnp.allclose(logits_b[0], ref_q, atol=5e-3))
    ok &= bool(jnp.allclose(logits_b[1], ref_q2, atol=5e-3))

    # --- preval mode: fused encoder + 3 SGD steps + query head ---
    preval = MtlLearner(config, mode='preval', key=k4, in_features=C * H * W)
    logits_pv = preval((data_shot, label_shot, data_query))
    logits_pv = jax.block_until_ready(logits_pv)
    ref_pv = _ref_preval(preval, preval.fc2_w, preval.fc2_b,
                         data_shot, label_shot, data_query)
    ok &= bool(jnp.allclose(logits_pv, ref_pv, atol=5e-3))

    # --- pre mode: fused encoder + pre_fc + softmax ---
    pre = MtlLearner(config, mode='pre', key=k4, in_features=C * H * W)
    probs = pre(data_query)
    probs = jax.block_until_ready(probs)
    ref_p = _ref_pretrain(pre, data_query)
    ok &= bool(jnp.allclose(probs, ref_p, atol=5e-3))

    for out in (logits_q, logits_pv, probs,
                logits_b.reshape(-1, config['way'])):
        ok &= bool(jnp.all(jnp.isfinite(out)))
        ok &= bool(jnp.allclose(jnp.sum(out, axis=1),
                                jnp.ones((out.shape[0],)), atol=1e-3))

    if ok:
        print("KERNEL_OK")
</pallas_src>

<mosaic_0001>
module attributes {stable_mosaic.version = 11 : i64} {
  func.func @_meta_kernel(%arg0: i32, %arg1: memref<1x8x1024xf32, #tpu.memory_space<vmem>>, %arg2: memref<1x8x1024xf32, #tpu.memory_space<vmem>>, %arg3: memref<1x4x8xf32, #tpu.memory_space<vmem>>, %arg4: memref<1024x256xbf16, #tpu.memory_space<vmem>>, %arg5: memref<1x256xf32, #tpu.memory_space<vmem>>, %arg6: memref<4x256xf32, #tpu.memory_space<vmem>>, %arg7: memref<4x1xf32, #tpu.memory_space<vmem>>, %arg8: memref<1x4x128xf32, #tpu.memory_space<vmem>>, %arg9: memref<1x4x384xf32, #tpu.memory_space<vmem>>) attributes {dimension_semantics = [#tpu.dimension_semantics<parallel>], iteration_bounds = array<i64: 1>, scalar_prefetch = 0 : i64, scratch_operands = 0 : i64, tpu.core_type = #tpu.core_type<tc>, window_params = [{transform_indices = @transform_0, window_bounds = array<i64: 1, 8, 1024>}, {transform_indices = @transform_1, window_bounds = array<i64: 1, 8, 1024>}, {transform_indices = @transform_2, window_bounds = array<i64: 1, 4, 8>}, {pipeline_mode = #tpu.pipeline_mode<synchronous>, transform_indices = @transform_3, window_bounds = array<i64: 1024, 256>}, {pipeline_mode = #tpu.pipeline_mode<synchronous>, transform_indices = @transform_4, window_bounds = array<i64: 1, 256>}, {pipeline_mode = #tpu.pipeline_mode<synchronous>, transform_indices = @transform_5, window_bounds = array<i64: 4, 256>}, {pipeline_mode = #tpu.pipeline_mode<synchronous>, transform_indices = @transform_6, window_bounds = array<i64: 4, 1>}, {transform_indices = @transform_7, window_bounds = array<i64: 1, 4, 128>}, {transform_indices = @transform_8, window_bounds = array<i64: 1, 4, 384>}]} {
    %c0 = arith.constant 0 : index
    %c0_0 = arith.constant 0 : index
    %0 = vector.load %arg4[%c0, %c0_0] : memref<1024x256xbf16, #tpu.memory_space<vmem>>, vector<1024x256xbf16>
    %c0_1 = arith.constant 0 : index
    %c0_2 = arith.constant 0 : index
    %1 = vector.load %arg5[%c0_1, %c0_2] : memref<1x256xf32, #tpu.memory_space<vmem>>, vector<1x256xf32>
    %c0_3 = arith.constant 0 : index
    %c0_4 = arith.constant 0 : index
    %c0_5 = arith.constant 0 : index
    %2 = vector.load %arg1[%c0_3, %c0_4, %c0_5] : memref<1x8x1024xf32, #tpu.memory_space<vmem>>, vector<1x8x1024xf32>
    %3 = vector.shape_cast %2 : vector<1x8x1024xf32> to vector<8x1024xf32>
    %4 = arith.truncf %3 : vector<8x1024xf32> to vector<8x1024xbf16>
    %cst = arith.constant dense<0.000000e+00> : vector<8x256xf32>
    %5 = tpu.matmul %4, %0, %cst {dimension_numbers = #tpu.dot_dimension_numbers<[1], [0], [0], [1], [0, 0, 1, 1], [], []>} : vector<8x1024xbf16>, vector<1024x256xbf16>, vector<8x256xf32> -> vector<8x256xf32>
    %6 = vector.broadcast %1 : vector<1x256xf32> to vector<8x256xf32>
    %7 = arith.addf %5, %6 : vector<8x256xf32>
    %c0_6 = arith.constant 0 : index
    %c0_7 = arith.constant 0 : index
    %c0_8 = arith.constant 0 : index
    %8 = vector.load %arg2[%c0_6, %c0_7, %c0_8] : memref<1x8x1024xf32, #tpu.memory_space<vmem>>, vector<1x8x1024xf32>
    %9 = vector.shape_cast %8 : vector<1x8x1024xf32> to vector<8x1024xf32>
    %10 = arith.truncf %9 : vector<8x1024xf32> to vector<8x1024xbf16>
    %cst_9 = arith.constant dense<0.000000e+00> : vector<8x256xf32>
    %11 = tpu.matmul %10, %0, %cst_9 {dimension_numbers = #tpu.dot_dimension_numbers<[1], [0], [0], [1], [0, 0, 1, 1], [], []>} : vector<8x1024xbf16>, vector<1024x256xbf16>, vector<8x256xf32> -> vector<8x256xf32>
    %12 = vector.broadcast %1 : vector<1x256xf32> to vector<8x256xf32>
    %13 = arith.addf %11, %12 : vector<8x256xf32>
    %14 = tpu.transpose %7, [1, 0] : vector<8x256xf32> -> vector<256x8xf32>
    %c0_10 = arith.constant 0 : index
    %c0_11 = arith.constant 0 : index
    %c0_12 = arith.constant 0 : index
    %15 = vector.load %arg3[%c0_10, %c0_11, %c0_12] : memref<1x4x8xf32, #tpu.memory_space<vmem>>, vector<1x4x8xf32>
    %16 = vector.shape_cast %15 : vector<1x4x8xf32> to vector<4x8xf32>
    %c0_13 = arith.constant 0 : index
    %c0_14 = arith.constant 0 : index
    %17 = vector.load %arg6[%c0_13, %c0_14] : memref<4x256xf32, #tpu.memory_space<vmem>>, vector<4x256xf32>
    %c0_15 = arith.constant 0 : index
    %c0_16 = arith.constant 0 : index
    %18 = vector.load %arg7[%c0_15, %c0_16] : memref<4x1xf32, #tpu.memory_space<vmem>>, vector<4x1xf32>
    %cst_17 = arith.constant 0.000000e+00 : f32
    %19 = vector.broadcast %cst_17 : f32 to vector<4x256xf32>
    %cst_18 = arith.constant 0.000000e+00 : f32
    %20 = vector.broadcast %cst_18 : f32 to vector<4x256xf32>
    %cst_19 = arith.constant 0.000000e+00 : f32
    %21 = vector.broadcast %cst_19 : f32 to vector<4x1xf32>
    %cst_20 = arith.constant 0.000000e+00 : f32
    %22 = vector.broadcast %cst_20 : f32 to vector<4x1xf32>
    %cst_21 = arith.constant dense<0.000000e+00> : vector<4x8xf32>
    %23 = tpu.matmul %17, %14, %cst_21 {dimension_numbers = #tpu.dot_dimension_numbers<[1], [0], [0], [1], [0, 0, 1, 1], [], []>} : vector<4x256xf32>, vector<256x8xf32>, vector<4x8xf32> -> vector<4x8xf32>
    %24 = vector.broadcast %18 : vector<4x1xf32> to vector<4x8xf32>
    %25 = arith.addf %23, %24 : vector<4x8xf32>
    %cst_22 = arith.constant dense<0xFF800000> : vector<8xf32>
    %26 = vector.multi_reduction <maximumf>, %25, %cst_22 [0] : vector<4x8xf32> to vector<8xf32>
    %27 = vector.shape_cast %26 : vector<8xf32> to vector<1x8xf32>
    %28 = vector.broadcast %27 : vector<1x8xf32> to vector<4x8xf32>
    %29 = arith.subf %25, %28 : vector<4x8xf32>
    %30 = math.exp %29 : vector<4x8xf32>
    %cst_23 = arith.constant dense<0.000000e+00> : vector<8xf32>
    %31 = vector.multi_reduction <add>, %30, %cst_23 [0] : vector<4x8xf32> to vector<8xf32>
    %32 = vector.shape_cast %31 : vector<8xf32> to vector<1x8xf32>
    %33 = tpu.reciprocal %32 {approx = true} : vector<1x8xf32> -> vector<1x8xf32>
    %34 = vector.broadcast %33 : vector<1x8xf32> to vector<4x8xf32>
    %35 = arith.mulf %30, %34 : vector<4x8xf32>
    %cst_24 = arith.constant dense<0xFF800000> : vector<8xf32>
    %36 = vector.multi_reduction <maximumf>, %35, %cst_24 [0] : vector<4x8xf32> to vector<8xf32>
    %37 = vector.shape_cast %36 : vector<8xf32> to vector<1x8xf32>
    %38 = vector.broadcast %37 : vector<1x8xf32> to vector<4x8xf32>
    %39 = arith.subf %35, %38 : vector<4x8xf32>
    %40 = math.exp %39 : vector<4x8xf32>
    %cst_25 = arith.constant dense<0.000000e+00> : vector<8xf32>
    %41 = vector.multi_reduction <add>, %40, %cst_25 [0] : vector<4x8xf32> to vector<8xf32>
    %42 = vector.shape_cast %41 : vector<8xf32> to vector<1x8xf32>
    %43 = tpu.reciprocal %42 : vector<1x8xf32> -> vector<1x8xf32>
    %44 = vector.broadcast %43 : vector<1x8xf32> to vector<4x8xf32>
    %45 = arith.mulf %40, %44 : vector<4x8xf32>
    %46 = arith.subf %45, %16 : vector<4x8xf32>
    %cst_26 = arith.constant 1.250000e-01 : f32
    %47 = vector.broadcast %cst_26 : f32 to vector<4x8xf32>
    %48 = arith.mulf %46, %47 : vector<4x8xf32>
    %49 = arith.mulf %48, %35 : vector<4x8xf32>
    %cst_27 = arith.constant dense<0.000000e+00> : vector<8xf32>
    %50 = vector.multi_reduction <add>, %49, %cst_27 [0] : vector<4x8xf32> to vector<8xf32>
    %51 = vector.shape_cast %50 : vector<8xf32> to vector<1x8xf32>
    %52 = vector.broadcast %51 : vector<1x8xf32> to vector<4x8xf32>
    %53 = arith.subf %48, %52 : vector<4x8xf32>
    %54 = arith.mulf %35, %53 : vector<4x8xf32>
    %cst_28 = arith.constant dense<0.000000e+00> : vector<4x256xf32>
    %55 = tpu.matmul %54, %7, %cst_28 {dimension_numbers = #tpu.dot_dimension_numbers<[1], [0], [0], [1], [0, 0, 1, 1], [], []>} : vector<4x8xf32>, vector<8x256xf32>, vector<4x256xf32> -> vector<4x256xf32>
    %cst_29 = arith.constant dense<0.000000e+00> : vector<4xf32>
    %56 = vector.multi_reduction <add>, %54, %cst_29 [1] : vector<4x8xf32> to vector<4xf32>
    %57 = vector.shape_cast %56 : vector<4xf32> to vector<4x1xf32>
    %cst_30 = arith.constant 0.899999976 : f32
    %58 = vector.broadcast %cst_30 : f32 to vector<4x256xf32>
    %59 = arith.mulf %58, %19 : vector<4x256xf32>
    %cst_31 = arith.constant 1.000000e-01 : f32
    %60 = vector.broadcast %cst_31 : f32 to vector<4x256xf32>
    %61 = arith.mulf %60, %55 : vector<4x256xf32>
    %62 = arith.addf %59, %61 : vector<4x256xf32>
    %cst_32 = arith.constant 9.990000e-01 : f32
    %63 = vector.broadcast %cst_32 : f32 to vector<4x256xf32>
    %64 = arith.mulf %63, %20 : vector<4x256xf32>
    %cst_33 = arith.constant 1.000000e-03 : f32
    %65 = vector.broadcast %cst_33 : f32 to vector<4x256xf32>
    %66 = arith.mulf %65, %55 : vector<4x256xf32>
    %67 = arith.mulf %66, %55 : vector<4x256xf32>
    %68 = arith.addf %64, %67 : vector<4x256xf32>
    %cst_34 = arith.constant 0.899999976 : f32
    %69 = vector.broadcast %cst_34 : f32 to vector<4x1xf32>
    %70 = arith.mulf %69, %21 : vector<4x1xf32>
    %cst_35 = arith.constant 1.000000e-01 : f32
    %71 = vector.broadcast %cst_35 : f32 to vector<4x1xf32>
    %72 = arith.mulf %71, %57 : vector<4x1xf32>
    %73 = arith.addf %70, %72 : vector<4x1xf32>
    %cst_36 = arith.constant 9.990000e-01 : f32
    %74 = vector.broadcast %cst_36 : f32 to vector<4x1xf32>
    %75 = arith.mulf %74, %22 : vector<4x1xf32>
    %cst_37 = arith.constant 1.000000e-03 : f32
    %76 = vector.broadcast %cst_37 : f32 to vector<4x1xf32>
    %77 = arith.mulf %76, %57 : vector<4x1xf32>
    %78 = arith.mulf %77, %57 : vector<4x1xf32>
    %79 = arith.addf %75, %78 : vector<4x1xf32>
    %cst_38 = arith.constant 0.00999999977 : f32
    %80 = vector.broadcast %cst_38 : f32 to vector<4x256xf32>
    %81 = arith.mulf %80, %62 : vector<4x256xf32>
    %cst_39 = arith.constant 1.000000e+03 : f32
    %82 = vector.broadcast %cst_39 : f32 to vector<4x256xf32>
    %83 = arith.mulf %68, %82 : vector<4x256xf32>
    %84 = math.sqrt %83 : vector<4x256xf32>
    %cst_40 = arith.constant 9.99999993E-9 : f32
    %85 = vector.broadcast %cst_40 : f32 to vector<4x256xf32>
    %86 = arith.addf %84, %85 : vector<4x256xf32>
    %87 = tpu.reciprocal %86 {approx = true} : vector<4x256xf32> -> vector<4x256xf32>
    %88 = arith.mulf %81, %87 : vector<4x256xf32>
    %89 = arith.subf %17, %88 : vector<4x256xf32>
    %cst_41 = arith.constant 0.00999999977 : f32
    %90 = vector.broadcast %cst_41 : f32 to vector<4x1xf32>
    %91 = arith.mulf %90, %73 : vector<4x1xf32>
    %cst_42 = arith.constant 1.000000e+03 : f32
    %92 = vector.broadcast %cst_42 : f32 to vector<4x1xf32>
    %93 = arith.mulf %79, %92 : vector<4x1xf32>
    %94 = math.sqrt %93 : vector<4x1xf32>
    %cst_43 = arith.constant 9.99999993E-9 : f32
    %95 = vector.broadcast %cst_43 : f32 to vector<4x1xf32>
    %96 = arith.addf %94, %95 : vector<4x1xf32>
    %97 = tpu.reciprocal %96 {approx = true} : vector<4x1xf32> -> vector<4x1xf32>
    %98 = arith.mulf %91, %97 : vector<4x1xf32>
    %99 = arith.subf %18, %98 : vector<4x1xf32>
    %cst_44 = arith.constant dense<0.000000e+00> : vector<4x8xf32>
    %100 = tpu.matmul %89, %14, %cst_44 {dimension_numbers = #tpu.dot_dimension_numbers<[1], [0], [0], [1], [0, 0, 1, 1], [], []>} : vector<4x256xf32>, vector<256x8xf32>, vector<4x8xf32> -> vector<4x8xf32>
    %101 = vector.broadcast %99 : vector<4x1xf32> to vector<4x8xf32>
    %102 = arith.addf %100, %101 : vector<4x8xf32>
    %cst_45 = arith.constant dense<0xFF800000> : vector<8xf32>
    %103 = vector.multi_reduction <maximumf>, %102, %cst_45 [0] : vector<4x8xf32> to vector<8xf32>
    %104 = vector.shape_cast %103 : vector<8xf32> to vector<1x8xf32>
    %105 = vector.broadcast %104 : vector<1x8xf32> to vector<4x8xf32>
    %106 = arith.subf %102, %105 : vector<4x8xf32>
    %107 = math.exp %106 : vector<4x8xf32>
    %cst_46 = arith.constant dense<0.000000e+00> : vector<8xf32>
    %108 = vector.multi_reduction <add>, %107, %cst_46 [0] : vector<4x8xf32> to vector<8xf32>
    %109 = vector.shape_cast %108 : vector<8xf32> to vector<1x8xf32>
    %110 = tpu.reciprocal %109 {approx = true} : vector<1x8xf32> -> vector<1x8xf32>
    %111 = vector.broadcast %110 : vector<1x8xf32> to vector<4x8xf32>
    %112 = arith.mulf %107, %111 : vector<4x8xf32>
    %cst_47 = arith.constant dense<0xFF800000> : vector<8xf32>
    %113 = vector.multi_reduction <maximumf>, %112, %cst_47 [0] : vector<4x8xf32> to vector<8xf32>
    %114 = vector.shape_cast %113 : vector<8xf32> to vector<1x8xf32>
    %115 = vector.broadcast %114 : vector<1x8xf32> to vector<4x8xf32>
    %116 = arith.subf %112, %115 : vector<4x8xf32>
    %117 = math.exp %116 : vector<4x8xf32>
    %cst_48 = arith.constant dense<0.000000e+00> : vector<8xf32>
    %118 = vector.multi_reduction <add>, %117, %cst_48 [0] : vector<4x8xf32> to vector<8xf32>
    %119 = vector.shape_cast %118 : vector<8xf32> to vector<1x8xf32>
    %120 = tpu.reciprocal %119 : vector<1x8xf32> -> vector<1x8xf32>
    %121 = vector.broadcast %120 : vector<1x8xf32> to vector<4x8xf32>
    %122 = arith.mulf %117, %121 : vector<4x8xf32>
    %123 = arith.subf %122, %16 : vector<4x8xf32>
    %cst_49 = arith.constant 1.250000e-01 : f32
    %124 = vector.broadcast %cst_49 : f32 to vector<4x8xf32>
    %125 = arith.mulf %123, %124 : vector<4x8xf32>
    %126 = arith.mulf %125, %112 : vector<4x8xf32>
    %cst_50 = arith.constant dense<0.000000e+00> : vector<8xf32>
    %127 = vector.multi_reduction <add>, %126, %cst_50 [0] : vector<4x8xf32> to vector<8xf32>
    %128 = vector.shape_cast %127 : vector<8xf32> to vector<1x8xf32>
    %129 = vector.broadcast %128 : vector<1x8xf32> to vector<4x8xf32>
    %130 = arith.subf %125, %129 : vector<4x8xf32>
    %131 = arith.mulf %112, %130 : vector<4x8xf32>
    %cst_51 = arith.constant dense<0.000000e+00> : vector<4x256xf32>
    %132 = tpu.matmul %131, %7, %cst_51 {dimension_numbers = #tpu.dot_dimension_numbers<[1], [0], [0], [1], [0, 0, 1, 1], [], []>} : vector<4x8xf32>, vector<8x256xf32>, vector<4x256xf32> -> vector<4x256xf32>
    %cst_52 = arith.constant dense<0.000000e+00> : vector<4xf32>
    %133 = vector.multi_reduction <add>, %131, %cst_52 [1] : vector<4x8xf32> to vector<4xf32>
    %134 = vector.shape_cast %133 : vector<4xf32> to vector<4x1xf32>
    %cst_53 = arith.constant 0.899999976 : f32
    %135 = vector.broadcast %cst_53 : f32 to vector<4x256xf32>
    %136 = arith.mulf %135, %62 : vector<4x256xf32>
    %cst_54 = arith.constant 1.000000e-01 : f32
    %137 = vector.broadcast %cst_54 : f32 to vector<4x256xf32>
    %138 = arith.mulf %137, %132 : vector<4x256xf32>
    %139 = arith.addf %136, %138 : vector<4x256xf32>
    %cst_55 = arith.constant 9.990000e-01 : f32
    %140 = vector.broadcast %cst_55 : f32 to vector<4x256xf32>
    %141 = arith.mulf %140, %68 : vector<4x256xf32>
    %cst_56 = arith.constant 1.000000e-03 : f32
    %142 = vector.broadcast %cst_56 : f32 to vector<4x256xf32>
    %143 = arith.mulf %142, %132 : vector<4x256xf32>
    %144 = arith.mulf %143, %132 : vector<4x256xf32>
    %145 = arith.addf %141, %144 : vector<4x256xf32>
    %cst_57 = arith.constant 0.899999976 : f32
    %146 = vector.broadcast %cst_57 : f32 to vector<4x1xf32>
    %147 = arith.mulf %146, %73 : vector<4x1xf32>
    %cst_58 = arith.constant 1.000000e-01 : f32
    %148 = vector.broadcast %cst_58 : f32 to vector<4x1xf32>
    %149 = arith.mulf %148, %134 : vector<4x1xf32>
    %150 = arith.addf %147, %149 : vector<4x1xf32>
    %cst_59 = arith.constant 9.990000e-01 : f32
    %151 = vector.broadcast %cst_59 : f32 to vector<4x1xf32>
    %152 = arith.mulf %151, %79 : vector<4x1xf32>
    %cst_60 = arith.constant 1.000000e-03 : f32
    %153 = vector.broadcast %cst_60 : f32 to vector<4x1xf32>
    %154 = arith.mulf %153, %134 : vector<4x1xf32>
    %155 = arith.mulf %154, %134 : vector<4x1xf32>
    %156 = arith.addf %152, %155 : vector<4x1xf32>
    %cst_61 = arith.constant 0.00526315812 : f32
    %157 = vector.broadcast %cst_61 : f32 to vector<4x256xf32>
    %158 = arith.mulf %157, %139 : vector<4x256xf32>
    %cst_62 = arith.constant 500.250122 : f32
    %159 = vector.broadcast %cst_62 : f32 to vector<4x256xf32>
    %160 = arith.mulf %145, %159 : vector<4x256xf32>
    %161 = math.sqrt %160 : vector<4x256xf32>
    %cst_63 = arith.constant 9.99999993E-9 : f32
    %162 = vector.broadcast %cst_63 : f32 to vector<4x256xf32>
    %163 = arith.addf %161, %162 : vector<4x256xf32>
    %164 = tpu.reciprocal %163 {approx = true} : vector<4x256xf32> -> vector<4x256xf32>
    %165 = arith.mulf %158, %164 : vector<4x256xf32>
    %166 = arith.subf %89, %165 : vector<4x256xf32>
    %cst_64 = arith.constant 0.00526315812 : f32
    %167 = vector.broadcast %cst_64 : f32 to vector<4x1xf32>
    %168 = arith.mulf %167, %150 : vector<4x1xf32>
    %cst_65 = arith.constant 500.250122 : f32
    %169 = vector.broadcast %cst_65 : f32 to vector<4x1xf32>
    %170 = arith.mulf %156, %169 : vector<4x1xf32>
    %171 = math.sqrt %170 : vector<4x1xf32>
    %cst_66 = arith.constant 9.99999993E-9 : f32
    %172 = vector.broadcast %cst_66 : f32 to vector<4x1xf32>
    %173 = arith.addf %171, %172 : vector<4x1xf32>
    %174 = tpu.reciprocal %173 {approx = true} : vector<4x1xf32> -> vector<4x1xf32>
    %175 = arith.mulf %168, %174 : vector<4x1xf32>
    %176 = arith.subf %99, %175 : vector<4x1xf32>
    %cst_67 = arith.constant dense<0.000000e+00> : vector<4x8xf32>
    %177 = tpu.matmul %166, %14, %cst_67 {dimension_numbers = #tpu.dot_dimension_numbers<[1], [0], [0], [1], [0, 0, 1, 1], [], []>} : vector<4x256xf32>, vector<256x8xf32>, vector<4x8xf32> -> vector<4x8xf32>
    %178 = vector.broadcast %176 : vector<4x1xf32> to vector<4x8xf32>
    %179 = arith.addf %177, %178 : vector<4x8xf32>
    %cst_68 = arith.constant dense<0xFF800000> : vector<8xf32>
    %180 = vector.multi_reduction <maximumf>, %179, %cst_68 [0] : vector<4x8xf32> to vector<8xf32>
    %181 = vector.shape_cast %180 : vector<8xf32> to vector<1x8xf32>
    %182 = vector.broadcast %181 : vector<1x8xf32> to vector<4x8xf32>
    %183 = arith.subf %179, %182 : vector<4x8xf32>
    %184 = math.exp %183 : vector<4x8xf32>
    %cst_69 = arith.constant dense<0.000000e+00> : vector<8xf32>
    %185 = vector.multi_reduction <add>, %184, %cst_69 [0] : vector<4x8xf32> to vector<8xf32>
    %186 = vector.shape_cast %185 : vector<8xf32> to vector<1x8xf32>
    %187 = tpu.reciprocal %186 {approx = true} : vector<1x8xf32> -> vector<1x8xf32>
    %188 = vector.broadcast %187 : vector<1x8xf32> to vector<4x8xf32>
    %189 = arith.mulf %184, %188 : vector<4x8xf32>
    %cst_70 = arith.constant dense<0xFF800000> : vector<8xf32>
    %190 = vector.multi_reduction <maximumf>, %189, %cst_70 [0] : vector<4x8xf32> to vector<8xf32>
    %191 = vector.shape_cast %190 : vector<8xf32> to vector<1x8xf32>
    %192 = vector.broadcast %191 : vector<1x8xf32> to vector<4x8xf32>
    %193 = arith.subf %189, %192 : vector<4x8xf32>
    %194 = math.exp %193 : vector<4x8xf32>
    %cst_71 = arith.constant dense<0.000000e+00> : vector<8xf32>
    %195 = vector.multi_reduction <add>, %194, %cst_71 [0] : vector<4x8xf32> to vector<8xf32>
    %196 = vector.shape_cast %195 : vector<8xf32> to vector<1x8xf32>
    %197 = tpu.reciprocal %196 : vector<1x8xf32> -> vector<1x8xf32>
    %198 = vector.broadcast %197 : vector<1x8xf32> to vector<4x8xf32>
    %199 = arith.mulf %194, %198 : vector<4x8xf32>
    %200 = arith.subf %199, %16 : vector<4x8xf32>
    %cst_72 = arith.constant 1.250000e-01 : f32
    %201 = vector.broadcast %cst_72 : f32 to vector<4x8xf32>
    %202 = arith.mulf %200, %201 : vector<4x8xf32>
    %203 = arith.mulf %202, %189 : vector<4x8xf32>
    %cst_73 = arith.constant dense<0.000000e+00> : vector<8xf32>
    %204 = vector.multi_reduction <add>, %203, %cst_73 [0] : vector<4x8xf32> to vector<8xf32>
    %205 = vector.shape_cast %204 : vector<8xf32> to vector<1x8xf32>
    %206 = vector.broadcast %205 : vector<1x8xf32> to vector<4x8xf32>
    %207 = arith.subf %202, %206 : vector<4x8xf32>
    %208 = arith.mulf %189, %207 : vector<4x8xf32>
    %cst_74 = arith.constant dense<0.000000e+00> : vector<4x256xf32>
    %209 = tpu.matmul %208, %7, %cst_74 {dimension_numbers = #tpu.dot_dimension_numbers<[1], [0], [0], [1], [0, 0, 1, 1], [], []>} : vector<4x8xf32>, vector<8x256xf32>, vector<4x256xf32> -> vector<4x256xf32>
    %cst_75 = arith.constant dense<0.000000e+00> : vector<4xf32>
    %210 = vector.multi_reduction <add>, %208, %cst_75 [1] : vector<4x8xf32> to vector<4xf32>
    %211 = vector.shape_cast %210 : vector<4xf32> to vector<4x1xf32>
    %cst_76 = arith.constant 0.899999976 : f32
    %212 = vector.broadcast %cst_76 : f32 to vector<4x256xf32>
    %213 = arith.mulf %212, %139 : vector<4x256xf32>
    %cst_77 = arith.constant 1.000000e-01 : f32
    %214 = vector.broadcast %cst_77 : f32 to vector<4x256xf32>
    %215 = arith.mulf %214, %209 : vector<4x256xf32>
    %216 = arith.addf %213, %215 : vector<4x256xf32>
    %cst_78 = arith.constant 9.990000e-01 : f32
    %217 = vector.broadcast %cst_78 : f32 to vector<4x256xf32>
    %218 = arith.mulf %217, %145 : vector<4x256xf32>
    %cst_79 = arith.constant 1.000000e-03 : f32
    %219 = vector.broadcast %cst_79 : f32 to vector<4x256xf32>
    %220 = arith.mulf %219, %209 : vector<4x256xf32>
    %221 = arith.mulf %220, %209 : vector<4x256xf32>
    %222 = arith.addf %218, %221 : vector<4x256xf32>
    %cst_80 = arith.constant 0.899999976 : f32
    %223 = vector.broadcast %cst_80 : f32 to vector<4x1xf32>
    %224 = arith.mulf %223, %150 : vector<4x1xf32>
    %cst_81 = arith.constant 1.000000e-01 : f32
    %225 = vector.broadcast %cst_81 : f32 to vector<4x1xf32>
    %226 = arith.mulf %225, %211 : vector<4x1xf32>
    %227 = arith.addf %224, %226 : vector<4x1xf32>
    %cst_82 = arith.constant 9.990000e-01 : f32
    %228 = vector.broadcast %cst_82 : f32 to vector<4x1xf32>
    %229 = arith.mulf %228, %156 : vector<4x1xf32>
    %cst_83 = arith.constant 1.000000e-03 : f32
    %230 = vector.broadcast %cst_83 : f32 to vector<4x1xf32>
    %231 = arith.mulf %230, %211 : vector<4x1xf32>
    %232 = arith.mulf %231, %211 : vector<4x1xf32>
    %233 = arith.addf %229, %232 : vector<4x1xf32>
    %cst_84 = arith.constant 0.00369003695 : f32
    %234 = vector.broadcast %cst_84 : f32 to vector<4x256xf32>
    %235 = arith.mulf %234, %216 : vector<4x256xf32>
    %cst_85 = arith.constant 333.666901 : f32
    %236 = vector.broadcast %cst_85 : f32 to vector<4x256xf32>
    %237 = arith.mulf %222, %236 : vector<4x256xf32>
    %238 = math.sqrt %237 : vector<4x256xf32>
    %cst_86 = arith.constant 9.99999993E-9 : f32
    %239 = vector.broadcast %cst_86 : f32 to vector<4x256xf32>
    %240 = arith.addf %238, %239 : vector<4x256xf32>
    %241 = tpu.reciprocal %240 {approx = true} : vector<4x256xf32> -> vector<4x256xf32>
    %242 = arith.mulf %235, %241 : vector<4x256xf32>
    %243 = arith.subf %166, %242 : vector<4x256xf32>
    %cst_87 = arith.constant 0.00369003695 : f32
    %244 = vector.broadcast %cst_87 : f32 to vector<4x1xf32>
    %245 = arith.mulf %244, %227 : vector<4x1xf32>
    %cst_88 = arith.constant 333.666901 : f32
    %246 = vector.broadcast %cst_88 : f32 to vector<4x1xf32>
    %247 = arith.mulf %233, %246 : vector<4x1xf32>
    %248 = math.sqrt %247 : vector<4x1xf32>
    %cst_89 = arith.constant 9.99999993E-9 : f32
    %249 = vector.broadcast %cst_89 : f32 to vector<4x1xf32>
    %250 = arith.addf %248, %249 : vector<4x1xf32>
    %251 = tpu.reciprocal %250 {approx = true} : vector<4x1xf32> -> vector<4x1xf32>
    %252 = arith.mulf %245, %251 : vector<4x1xf32>
    %253 = arith.subf %176, %252 : vector<4x1xf32>
    %cst_90 = arith.constant dense<0.000000e+00> : vector<4x8xf32>
    %254 = tpu.matmul %243, %14, %cst_90 {dimension_numbers = #tpu.dot_dimension_numbers<[1], [0], [0], [1], [0, 0, 1, 1], [], []>} : vector<4x256xf32>, vector<256x8xf32>, vector<4x8xf32> -> vector<4x8xf32>
    %255 = vector.broadcast %253 : vector<4x1xf32> to vector<4x8xf32>
    %256 = arith.addf %254, %255 : vector<4x8xf32>
    %cst_91 = arith.constant dense<0xFF800000> : vector<8xf32>
    %257 = vector.multi_reduction <maximumf>, %256, %cst_91 [0] : vector<4x8xf32> to vector<8xf32>
    %258 = vector.shape_cast %257 : vector<8xf32> to vector<1x8xf32>
    %259 = vector.broadcast %258 : vector<1x8xf32> to vector<4x8xf32>
    %260 = arith.subf %256, %259 : vector<4x8xf32>
    %261 = math.exp %260 : vector<4x8xf32>
    %cst_92 = arith.constant dense<0.000000e+00> : vector<8xf32>
    %262 = vector.multi_reduction <add>, %261, %cst_92 [0] : vector<4x8xf32> to vector<8xf32>
    %263 = vector.shape_cast %262 : vector<8xf32> to vector<1x8xf32>
    %264 = tpu.reciprocal %263 {approx = true} : vector<1x8xf32> -> vector<1x8xf32>
    %265 = vector.broadcast %264 : vector<1x8xf32> to vector<4x8xf32>
    %266 = arith.mulf %261, %265 : vector<4x8xf32>
    %cst_93 = arith.constant dense<0xFF800000> : vector<8xf32>
    %267 = vector.multi_reduction <maximumf>, %266, %cst_93 [0] : vector<4x8xf32> to vector<8xf32>
    %268 = vector.shape_cast %267 : vector<8xf32> to vector<1x8xf32>
    %269 = vector.broadcast %268 : vector<1x8xf32> to vector<4x8xf32>
    %270 = arith.subf %266, %269 : vector<4x8xf32>
    %271 = math.exp %270 : vector<4x8xf32>
    %cst_94 = arith.constant dense<0.000000e+00> : vector<8xf32>
    %272 = vector.multi_reduction <add>, %271, %cst_94 [0] : vector<4x8xf32> to vector<8xf32>
    %273 = vector.shape_cast %272 : vector<8xf32> to vector<1x8xf32>
    %274 = tpu.reciprocal %273 : vector<1x8xf32> -> vector<1x8xf32>
    %275 = vector.broadcast %274 : vector<1x8xf32> to vector<4x8xf32>
    %276 = arith.mulf %271, %275 : vector<4x8xf32>
    %277 = arith.subf %276, %16 : vector<4x8xf32>
    %cst_95 = arith.constant 1.250000e-01 : f32
    %278 = vector.broadcast %cst_95 : f32 to vector<4x8xf32>
    %279 = arith.mulf %277, %278 : vector<4x8xf32>
    %280 = arith.mulf %279, %266 : vector<4x8xf32>
    %cst_96 = arith.constant dense<0.000000e+00> : vector<8xf32>
    %281 = vector.multi_reduction <add>, %280, %cst_96 [0] : vector<4x8xf32> to vector<8xf32>
    %282 = vector.shape_cast %281 : vector<8xf32> to vector<1x8xf32>
    %283 = vector.broadcast %282 : vector<1x8xf32> to vector<4x8xf32>
    %284 = arith.subf %279, %283 : vector<4x8xf32>
    %285 = arith.mulf %266, %284 : vector<4x8xf32>
    %cst_97 = arith.constant dense<0.000000e+00> : vector<4x256xf32>
    %286 = tpu.matmul %285, %7, %cst_97 {dimension_numbers = #tpu.dot_dimension_numbers<[1], [0], [0], [1], [0, 0, 1, 1], [], []>} : vector<4x8xf32>, vector<8x256xf32>, vector<4x256xf32> -> vector<4x256xf32>
    %cst_98 = arith.constant dense<0.000000e+00> : vector<4xf32>
    %287 = vector.multi_reduction <add>, %285, %cst_98 [1] : vector<4x8xf32> to vector<4xf32>
    %288 = vector.shape_cast %287 : vector<4xf32> to vector<4x1xf32>
    %cst_99 = arith.constant 0.899999976 : f32
    %289 = vector.broadcast %cst_99 : f32 to vector<4x256xf32>
    %290 = arith.mulf %289, %216 : vector<4x256xf32>
    %cst_100 = arith.constant 1.000000e-01 : f32
    %291 = vector.broadcast %cst_100 : f32 to vector<4x256xf32>
    %292 = arith.mulf %291, %286 : vector<4x256xf32>
    %293 = arith.addf %290, %292 : vector<4x256xf32>
    %cst_101 = arith.constant 9.990000e-01 : f32
    %294 = vector.broadcast %cst_101 : f32 to vector<4x256xf32>
    %295 = arith.mulf %294, %222 : vector<4x256xf32>
    %cst_102 = arith.constant 1.000000e-03 : f32
    %296 = vector.broadcast %cst_102 : f32 to vector<4x256xf32>
    %297 = arith.mulf %296, %286 : vector<4x256xf32>
    %298 = arith.mulf %297, %286 : vector<4x256xf32>
    %299 = arith.addf %295, %298 : vector<4x256xf32>
    %cst_103 = arith.constant 0.899999976 : f32
    %300 = vector.broadcast %cst_103 : f32 to vector<4x1xf32>
    %301 = arith.mulf %300, %227 : vector<4x1xf32>
    %cst_104 = arith.constant 1.000000e-01 : f32
    %302 = vector.broadcast %cst_104 : f32 to vector<4x1xf32>
    %303 = arith.mulf %302, %288 : vector<4x1xf32>
    %304 = arith.addf %301, %303 : vector<4x1xf32>
    %cst_105 = arith.constant 9.990000e-01 : f32
    %305 = vector.broadcast %cst_105 : f32 to vector<4x1xf32>
    %306 = arith.mulf %305, %233 : vector<4x1xf32>
    %cst_106 = arith.constant 1.000000e-03 : f32
    %307 = vector.broadcast %cst_106 : f32 to vector<4x1xf32>
    %308 = arith.mulf %307, %288 : vector<4x1xf32>
    %309 = arith.mulf %308, %288 : vector<4x1xf32>
    %310 = arith.addf %306, %309 : vector<4x1xf32>
    %cst_107 = arith.constant 0.00290782214 : f32
    %311 = vector.broadcast %cst_107 : f32 to vector<4x256xf32>
    %312 = arith.mulf %311, %293 : vector<4x256xf32>
    %cst_108 = arith.constant 250.375305 : f32
    %313 = vector.broadcast %cst_108 : f32 to vector<4x256xf32>
    %314 = arith.mulf %299, %313 : vector<4x256xf32>
    %315 = math.sqrt %314 : vector<4x256xf32>
    %cst_109 = arith.constant 9.99999993E-9 : f32
    %316 = vector.broadcast %cst_109 : f32 to vector<4x256xf32>
    %317 = arith.addf %315, %316 : vector<4x256xf32>
    %318 = tpu.reciprocal %317 {approx = true} : vector<4x256xf32> -> vector<4x256xf32>
    %319 = arith.mulf %312, %318 : vector<4x256xf32>
    %320 = arith.subf %243, %319 : vector<4x256xf32>
    %cst_110 = arith.constant 0.00290782214 : f32
    %321 = vector.broadcast %cst_110 : f32 to vector<4x1xf32>
    %322 = arith.mulf %321, %304 : vector<4x1xf32>
    %cst_111 = arith.constant 250.375305 : f32
    %323 = vector.broadcast %cst_111 : f32 to vector<4x1xf32>
    %324 = arith.mulf %310, %323 : vector<4x1xf32>
    %325 = math.sqrt %324 : vector<4x1xf32>
    %cst_112 = arith.constant 9.99999993E-9 : f32
    %326 = vector.broadcast %cst_112 : f32 to vector<4x1xf32>
    %327 = arith.addf %325, %326 : vector<4x1xf32>
    %328 = tpu.reciprocal %327 {approx = true} : vector<4x1xf32> -> vector<4x1xf32>
    %329 = arith.mulf %322, %328 : vector<4x1xf32>
    %330 = arith.subf %253, %329 : vector<4x1xf32>
    %cst_113 = arith.constant dense<0.000000e+00> : vector<4x8xf32>
    %331 = tpu.matmul %320, %14, %cst_113 {dimension_numbers = #tpu.dot_dimension_numbers<[1], [0], [0], [1], [0, 0, 1, 1], [], []>} : vector<4x256xf32>, vector<256x8xf32>, vector<4x8xf32> -> vector<4x8xf32>
    %332 = vector.broadcast %330 : vector<4x1xf32> to vector<4x8xf32>
    %333 = arith.addf %331, %332 : vector<4x8xf32>
    %cst_114 = arith.constant dense<0xFF800000> : vector<8xf32>
    %334 = vector.multi_reduction <maximumf>, %333, %cst_114 [0] : vector<4x8xf32> to vector<8xf32>
    %335 = vector.shape_cast %334 : vector<8xf32> to vector<1x8xf32>
    %336 = vector.broadcast %335 : vector<1x8xf32> to vector<4x8xf32>
    %337 = arith.subf %333, %336 : vector<4x8xf32>
    %338 = math.exp %337 : vector<4x8xf32>
    %cst_115 = arith.constant dense<0.000000e+00> : vector<8xf32>
    %339 = vector.multi_reduction <add>, %338, %cst_115 [0] : vector<4x8xf32> to vector<8xf32>
    %340 = vector.shape_cast %339 : vector<8xf32> to vector<1x8xf32>
    %341 = tpu.reciprocal %340 {approx = true} : vector<1x8xf32> -> vector<1x8xf32>
    %342 = vector.broadcast %341 : vector<1x8xf32> to vector<4x8xf32>
    %343 = arith.mulf %338, %342 : vector<4x8xf32>
    %cst_116 = arith.constant dense<0xFF800000> : vector<8xf32>
    %344 = vector.multi_reduction <maximumf>, %343, %cst_116 [0] : vector<4x8xf32> to vector<8xf32>
    %345 = vector.shape_cast %344 : vector<8xf32> to vector<1x8xf32>
    %346 = vector.broadcast %345 : vector<1x8xf32> to vector<4x8xf32>
    %347 = arith.subf %343, %346 : vector<4x8xf32>
    %348 = math.exp %347 : vector<4x8xf32>
    %cst_117 = arith.constant dense<0.000000e+00> : vector<8xf32>
    %349 = vector.multi_reduction <add>, %348, %cst_117 [0] : vector<4x8xf32> to vector<8xf32>
    %350 = vector.shape_cast %349 : vector<8xf32> to vector<1x8xf32>
    %351 = tpu.reciprocal %350 : vector<1x8xf32> -> vector<1x8xf32>
    %352 = vector.broadcast %351 : vector<1x8xf32> to vector<4x8xf32>
    %353 = arith.mulf %348, %352 : vector<4x8xf32>
    %354 = arith.subf %353, %16 : vector<4x8xf32>
    %cst_118 = arith.constant 1.250000e-01 : f32
    %355 = vector.broadcast %cst_118 : f32 to vector<4x8xf32>
    %356 = arith.mulf %354, %355 : vector<4x8xf32>
    %357 = arith.mulf %356, %343 : vector<4x8xf32>
    %cst_119 = arith.constant dense<0.000000e+00> : vector<8xf32>
    %358 = vector.multi_reduction <add>, %357, %cst_119 [0] : vector<4x8xf32> to vector<8xf32>
    %359 = vector.shape_cast %358 : vector<8xf32> to vector<1x8xf32>
    %360 = vector.broadcast %359 : vector<1x8xf32> to vector<4x8xf32>
    %361 = arith.subf %356, %360 : vector<4x8xf32>
    %362 = arith.mulf %343, %361 : vector<4x8xf32>
    %cst_120 = arith.constant dense<0.000000e+00> : vector<4x256xf32>
    %363 = tpu.matmul %362, %7, %cst_120 {dimension_numbers = #tpu.dot_dimension_numbers<[1], [0], [0], [1], [0, 0, 1, 1], [], []>} : vector<4x8xf32>, vector<8x256xf32>, vector<4x256xf32> -> vector<4x256xf32>
    %cst_121 = arith.constant dense<0.000000e+00> : vector<4xf32>
    %364 = vector.multi_reduction <add>, %362, %cst_121 [1] : vector<4x8xf32> to vector<4xf32>
    %365 = vector.shape_cast %364 : vector<4xf32> to vector<4x1xf32>
    %cst_122 = arith.constant 0.899999976 : f32
    %366 = vector.broadcast %cst_122 : f32 to vector<4x256xf32>
    %367 = arith.mulf %366, %293 : vector<4x256xf32>
    %cst_123 = arith.constant 1.000000e-01 : f32
    %368 = vector.broadcast %cst_123 : f32 to vector<4x256xf32>
    %369 = arith.mulf %368, %363 : vector<4x256xf32>
    %370 = arith.addf %367, %369 : vector<4x256xf32>
    %cst_124 = arith.constant 9.990000e-01 : f32
    %371 = vector.broadcast %cst_124 : f32 to vector<4x256xf32>
    %372 = arith.mulf %371, %299 : vector<4x256xf32>
    %cst_125 = arith.constant 1.000000e-03 : f32
    %373 = vector.broadcast %cst_125 : f32 to vector<4x256xf32>
    %374 = arith.mulf %373, %363 : vector<4x256xf32>
    %375 = arith.mulf %374, %363 : vector<4x256xf32>
    %376 = arith.addf %372, %375 : vector<4x256xf32>
    %cst_126 = arith.constant 0.899999976 : f32
    %377 = vector.broadcast %cst_126 : f32 to vector<4x1xf32>
    %378 = arith.mulf %377, %304 : vector<4x1xf32>
    %cst_127 = arith.constant 1.000000e-01 : f32
    %379 = vector.broadcast %cst_127 : f32 to vector<4x1xf32>
    %380 = arith.mulf %379, %365 : vector<4x1xf32>
    %381 = arith.addf %378, %380 : vector<4x1xf32>
    %cst_128 = arith.constant 9.990000e-01 : f32
    %382 = vector.broadcast %cst_128 : f32 to vector<4x1xf32>
    %383 = arith.mulf %382, %310 : vector<4x1xf32>
    %cst_129 = arith.constant 1.000000e-03 : f32
    %384 = vector.broadcast %cst_129 : f32 to vector<4x1xf32>
    %385 = arith.mulf %384, %365 : vector<4x1xf32>
    %386 = arith.mulf %385, %365 : vector<4x1xf32>
    %387 = arith.addf %383, %386 : vector<4x1xf32>
    %cst_130 = arith.constant 0.00244194292 : f32
    %388 = vector.broadcast %cst_130 : f32 to vector<4x256xf32>
    %389 = arith.mulf %388, %370 : vector<4x256xf32>
    %cst_131 = arith.constant 200.400406 : f32
    %390 = vector.broadcast %cst_131 : f32 to vector<4x256xf32>
    %391 = arith.mulf %376, %390 : vector<4x256xf32>
    %392 = math.sqrt %391 : vector<4x256xf32>
    %cst_132 = arith.constant 9.99999993E-9 : f32
    %393 = vector.broadcast %cst_132 : f32 to vector<4x256xf32>
    %394 = arith.addf %392, %393 : vector<4x256xf32>
    %395 = tpu.reciprocal %394 {approx = true} : vector<4x256xf32> -> vector<4x256xf32>
    %396 = arith.mulf %389, %395 : vector<4x256xf32>
    %397 = arith.subf %320, %396 : vector<4x256xf32>
    %cst_133 = arith.constant 0.00244194292 : f32
    %398 = vector.broadcast %cst_133 : f32 to vector<4x1xf32>
    %399 = arith.mulf %398, %381 : vector<4x1xf32>
    %cst_134 = arith.constant 200.400406 : f32
    %400 = vector.broadcast %cst_134 : f32 to vector<4x1xf32>
    %401 = arith.mulf %387, %400 : vector<4x1xf32>
    %402 = math.sqrt %401 : vector<4x1xf32>
    %cst_135 = arith.constant 9.99999993E-9 : f32
    %403 = vector.broadcast %cst_135 : f32 to vector<4x1xf32>
    %404 = arith.addf %402, %403 : vector<4x1xf32>
    %405 = tpu.reciprocal %404 {approx = true} : vector<4x1xf32> -> vector<4x1xf32>
    %406 = arith.mulf %399, %405 : vector<4x1xf32>
    %407 = arith.subf %330, %406 : vector<4x1xf32>
    %cst_136 = arith.constant dense<0.000000e+00> : vector<4x8xf32>
    %408 = tpu.matmul %397, %14, %cst_136 {dimension_numbers = #tpu.dot_dimension_numbers<[1], [0], [0], [1], [0, 0, 1, 1], [], []>} : vector<4x256xf32>, vector<256x8xf32>, vector<4x8xf32> -> vector<4x8xf32>
    %409 = vector.broadcast %407 : vector<4x1xf32> to vector<4x8xf32>
    %410 = arith.addf %408, %409 : vector<4x8xf32>
    %cst_137 = arith.constant dense<0xFF800000> : vector<8xf32>
    %411 = vector.multi_reduction <maximumf>, %410, %cst_137 [0] : vector<4x8xf32> to vector<8xf32>
    %412 = vector.shape_cast %411 : vector<8xf32> to vector<1x8xf32>
    %413 = vector.broadcast %412 : vector<1x8xf32> to vector<4x8xf32>
    %414 = arith.subf %410, %413 : vector<4x8xf32>
    %415 = math.exp %414 : vector<4x8xf32>
    %cst_138 = arith.constant dense<0.000000e+00> : vector<8xf32>
    %416 = vector.multi_reduction <add>, %415, %cst_138 [0] : vector<4x8xf32> to vector<8xf32>
    %417 = vector.shape_cast %416 : vector<8xf32> to vector<1x8xf32>
    %418 = tpu.reciprocal %417 {approx = true} : vector<1x8xf32> -> vector<1x8xf32>
    %419 = vector.broadcast %418 : vector<1x8xf32> to vector<4x8xf32>
    %420 = arith.mulf %415, %419 : vector<4x8xf32>
    %cst_139 = arith.constant dense<0xFF800000> : vector<8xf32>
    %421 = vector.multi_reduction <maximumf>, %420, %cst_139 [0] : vector<4x8xf32> to vector<8xf32>
    %422 = vector.shape_cast %421 : vector<8xf32> to vector<1x8xf32>
    %423 = vector.broadcast %422 : vector<1x8xf32> to vector<4x8xf32>
    %424 = arith.subf %420, %423 : vector<4x8xf32>
    %425 = math.exp %424 : vector<4x8xf32>
    %cst_140 = arith.constant dense<0.000000e+00> : vector<8xf32>
    %426 = vector.multi_reduction <add>, %425, %cst_140 [0] : vector<4x8xf32> to vector<8xf32>
    %427 = vector.shape_cast %426 : vector<8xf32> to vector<1x8xf32>
    %428 = tpu.reciprocal %427 : vector<1x8xf32> -> vector<1x8xf32>
    %429 = vector.broadcast %428 : vector<1x8xf32> to vector<4x8xf32>
    %430 = arith.mulf %425, %429 : vector<4x8xf32>
    %431 = arith.subf %430, %16 : vector<4x8xf32>
    %cst_141 = arith.constant 1.250000e-01 : f32
    %432 = vector.broadcast %cst_141 : f32 to vector<4x8xf32>
    %433 = arith.mulf %431, %432 : vector<4x8xf32>
    %434 = arith.mulf %433, %420 : vector<4x8xf32>
    %cst_142 = arith.constant dense<0.000000e+00> : vector<8xf32>
    %435 = vector.multi_reduction <add>, %434, %cst_142 [0] : vector<4x8xf32> to vector<8xf32>
    %436 = vector.shape_cast %435 : vector<8xf32> to vector<1x8xf32>
    %437 = vector.broadcast %436 : vector<1x8xf32> to vector<4x8xf32>
    %438 = arith.subf %433, %437 : vector<4x8xf32>
    %439 = arith.mulf %420, %438 : vector<4x8xf32>
    %cst_143 = arith.constant dense<0.000000e+00> : vector<4x256xf32>
    %440 = tpu.matmul %439, %7, %cst_143 {dimension_numbers = #tpu.dot_dimension_numbers<[1], [0], [0], [1], [0, 0, 1, 1], [], []>} : vector<4x8xf32>, vector<8x256xf32>, vector<4x256xf32> -> vector<4x256xf32>
    %cst_144 = arith.constant dense<0.000000e+00> : vector<4xf32>
    %441 = vector.multi_reduction <add>, %439, %cst_144 [1] : vector<4x8xf32> to vector<4xf32>
    %442 = vector.shape_cast %441 : vector<4xf32> to vector<4x1xf32>
    %cst_145 = arith.constant 0.899999976 : f32
    %443 = vector.broadcast %cst_145 : f32 to vector<4x256xf32>
    %444 = arith.mulf %443, %370 : vector<4x256xf32>
    %cst_146 = arith.constant 1.000000e-01 : f32
    %445 = vector.broadcast %cst_146 : f32 to vector<4x256xf32>
    %446 = arith.mulf %445, %440 : vector<4x256xf32>
    %447 = arith.addf %444, %446 : vector<4x256xf32>
    %cst_147 = arith.constant 9.990000e-01 : f32
    %448 = vector.broadcast %cst_147 : f32 to vector<4x256xf32>
    %449 = arith.mulf %448, %376 : vector<4x256xf32>
    %cst_148 = arith.constant 1.000000e-03 : f32
    %450 = vector.broadcast %cst_148 : f32 to vector<4x256xf32>
    %451 = arith.mulf %450, %440 : vector<4x256xf32>
    %452 = arith.mulf %451, %440 : vector<4x256xf32>
    %453 = arith.addf %449, %452 : vector<4x256xf32>
    %cst_149 = arith.constant 0.899999976 : f32
    %454 = vector.broadcast %cst_149 : f32 to vector<4x1xf32>
    %455 = arith.mulf %454, %381 : vector<4x1xf32>
    %cst_150 = arith.constant 1.000000e-01 : f32
    %456 = vector.broadcast %cst_150 : f32 to vector<4x1xf32>
    %457 = arith.mulf %456, %442 : vector<4x1xf32>
    %458 = arith.addf %455, %457 : vector<4x1xf32>
    %cst_151 = arith.constant 9.990000e-01 : f32
    %459 = vector.broadcast %cst_151 : f32 to vector<4x1xf32>
    %460 = arith.mulf %459, %387 : vector<4x1xf32>
    %cst_152 = arith.constant 1.000000e-03 : f32
    %461 = vector.broadcast %cst_152 : f32 to vector<4x1xf32>
    %462 = arith.mulf %461, %442 : vector<4x1xf32>
    %463 = arith.mulf %462, %442 : vector<4x1xf32>
    %464 = arith.addf %460, %463 : vector<4x1xf32>
    %cst_153 = arith.constant 0.00213420298 : f32
    %465 = vector.broadcast %cst_153 : f32 to vector<4x256xf32>
    %466 = arith.mulf %465, %447 : vector<4x256xf32>
    %cst_154 = arith.constant 167.083817 : f32
    %467 = vector.broadcast %cst_154 : f32 to vector<4x256xf32>
    %468 = arith.mulf %453, %467 : vector<4x256xf32>
    %469 = math.sqrt %468 : vector<4x256xf32>
    %cst_155 = arith.constant 9.99999993E-9 : f32
    %470 = vector.broadcast %cst_155 : f32 to vector<4x256xf32>
    %471 = arith.addf %469, %470 : vector<4x256xf32>
    %472 = tpu.reciprocal %471 {approx = true} : vector<4x256xf32> -> vector<4x256xf32>
    %473 = arith.mulf %466, %472 : vector<4x256xf32>
    %474 = arith.subf %397, %473 : vector<4x256xf32>
    %cst_156 = arith.constant 0.00213420298 : f32
    %475 = vector.broadcast %cst_156 : f32 to vector<4x1xf32>
    %476 = arith.mulf %475, %458 : vector<4x1xf32>
    %cst_157 = arith.constant 167.083817 : f32
    %477 = vector.broadcast %cst_157 : f32 to vector<4x1xf32>
    %478 = arith.mulf %464, %477 : vector<4x1xf32>
    %479 = math.sqrt %478 : vector<4x1xf32>
    %cst_158 = arith.constant 9.99999993E-9 : f32
    %480 = vector.broadcast %cst_158 : f32 to vector<4x1xf32>
    %481 = arith.addf %479, %480 : vector<4x1xf32>
    %482 = tpu.reciprocal %481 {approx = true} : vector<4x1xf32> -> vector<4x1xf32>
    %483 = arith.mulf %476, %482 : vector<4x1xf32>
    %484 = arith.subf %407, %483 : vector<4x1xf32>
    %cst_159 = arith.constant dense<0.000000e+00> : vector<4x8xf32>
    %485 = tpu.matmul %474, %14, %cst_159 {dimension_numbers = #tpu.dot_dimension_numbers<[1], [0], [0], [1], [0, 0, 1, 1], [], []>} : vector<4x256xf32>, vector<256x8xf32>, vector<4x8xf32> -> vector<4x8xf32>
    %486 = vector.broadcast %484 : vector<4x1xf32> to vector<4x8xf32>
    %487 = arith.addf %485, %486 : vector<4x8xf32>
    %cst_160 = arith.constant dense<0xFF800000> : vector<8xf32>
    %488 = vector.multi_reduction <maximumf>, %487, %cst_160 [0] : vector<4x8xf32> to vector<8xf32>
    %489 = vector.shape_cast %488 : vector<8xf32> to vector<1x8xf32>
    %490 = vector.broadcast %489 : vector<1x8xf32> to vector<4x8xf32>
    %491 = arith.subf %487, %490 : vector<4x8xf32>
    %492 = math.exp %491 : vector<4x8xf32>
    %cst_161 = arith.constant dense<0.000000e+00> : vector<8xf32>
    %493 = vector.multi_reduction <add>, %492, %cst_161 [0] : vector<4x8xf32> to vector<8xf32>
    %494 = vector.shape_cast %493 : vector<8xf32> to vector<1x8xf32>
    %495 = tpu.reciprocal %494 {approx = true} : vector<1x8xf32> -> vector<1x8xf32>
    %496 = vector.broadcast %495 : vector<1x8xf32> to vector<4x8xf32>
    %497 = arith.mulf %492, %496 : vector<4x8xf32>
    %cst_162 = arith.constant dense<0xFF800000> : vector<8xf32>
    %498 = vector.multi_reduction <maximumf>, %497, %cst_162 [0] : vector<4x8xf32> to vector<8xf32>
    %499 = vector.shape_cast %498 : vector<8xf32> to vector<1x8xf32>
    %500 = vector.broadcast %499 : vector<1x8xf32> to vector<4x8xf32>
    %501 = arith.subf %497, %500 : vector<4x8xf32>
    %502 = math.exp %501 : vector<4x8xf32>
    %cst_163 = arith.constant dense<0.000000e+00> : vector<8xf32>
    %503 = vector.multi_reduction <add>, %502, %cst_163 [0] : vector<4x8xf32> to vector<8xf32>
    %504 = vector.shape_cast %503 : vector<8xf32> to vector<1x8xf32>
    %505 = tpu.reciprocal %504 : vector<1x8xf32> -> vector<1x8xf32>
    %506 = vector.broadcast %505 : vector<1x8xf32> to vector<4x8xf32>
    %507 = arith.mulf %502, %506 : vector<4x8xf32>
    %508 = arith.subf %507, %16 : vector<4x8xf32>
    %cst_164 = arith.constant 1.250000e-01 : f32
    %509 = vector.broadcast %cst_164 : f32 to vector<4x8xf32>
    %510 = arith.mulf %508, %509 : vector<4x8xf32>
    %511 = arith.mulf %510, %497 : vector<4x8xf32>
    %cst_165 = arith.constant dense<0.000000e+00> : vector<8xf32>
    %512 = vector.multi_reduction <add>, %511, %cst_165 [0] : vector<4x8xf32> to vector<8xf32>
    %513 = vector.shape_cast %512 : vector<8xf32> to vector<1x8xf32>
    %514 = vector.broadcast %513 : vector<1x8xf32> to vector<4x8xf32>
    %515 = arith.subf %510, %514 : vector<4x8xf32>
    %516 = arith.mulf %497, %515 : vector<4x8xf32>
    %cst_166 = arith.constant dense<0.000000e+00> : vector<4x256xf32>
    %517 = tpu.matmul %516, %7, %cst_166 {dimension_numbers = #tpu.dot_dimension_numbers<[1], [0], [0], [1], [0, 0, 1, 1], [], []>} : vector<4x8xf32>, vector<8x256xf32>, vector<4x256xf32> -> vector<4x256xf32>
    %cst_167 = arith.constant dense<0.000000e+00> : vector<4xf32>
    %518 = vector.multi_reduction <add>, %516, %cst_167 [1] : vector<4x8xf32> to vector<4xf32>
    %519 = vector.shape_cast %518 : vector<4xf32> to vector<4x1xf32>
    %cst_168 = arith.constant 0.899999976 : f32
    %520 = vector.broadcast %cst_168 : f32 to vector<4x256xf32>
    %521 = arith.mulf %520, %447 : vector<4x256xf32>
    %cst_169 = arith.constant 1.000000e-01 : f32
    %522 = vector.broadcast %cst_169 : f32 to vector<4x256xf32>
    %523 = arith.mulf %522, %517 : vector<4x256xf32>
    %524 = arith.addf %521, %523 : vector<4x256xf32>
    %cst_170 = arith.constant 9.990000e-01 : f32
    %525 = vector.broadcast %cst_170 : f32 to vector<4x256xf32>
    %526 = arith.mulf %525, %453 : vector<4x256xf32>
    %cst_171 = arith.constant 1.000000e-03 : f32
    %527 = vector.broadcast %cst_171 : f32 to vector<4x256xf32>
    %528 = arith.mulf %527, %517 : vector<4x256xf32>
    %529 = arith.mulf %528, %517 : vector<4x256xf32>
    %530 = arith.addf %526, %529 : vector<4x256xf32>
    %cst_172 = arith.constant 0.899999976 : f32
    %531 = vector.broadcast %cst_172 : f32 to vector<4x1xf32>
    %532 = arith.mulf %531, %458 : vector<4x1xf32>
    %cst_173 = arith.constant 1.000000e-01 : f32
    %533 = vector.broadcast %cst_173 : f32 to vector<4x1xf32>
    %534 = arith.mulf %533, %519 : vector<4x1xf32>
    %535 = arith.addf %532, %534 : vector<4x1xf32>
    %cst_174 = arith.constant 9.990000e-01 : f32
    %536 = vector.broadcast %cst_174 : f32 to vector<4x1xf32>
    %537 = arith.mulf %536, %464 : vector<4x1xf32>
    %cst_175 = arith.constant 1.000000e-03 : f32
    %538 = vector.broadcast %cst_175 : f32 to vector<4x1xf32>
    %539 = arith.mulf %538, %519 : vector<4x1xf32>
    %540 = arith.mulf %539, %519 : vector<4x1xf32>
    %541 = arith.addf %537, %540 : vector<4x1xf32>
    %cst_176 = arith.constant 0.001916799 : f32
    %542 = vector.broadcast %cst_176 : f32 to vector<4x256xf32>
    %543 = arith.mulf %542, %524 : vector<4x256xf32>
    %cst_177 = arith.constant 143.286285 : f32
    %544 = vector.broadcast %cst_177 : f32 to vector<4x256xf32>
    %545 = arith.mulf %530, %544 : vector<4x256xf32>
    %546 = math.sqrt %545 : vector<4x256xf32>
    %cst_178 = arith.constant 9.99999993E-9 : f32
    %547 = vector.broadcast %cst_178 : f32 to vector<4x256xf32>
    %548 = arith.addf %546, %547 : vector<4x256xf32>
    %549 = tpu.reciprocal %548 {approx = true} : vector<4x256xf32> -> vector<4x256xf32>
    %550 = arith.mulf %543, %549 : vector<4x256xf32>
    %551 = arith.subf %474, %550 : vector<4x256xf32>
    %cst_179 = arith.constant 0.001916799 : f32
    %552 = vector.broadcast %cst_179 : f32 to vector<4x1xf32>
    %553 = arith.mulf %552, %535 : vector<4x1xf32>
    %cst_180 = arith.constant 143.286285 : f32
    %554 = vector.broadcast %cst_180 : f32 to vector<4x1xf32>
    %555 = arith.mulf %541, %554 : vector<4x1xf32>
    %556 = math.sqrt %555 : vector<4x1xf32>
    %cst_181 = arith.constant 9.99999993E-9 : f32
    %557 = vector.broadcast %cst_181 : f32 to vector<4x1xf32>
    %558 = arith.addf %556, %557 : vector<4x1xf32>
    %559 = tpu.reciprocal %558 {approx = true} : vector<4x1xf32> -> vector<4x1xf32>
    %560 = arith.mulf %553, %559 : vector<4x1xf32>
    %561 = arith.subf %484, %560 : vector<4x1xf32>
    %cst_182 = arith.constant dense<0.000000e+00> : vector<4x8xf32>
    %562 = tpu.matmul %551, %14, %cst_182 {dimension_numbers = #tpu.dot_dimension_numbers<[1], [0], [0], [1], [0, 0, 1, 1], [], []>} : vector<4x256xf32>, vector<256x8xf32>, vector<4x8xf32> -> vector<4x8xf32>
    %563 = vector.broadcast %561 : vector<4x1xf32> to vector<4x8xf32>
    %564 = arith.addf %562, %563 : vector<4x8xf32>
    %cst_183 = arith.constant dense<0xFF800000> : vector<8xf32>
    %565 = vector.multi_reduction <maximumf>, %564, %cst_183 [0] : vector<4x8xf32> to vector<8xf32>
    %566 = vector.shape_cast %565 : vector<8xf32> to vector<1x8xf32>
    %567 = vector.broadcast %566 : vector<1x8xf32> to vector<4x8xf32>
    %568 = arith.subf %564, %567 : vector<4x8xf32>
    %569 = math.exp %568 : vector<4x8xf32>
    %cst_184 = arith.constant dense<0.000000e+00> : vector<8xf32>
    %570 = vector.multi_reduction <add>, %569, %cst_184 [0] : vector<4x8xf32> to vector<8xf32>
    %571 = vector.shape_cast %570 : vector<8xf32> to vector<1x8xf32>
    %572 = tpu.reciprocal %571 {approx = true} : vector<1x8xf32> -> vector<1x8xf32>
    %573 = vector.broadcast %572 : vector<1x8xf32> to vector<4x8xf32>
    %574 = arith.mulf %569, %573 : vector<4x8xf32>
    %cst_185 = arith.constant dense<0xFF800000> : vector<8xf32>
    %575 = vector.multi_reduction <maximumf>, %574, %cst_185 [0] : vector<4x8xf32> to vector<8xf32>
    %576 = vector.shape_cast %575 : vector<8xf32> to vector<1x8xf32>
    %577 = vector.broadcast %576 : vector<1x8xf32> to vector<4x8xf32>
    %578 = arith.subf %574, %577 : vector<4x8xf32>
    %579 = math.exp %578 : vector<4x8xf32>
    %cst_186 = arith.constant dense<0.000000e+00> : vector<8xf32>
    %580 = vector.multi_reduction <add>, %579, %cst_186 [0] : vector<4x8xf32> to vector<8xf32>
    %581 = vector.shape_cast %580 : vector<8xf32> to vector<1x8xf32>
    %582 = tpu.reciprocal %581 : vector<1x8xf32> -> vector<1x8xf32>
    %583 = vector.broadcast %582 : vector<1x8xf32> to vector<4x8xf32>
    %584 = arith.mulf %579, %583 : vector<4x8xf32>
    %585 = arith.subf %584, %16 : vector<4x8xf32>
    %cst_187 = arith.constant 1.250000e-01 : f32
    %586 = vector.broadcast %cst_187 : f32 to vector<4x8xf32>
    %587 = arith.mulf %585, %586 : vector<4x8xf32>
    %588 = arith.mulf %587, %574 : vector<4x8xf32>
    %cst_188 = arith.constant dense<0.000000e+00> : vector<8xf32>
    %589 = vector.multi_reduction <add>, %588, %cst_188 [0] : vector<4x8xf32> to vector<8xf32>
    %590 = vector.shape_cast %589 : vector<8xf32> to vector<1x8xf32>
    %591 = vector.broadcast %590 : vector<1x8xf32> to vector<4x8xf32>
    %592 = arith.subf %587, %591 : vector<4x8xf32>
    %593 = arith.mulf %574, %592 : vector<4x8xf32>
    %cst_189 = arith.constant dense<0.000000e+00> : vector<4x256xf32>
    %594 = tpu.matmul %593, %7, %cst_189 {dimension_numbers = #tpu.dot_dimension_numbers<[1], [0], [0], [1], [0, 0, 1, 1], [], []>} : vector<4x8xf32>, vector<8x256xf32>, vector<4x256xf32> -> vector<4x256xf32>
    %cst_190 = arith.constant dense<0.000000e+00> : vector<4xf32>
    %595 = vector.multi_reduction <add>, %593, %cst_190 [1] : vector<4x8xf32> to vector<4xf32>
    %596 = vector.shape_cast %595 : vector<4xf32> to vector<4x1xf32>
    %cst_191 = arith.constant 0.899999976 : f32
    %597 = vector.broadcast %cst_191 : f32 to vector<4x256xf32>
    %598 = arith.mulf %597, %524 : vector<4x256xf32>
    %cst_192 = arith.constant 1.000000e-01 : f32
    %599 = vector.broadcast %cst_192 : f32 to vector<4x256xf32>
    %600 = arith.mulf %599, %594 : vector<4x256xf32>
    %601 = arith.addf %598, %600 : vector<4x256xf32>
    %cst_193 = arith.constant 9.990000e-01 : f32
    %602 = vector.broadcast %cst_193 : f32 to vector<4x256xf32>
    %603 = arith.mulf %602, %530 : vector<4x256xf32>
    %cst_194 = arith.constant 1.000000e-03 : f32
    %604 = vector.broadcast %cst_194 : f32 to vector<4x256xf32>
    %605 = arith.mulf %604, %594 : vector<4x256xf32>
    %606 = arith.mulf %605, %594 : vector<4x256xf32>
    %607 = arith.addf %603, %606 : vector<4x256xf32>
    %cst_195 = arith.constant 0.899999976 : f32
    %608 = vector.broadcast %cst_195 : f32 to vector<4x1xf32>
    %609 = arith.mulf %608, %535 : vector<4x1xf32>
    %cst_196 = arith.constant 1.000000e-01 : f32
    %610 = vector.broadcast %cst_196 : f32 to vector<4x1xf32>
    %611 = arith.mulf %610, %596 : vector<4x1xf32>
    %612 = arith.addf %609, %611 : vector<4x1xf32>
    %cst_197 = arith.constant 9.990000e-01 : f32
    %613 = vector.broadcast %cst_197 : f32 to vector<4x1xf32>
    %614 = arith.mulf %613, %541 : vector<4x1xf32>
    %cst_198 = arith.constant 1.000000e-03 : f32
    %615 = vector.broadcast %cst_198 : f32 to vector<4x1xf32>
    %616 = arith.mulf %615, %596 : vector<4x1xf32>
    %617 = arith.mulf %616, %596 : vector<4x1xf32>
    %618 = arith.addf %614, %617 : vector<4x1xf32>
    %cst_199 = arith.constant 0.00175582513 : f32
    %619 = vector.broadcast %cst_199 : f32 to vector<4x256xf32>
    %620 = arith.mulf %619, %601 : vector<4x256xf32>
    %cst_200 = arith.constant 125.438156 : f32
    %621 = vector.broadcast %cst_200 : f32 to vector<4x256xf32>
    %622 = arith.mulf %607, %621 : vector<4x256xf32>
    %623 = math.sqrt %622 : vector<4x256xf32>
    %cst_201 = arith.constant 9.99999993E-9 : f32
    %624 = vector.broadcast %cst_201 : f32 to vector<4x256xf32>
    %625 = arith.addf %623, %624 : vector<4x256xf32>
    %626 = tpu.reciprocal %625 {approx = true} : vector<4x256xf32> -> vector<4x256xf32>
    %627 = arith.mulf %620, %626 : vector<4x256xf32>
    %628 = arith.subf %551, %627 : vector<4x256xf32>
    %cst_202 = arith.constant 0.00175582513 : f32
    %629 = vector.broadcast %cst_202 : f32 to vector<4x1xf32>
    %630 = arith.mulf %629, %612 : vector<4x1xf32>
    %cst_203 = arith.constant 125.438156 : f32
    %631 = vector.broadcast %cst_203 : f32 to vector<4x1xf32>
    %632 = arith.mulf %618, %631 : vector<4x1xf32>
    %633 = math.sqrt %632 : vector<4x1xf32>
    %cst_204 = arith.constant 9.99999993E-9 : f32
    %634 = vector.broadcast %cst_204 : f32 to vector<4x1xf32>
    %635 = arith.addf %633, %634 : vector<4x1xf32>
    %636 = tpu.reciprocal %635 {approx = true} : vector<4x1xf32> -> vector<4x1xf32>
    %637 = arith.mulf %630, %636 : vector<4x1xf32>
    %638 = arith.subf %561, %637 : vector<4x1xf32>
    %cst_205 = arith.constant dense<0.000000e+00> : vector<4x8xf32>
    %639 = tpu.matmul %628, %14, %cst_205 {dimension_numbers = #tpu.dot_dimension_numbers<[1], [0], [0], [1], [0, 0, 1, 1], [], []>} : vector<4x256xf32>, vector<256x8xf32>, vector<4x8xf32> -> vector<4x8xf32>
    %640 = vector.broadcast %638 : vector<4x1xf32> to vector<4x8xf32>
    %641 = arith.addf %639, %640 : vector<4x8xf32>
    %cst_206 = arith.constant dense<0xFF800000> : vector<8xf32>
    %642 = vector.multi_reduction <maximumf>, %641, %cst_206 [0] : vector<4x8xf32> to vector<8xf32>
    %643 = vector.shape_cast %642 : vector<8xf32> to vector<1x8xf32>
    %644 = vector.broadcast %643 : vector<1x8xf32> to vector<4x8xf32>
    %645 = arith.subf %641, %644 : vector<4x8xf32>
    %646 = math.exp %645 : vector<4x8xf32>
    %cst_207 = arith.constant dense<0.000000e+00> : vector<8xf32>
    %647 = vector.multi_reduction <add>, %646, %cst_207 [0] : vector<4x8xf32> to vector<8xf32>
    %648 = vector.shape_cast %647 : vector<8xf32> to vector<1x8xf32>
    %649 = tpu.reciprocal %648 {approx = true} : vector<1x8xf32> -> vector<1x8xf32>
    %650 = vector.broadcast %649 : vector<1x8xf32> to vector<4x8xf32>
    %651 = arith.mulf %646, %650 : vector<4x8xf32>
    %cst_208 = arith.constant dense<0xFF800000> : vector<8xf32>
    %652 = vector.multi_reduction <maximumf>, %651, %cst_208 [0] : vector<4x8xf32> to vector<8xf32>
    %653 = vector.shape_cast %652 : vector<8xf32> to vector<1x8xf32>
    %654 = vector.broadcast %653 : vector<1x8xf32> to vector<4x8xf32>
    %655 = arith.subf %651, %654 : vector<4x8xf32>
    %656 = math.exp %655 : vector<4x8xf32>
    %cst_209 = arith.constant dense<0.000000e+00> : vector<8xf32>
    %657 = vector.multi_reduction <add>, %656, %cst_209 [0] : vector<4x8xf32> to vector<8xf32>
    %658 = vector.shape_cast %657 : vector<8xf32> to vector<1x8xf32>
    %659 = tpu.reciprocal %658 : vector<1x8xf32> -> vector<1x8xf32>
    %660 = vector.broadcast %659 : vector<1x8xf32> to vector<4x8xf32>
    %661 = arith.mulf %656, %660 : vector<4x8xf32>
    %662 = arith.subf %661, %16 : vector<4x8xf32>
    %cst_210 = arith.constant 1.250000e-01 : f32
    %663 = vector.broadcast %cst_210 : f32 to vector<4x8xf32>
    %664 = arith.mulf %662, %663 : vector<4x8xf32>
    %665 = arith.mulf %664, %651 : vector<4x8xf32>
    %cst_211 = arith.constant dense<0.000000e+00> : vector<8xf32>
    %666 = vector.multi_reduction <add>, %665, %cst_211 [0] : vector<4x8xf32> to vector<8xf32>
    %667 = vector.shape_cast %666 : vector<8xf32> to vector<1x8xf32>
    %668 = vector.broadcast %667 : vector<1x8xf32> to vector<4x8xf32>
    %669 = arith.subf %664, %668 : vector<4x8xf32>
    %670 = arith.mulf %651, %669 : vector<4x8xf32>
    %cst_212 = arith.constant dense<0.000000e+00> : vector<4x256xf32>
    %671 = tpu.matmul %670, %7, %cst_212 {dimension_numbers = #tpu.dot_dimension_numbers<[1], [0], [0], [1], [0, 0, 1, 1], [], []>} : vector<4x8xf32>, vector<8x256xf32>, vector<4x256xf32> -> vector<4x256xf32>
    %cst_213 = arith.constant dense<0.000000e+00> : vector<4xf32>
    %672 = vector.multi_reduction <add>, %670, %cst_213 [1] : vector<4x8xf32> to vector<4xf32>
    %673 = vector.shape_cast %672 : vector<4xf32> to vector<4x1xf32>
    %cst_214 = arith.constant 0.899999976 : f32
    %674 = vector.broadcast %cst_214 : f32 to vector<4x256xf32>
    %675 = arith.mulf %674, %601 : vector<4x256xf32>
    %cst_215 = arith.constant 1.000000e-01 : f32
    %676 = vector.broadcast %cst_215 : f32 to vector<4x256xf32>
    %677 = arith.mulf %676, %671 : vector<4x256xf32>
    %678 = arith.addf %675, %677 : vector<4x256xf32>
    %cst_216 = arith.constant 9.990000e-01 : f32
    %679 = vector.broadcast %cst_216 : f32 to vector<4x256xf32>
    %680 = arith.mulf %679, %607 : vector<4x256xf32>
    %cst_217 = arith.constant 1.000000e-03 : f32
    %681 = vector.broadcast %cst_217 : f32 to vector<4x256xf32>
    %682 = arith.mulf %681, %671 : vector<4x256xf32>
    %683 = arith.mulf %682, %671 : vector<4x256xf32>
    %684 = arith.addf %680, %683 : vector<4x256xf32>
    %cst_218 = arith.constant 0.899999976 : f32
    %685 = vector.broadcast %cst_218 : f32 to vector<4x1xf32>
    %686 = arith.mulf %685, %612 : vector<4x1xf32>
    %cst_219 = arith.constant 1.000000e-01 : f32
    %687 = vector.broadcast %cst_219 : f32 to vector<4x1xf32>
    %688 = arith.mulf %687, %673 : vector<4x1xf32>
    %689 = arith.addf %686, %688 : vector<4x1xf32>
    %cst_220 = arith.constant 9.990000e-01 : f32
    %690 = vector.broadcast %cst_220 : f32 to vector<4x1xf32>
    %691 = arith.mulf %690, %618 : vector<4x1xf32>
    %cst_221 = arith.constant 1.000000e-03 : f32
    %692 = vector.broadcast %cst_221 : f32 to vector<4x1xf32>
    %693 = arith.mulf %692, %673 : vector<4x1xf32>
    %694 = arith.mulf %693, %673 : vector<4x1xf32>
    %695 = arith.addf %691, %694 : vector<4x1xf32>
    %cst_222 = arith.constant 0.00163244118 : f32
    %696 = vector.broadcast %cst_222 : f32 to vector<4x256xf32>
    %697 = arith.mulf %696, %678 : vector<4x256xf32>
    %cst_223 = arith.constant 111.556297 : f32
    %698 = vector.broadcast %cst_223 : f32 to vector<4x256xf32>
    %699 = arith.mulf %684, %698 : vector<4x256xf32>
    %700 = math.sqrt %699 : vector<4x256xf32>
    %cst_224 = arith.constant 9.99999993E-9 : f32
    %701 = vector.broadcast %cst_224 : f32 to vector<4x256xf32>
    %702 = arith.addf %700, %701 : vector<4x256xf32>
    %703 = tpu.reciprocal %702 {approx = true} : vector<4x256xf32> -> vector<4x256xf32>
    %704 = arith.mulf %697, %703 : vector<4x256xf32>
    %705 = arith.subf %628, %704 : vector<4x256xf32>
    %cst_225 = arith.constant 0.00163244118 : f32
    %706 = vector.broadcast %cst_225 : f32 to vector<4x1xf32>
    %707 = arith.mulf %706, %689 : vector<4x1xf32>
    %cst_226 = arith.constant 111.556297 : f32
    %708 = vector.broadcast %cst_226 : f32 to vector<4x1xf32>
    %709 = arith.mulf %695, %708 : vector<4x1xf32>
    %710 = math.sqrt %709 : vector<4x1xf32>
    %cst_227 = arith.constant 9.99999993E-9 : f32
    %711 = vector.broadcast %cst_227 : f32 to vector<4x1xf32>
    %712 = arith.addf %710, %711 : vector<4x1xf32>
    %713 = tpu.reciprocal %712 {approx = true} : vector<4x1xf32> -> vector<4x1xf32>
    %714 = arith.mulf %707, %713 : vector<4x1xf32>
    %715 = arith.subf %638, %714 : vector<4x1xf32>
    %cst_228 = arith.constant dense<0.000000e+00> : vector<4x8xf32>
    %716 = tpu.matmul %705, %14, %cst_228 {dimension_numbers = #tpu.dot_dimension_numbers<[1], [0], [0], [1], [0, 0, 1, 1], [], []>} : vector<4x256xf32>, vector<256x8xf32>, vector<4x8xf32> -> vector<4x8xf32>
    %717 = vector.broadcast %715 : vector<4x1xf32> to vector<4x8xf32>
    %718 = arith.addf %716, %717 : vector<4x8xf32>
    %cst_229 = arith.constant dense<0xFF800000> : vector<8xf32>
    %719 = vector.multi_reduction <maximumf>, %718, %cst_229 [0] : vector<4x8xf32> to vector<8xf32>
    %720 = vector.shape_cast %719 : vector<8xf32> to vector<1x8xf32>
    %721 = vector.broadcast %720 : vector<1x8xf32> to vector<4x8xf32>
    %722 = arith.subf %718, %721 : vector<4x8xf32>
    %723 = math.exp %722 : vector<4x8xf32>
    %cst_230 = arith.constant dense<0.000000e+00> : vector<8xf32>
    %724 = vector.multi_reduction <add>, %723, %cst_230 [0] : vector<4x8xf32> to vector<8xf32>
    %725 = vector.shape_cast %724 : vector<8xf32> to vector<1x8xf32>
    %726 = tpu.reciprocal %725 {approx = true} : vector<1x8xf32> -> vector<1x8xf32>
    %727 = vector.broadcast %726 : vector<1x8xf32> to vector<4x8xf32>
    %728 = arith.mulf %723, %727 : vector<4x8xf32>
    %cst_231 = arith.constant dense<0xFF800000> : vector<8xf32>
    %729 = vector.multi_reduction <maximumf>, %728, %cst_231 [0] : vector<4x8xf32> to vector<8xf32>
    %730 = vector.shape_cast %729 : vector<8xf32> to vector<1x8xf32>
    %731 = vector.broadcast %730 : vector<1x8xf32> to vector<4x8xf32>
    %732 = arith.subf %728, %731 : vector<4x8xf32>
    %733 = math.exp %732 : vector<4x8xf32>
    %cst_232 = arith.constant dense<0.000000e+00> : vector<8xf32>
    %734 = vector.multi_reduction <add>, %733, %cst_232 [0] : vector<4x8xf32> to vector<8xf32>
    %735 = vector.shape_cast %734 : vector<8xf32> to vector<1x8xf32>
    %736 = tpu.reciprocal %735 : vector<1x8xf32> -> vector<1x8xf32>
    %737 = vector.broadcast %736 : vector<1x8xf32> to vector<4x8xf32>
    %738 = arith.mulf %733, %737 : vector<4x8xf32>
    %739 = arith.subf %738, %16 : vector<4x8xf32>
    %cst_233 = arith.constant 1.250000e-01 : f32
    %740 = vector.broadcast %cst_233 : f32 to vector<4x8xf32>
    %741 = arith.mulf %739, %740 : vector<4x8xf32>
    %742 = arith.mulf %741, %728 : vector<4x8xf32>
    %cst_234 = arith.constant dense<0.000000e+00> : vector<8xf32>
    %743 = vector.multi_reduction <add>, %742, %cst_234 [0] : vector<4x8xf32> to vector<8xf32>
    %744 = vector.shape_cast %743 : vector<8xf32> to vector<1x8xf32>
    %745 = vector.broadcast %744 : vector<1x8xf32> to vector<4x8xf32>
    %746 = arith.subf %741, %745 : vector<4x8xf32>
    %747 = arith.mulf %728, %746 : vector<4x8xf32>
    %cst_235 = arith.constant dense<0.000000e+00> : vector<4x256xf32>
    %748 = tpu.matmul %747, %7, %cst_235 {dimension_numbers = #tpu.dot_dimension_numbers<[1], [0], [0], [1], [0, 0, 1, 1], [], []>} : vector<4x8xf32>, vector<8x256xf32>, vector<4x256xf32> -> vector<4x256xf32>
    %cst_236 = arith.constant dense<0.000000e+00> : vector<4xf32>
    %749 = vector.multi_reduction <add>, %747, %cst_236 [1] : vector<4x8xf32> to vector<4xf32>
    %750 = vector.shape_cast %749 : vector<4xf32> to vector<4x1xf32>
    %cst_237 = arith.constant 0.899999976 : f32
    %751 = vector.broadcast %cst_237 : f32 to vector<4x256xf32>
    %752 = arith.mulf %751, %678 : vector<4x256xf32>
    %cst_238 = arith.constant 1.000000e-01 : f32
    %753 = vector.broadcast %cst_238 : f32 to vector<4x256xf32>
    %754 = arith.mulf %753, %748 : vector<4x256xf32>
    %755 = arith.addf %752, %754 : vector<4x256xf32>
    %cst_239 = arith.constant 9.990000e-01 : f32
    %756 = vector.broadcast %cst_239 : f32 to vector<4x256xf32>
    %757 = arith.mulf %756, %684 : vector<4x256xf32>
    %cst_240 = arith.constant 1.000000e-03 : f32
    %758 = vector.broadcast %cst_240 : f32 to vector<4x256xf32>
    %759 = arith.mulf %758, %748 : vector<4x256xf32>
    %760 = arith.mulf %759, %748 : vector<4x256xf32>
    %761 = arith.addf %757, %760 : vector<4x256xf32>
    %cst_241 = arith.constant 0.899999976 : f32
    %762 = vector.broadcast %cst_241 : f32 to vector<4x1xf32>
    %763 = arith.mulf %762, %689 : vector<4x1xf32>
    %cst_242 = arith.constant 1.000000e-01 : f32
    %764 = vector.broadcast %cst_242 : f32 to vector<4x1xf32>
    %765 = arith.mulf %764, %750 : vector<4x1xf32>
    %766 = arith.addf %763, %765 : vector<4x1xf32>
    %cst_243 = arith.constant 9.990000e-01 : f32
    %767 = vector.broadcast %cst_243 : f32 to vector<4x1xf32>
    %768 = arith.mulf %767, %695 : vector<4x1xf32>
    %cst_244 = arith.constant 1.000000e-03 : f32
    %769 = vector.broadcast %cst_244 : f32 to vector<4x1xf32>
    %770 = arith.mulf %769, %750 : vector<4x1xf32>
    %771 = arith.mulf %770, %750 : vector<4x1xf32>
    %772 = arith.addf %768, %771 : vector<4x1xf32>
    %cst_245 = arith.constant 1.535340e-03 : f32
    %773 = vector.broadcast %cst_245 : f32 to vector<4x256xf32>
    %774 = arith.mulf %773, %755 : vector<4x256xf32>
    %cst_246 = arith.constant 100.450829 : f32
    %775 = vector.broadcast %cst_246 : f32 to vector<4x256xf32>
    %776 = arith.mulf %761, %775 : vector<4x256xf32>
    %777 = math.sqrt %776 : vector<4x256xf32>
    %cst_247 = arith.constant 9.99999993E-9 : f32
    %778 = vector.broadcast %cst_247 : f32 to vector<4x256xf32>
    %779 = arith.addf %777, %778 : vector<4x256xf32>
    %780 = tpu.reciprocal %779 {approx = true} : vector<4x256xf32> -> vector<4x256xf32>
    %781 = arith.mulf %774, %780 : vector<4x256xf32>
    %782 = arith.subf %705, %781 : vector<4x256xf32>
    %cst_248 = arith.constant 1.535340e-03 : f32
    %783 = vector.broadcast %cst_248 : f32 to vector<4x1xf32>
    %784 = arith.mulf %783, %766 : vector<4x1xf32>
    %cst_249 = arith.constant 100.450829 : f32
    %785 = vector.broadcast %cst_249 : f32 to vector<4x1xf32>
    %786 = arith.mulf %772, %785 : vector<4x1xf32>
    %787 = math.sqrt %786 : vector<4x1xf32>
    %cst_250 = arith.constant 9.99999993E-9 : f32
    %788 = vector.broadcast %cst_250 : f32 to vector<4x1xf32>
    %789 = arith.addf %787, %788 : vector<4x1xf32>
    %790 = tpu.reciprocal %789 {approx = true} : vector<4x1xf32> -> vector<4x1xf32>
    %791 = arith.mulf %784, %790 : vector<4x1xf32>
    %792 = arith.subf %715, %791 : vector<4x1xf32>
    %cst_251 = arith.constant dense<0.000000e+00> : vector<4x8xf32>
    %793 = tpu.matmul %782, %14, %cst_251 {dimension_numbers = #tpu.dot_dimension_numbers<[1], [0], [0], [1], [0, 0, 1, 1], [], []>} : vector<4x256xf32>, vector<256x8xf32>, vector<4x8xf32> -> vector<4x8xf32>
    %794 = vector.broadcast %792 : vector<4x1xf32> to vector<4x8xf32>
    %795 = arith.addf %793, %794 : vector<4x8xf32>
    %cst_252 = arith.constant dense<0xFF800000> : vector<8xf32>
    %796 = vector.multi_reduction <maximumf>, %795, %cst_252 [0] : vector<4x8xf32> to vector<8xf32>
    %797 = vector.shape_cast %796 : vector<8xf32> to vector<1x8xf32>
    %798 = vector.broadcast %797 : vector<1x8xf32> to vector<4x8xf32>
    %799 = arith.subf %795, %798 : vector<4x8xf32>
    %800 = math.exp %799 : vector<4x8xf32>
    %cst_253 = arith.constant dense<0.000000e+00> : vector<8xf32>
    %801 = vector.multi_reduction <add>, %800, %cst_253 [0] : vector<4x8xf32> to vector<8xf32>
    %802 = vector.shape_cast %801 : vector<8xf32> to vector<1x8xf32>
    %803 = tpu.reciprocal %802 {approx = true} : vector<1x8xf32> -> vector<1x8xf32>
    %804 = vector.broadcast %803 : vector<1x8xf32> to vector<4x8xf32>
    %805 = arith.mulf %800, %804 : vector<4x8xf32>
    %cst_254 = arith.constant dense<0xFF800000> : vector<8xf32>
    %806 = vector.multi_reduction <maximumf>, %805, %cst_254 [0] : vector<4x8xf32> to vector<8xf32>
    %807 = vector.shape_cast %806 : vector<8xf32> to vector<1x8xf32>
    %808 = vector.broadcast %807 : vector<1x8xf32> to vector<4x8xf32>
    %809 = arith.subf %805, %808 : vector<4x8xf32>
    %810 = math.exp %809 : vector<4x8xf32>
    %cst_255 = arith.constant dense<0.000000e+00> : vector<8xf32>
    %811 = vector.multi_reduction <add>, %810, %cst_255 [0] : vector<4x8xf32> to vector<8xf32>
    %812 = vector.shape_cast %811 : vector<8xf32> to vector<1x8xf32>
    %813 = tpu.reciprocal %812 : vector<1x8xf32> -> vector<1x8xf32>
    %814 = vector.broadcast %813 : vector<1x8xf32> to vector<4x8xf32>
    %815 = arith.mulf %810, %814 : vector<4x8xf32>
    %816 = arith.subf %815, %16 : vector<4x8xf32>
    %cst_256 = arith.constant 1.250000e-01 : f32
    %817 = vector.broadcast %cst_256 : f32 to vector<4x8xf32>
    %818 = arith.mulf %816, %817 : vector<4x8xf32>
    %819 = arith.mulf %818, %805 : vector<4x8xf32>
    %cst_257 = arith.constant dense<0.000000e+00> : vector<8xf32>
    %820 = vector.multi_reduction <add>, %819, %cst_257 [0] : vector<4x8xf32> to vector<8xf32>
    %821 = vector.shape_cast %820 : vector<8xf32> to vector<1x8xf32>
    %822 = vector.broadcast %821 : vector<1x8xf32> to vector<4x8xf32>
    %823 = arith.subf %818, %822 : vector<4x8xf32>
    %824 = arith.mulf %805, %823 : vector<4x8xf32>
    %cst_258 = arith.constant dense<0.000000e+00> : vector<4x256xf32>
    %825 = tpu.matmul %824, %7, %cst_258 {dimension_numbers = #tpu.dot_dimension_numbers<[1], [0], [0], [1], [0, 0, 1, 1], [], []>} : vector<4x8xf32>, vector<8x256xf32>, vector<4x256xf32> -> vector<4x256xf32>
    %cst_259 = arith.constant dense<0.000000e+00> : vector<4xf32>
    %826 = vector.multi_reduction <add>, %824, %cst_259 [1] : vector<4x8xf32> to vector<4xf32>
    %827 = vector.shape_cast %826 : vector<4xf32> to vector<4x1xf32>
    %cst_260 = arith.constant 0.899999976 : f32
    %828 = vector.broadcast %cst_260 : f32 to vector<4x256xf32>
    %829 = arith.mulf %828, %755 : vector<4x256xf32>
    %cst_261 = arith.constant 1.000000e-01 : f32
    %830 = vector.broadcast %cst_261 : f32 to vector<4x256xf32>
    %831 = arith.mulf %830, %825 : vector<4x256xf32>
    %832 = arith.addf %829, %831 : vector<4x256xf32>
    %cst_262 = arith.constant 9.990000e-01 : f32
    %833 = vector.broadcast %cst_262 : f32 to vector<4x256xf32>
    %834 = arith.mulf %833, %761 : vector<4x256xf32>
    %cst_263 = arith.constant 1.000000e-03 : f32
    %835 = vector.broadcast %cst_263 : f32 to vector<4x256xf32>
    %836 = arith.mulf %835, %825 : vector<4x256xf32>
    %837 = arith.mulf %836, %825 : vector<4x256xf32>
    %838 = arith.addf %834, %837 : vector<4x256xf32>
    %cst_264 = arith.constant 0.899999976 : f32
    %839 = vector.broadcast %cst_264 : f32 to vector<4x1xf32>
    %840 = arith.mulf %839, %766 : vector<4x1xf32>
    %cst_265 = arith.constant 1.000000e-01 : f32
    %841 = vector.broadcast %cst_265 : f32 to vector<4x1xf32>
    %842 = arith.mulf %841, %827 : vector<4x1xf32>
    %843 = arith.addf %840, %842 : vector<4x1xf32>
    %cst_266 = arith.constant 9.990000e-01 : f32
    %844 = vector.broadcast %cst_266 : f32 to vector<4x1xf32>
    %845 = arith.mulf %844, %772 : vector<4x1xf32>
    %cst_267 = arith.constant 1.000000e-03 : f32
    %846 = vector.broadcast %cst_267 : f32 to vector<4x1xf32>
    %847 = arith.mulf %846, %827 : vector<4x1xf32>
    %848 = arith.mulf %847, %827 : vector<4x1xf32>
    %849 = arith.addf %845, %848 : vector<4x1xf32>
    %cst_268 = arith.constant 0.00145732355 : f32
    %850 = vector.broadcast %cst_268 : f32 to vector<4x256xf32>
    %851 = arith.mulf %850, %832 : vector<4x256xf32>
    %cst_269 = arith.constant 91.3645477 : f32
    %852 = vector.broadcast %cst_269 : f32 to vector<4x256xf32>
    %853 = arith.mulf %838, %852 : vector<4x256xf32>
    %854 = math.sqrt %853 : vector<4x256xf32>
    %cst_270 = arith.constant 9.99999993E-9 : f32
    %855 = vector.broadcast %cst_270 : f32 to vector<4x256xf32>
    %856 = arith.addf %854, %855 : vector<4x256xf32>
    %857 = tpu.reciprocal %856 {approx = true} : vector<4x256xf32> -> vector<4x256xf32>
    %858 = arith.mulf %851, %857 : vector<4x256xf32>
    %859 = arith.subf %782, %858 : vector<4x256xf32>
    %cst_271 = arith.constant 0.00145732355 : f32
    %860 = vector.broadcast %cst_271 : f32 to vector<4x1xf32>
    %861 = arith.mulf %860, %843 : vector<4x1xf32>
    %cst_272 = arith.constant 91.3645477 : f32
    %862 = vector.broadcast %cst_272 : f32 to vector<4x1xf32>
    %863 = arith.mulf %849, %862 : vector<4x1xf32>
    %864 = math.sqrt %863 : vector<4x1xf32>
    %cst_273 = arith.constant 9.99999993E-9 : f32
    %865 = vector.broadcast %cst_273 : f32 to vector<4x1xf32>
    %866 = arith.addf %864, %865 : vector<4x1xf32>
    %867 = tpu.reciprocal %866 {approx = true} : vector<4x1xf32> -> vector<4x1xf32>
    %868 = arith.mulf %861, %867 : vector<4x1xf32>
    %869 = arith.subf %792, %868 : vector<4x1xf32>
    %870 = tpu.transpose %13, [1, 0] : vector<8x256xf32> -> vector<256x8xf32>
    %cst_274 = arith.constant dense<0.000000e+00> : vector<4x8xf32>
    %871 = tpu.matmul %859, %870, %cst_274 {dimension_numbers = #tpu.dot_dimension_numbers<[1], [0], [0], [1], [0, 0, 1, 1], [], []>} : vector<4x256xf32>, vector<256x8xf32>, vector<4x8xf32> -> vector<4x8xf32>
    %872 = vector.broadcast %869 : vector<4x1xf32> to vector<4x8xf32>
    %873 = arith.addf %871, %872 : vector<4x8xf32>
    %cst_275 = arith.constant dense<0xFF800000> : vector<8xf32>
    %874 = vector.multi_reduction <maximumf>, %873, %cst_275 [0] : vector<4x8xf32> to vector<8xf32>
    %875 = vector.shape_cast %874 : vector<8xf32> to vector<1x8xf32>
    %876 = vector.broadcast %875 : vector<1x8xf32> to vector<4x8xf32>
    %877 = arith.subf %873, %876 : vector<4x8xf32>
    %878 = math.exp %877 : vector<4x8xf32>
    %cst_276 = arith.constant dense<0.000000e+00> : vector<8xf32>
    %879 = vector.multi_reduction <add>, %878, %cst_276 [0] : vector<4x8xf32> to vector<8xf32>
    %880 = vector.shape_cast %879 : vector<8xf32> to vector<1x8xf32>
    %881 = tpu.reciprocal %880 : vector<1x8xf32> -> vector<1x8xf32>
    %882 = vector.broadcast %881 : vector<1x8xf32> to vector<4x8xf32>
    %883 = arith.mulf %878, %882 : vector<4x8xf32>
    %cst_277 = arith.constant 0.000000e+00 : f32
    %884 = vector.broadcast %cst_277 : f32 to vector<4x128xf32>
    %c0_278 = arith.constant 0 : index
    %c0_279 = arith.constant 0 : index
    %c0_280 = arith.constant 0 : index
    %885 = vector.load %arg8[%c0_278, %c0_279, %c0_280] : memref<1x4x128xf32, #tpu.memory_space<vmem>>, vector<1x4x128xf32>
    %886 = vector.shape_cast %885 : vector<1x4x128xf32> to vector<4x128xf32>
    %887 = vector.shape_cast %884 : vector<4x128xf32> to vector<1x4x128xf32>
    tpu.vector_store %arg8[%c0_278, %c0_279, %c0_280], %887 {strides = array<i32>} : memref<1x4x128xf32, #tpu.memory_space<vmem>>, vector<1x4x128xf32>,
    %c0_281 = arith.constant 0 : index
    %c0_282 = arith.constant 0 : index
    %c0_283 = arith.constant 0 : index
    %888 = vector.load %arg8[%c0_281, %c0_282, %c0_283] : memref<1x4x128xf32, #tpu.memory_space<vmem>>, vector<1x4x8xf32>
    %889 = vector.shape_cast %888 : vector<1x4x8xf32> to vector<4x8xf32>
    %890 = vector.shape_cast %883 : vector<4x8xf32> to vector<1x4x8xf32>
    tpu.vector_store %arg8[%c0_281, %c0_282, %c0_283], %890 {strides = array<i32>} : memref<1x4x128xf32, #tpu.memory_space<vmem>>, vector<1x4x8xf32>,
    %c0_284 = arith.constant 0 : index
    %c0_285 = arith.constant 0 : index
    %c0_286 = arith.constant 0 : index
    %891 = vector.load %arg9[%c0_284, %c0_285, %c0_286] : memref<1x4x384xf32, #tpu.memory_space<vmem>>, vector<1x4x256xf32>
    %892 = vector.shape_cast %891 : vector<1x4x256xf32> to vector<4x256xf32>
    %893 = vector.shape_cast %859 : vector<4x256xf32> to vector<1x4x256xf32>
    tpu.vector_store %arg9[%c0_284, %c0_285, %c0_286], %893 {strides = array<i32>} : memref<1x4x384xf32, #tpu.memory_space<vmem>>, vector<1x4x256xf32>,
    %894 = vector.shape_cast %869 : vector<4x1xf32> to vector<4x1xf32>
    %895 = vector.broadcast %894 : vector<4x1xf32> to vector<4x128xf32>
    %c0_287 = arith.constant 0 : index
    %c0_288 = arith.constant 0 : index
    %c256 = arith.constant 256 : index
    %896 = vector.load %arg9[%c0_287, %c0_288, %c256] : memref<1x4x384xf32, #tpu.memory_space<vmem>>, vector<1x4x128xf32>
    %897 = vector.shape_cast %896 : vector<1x4x128xf32> to vector<4x128xf32>
    %898 = vector.shape_cast %895 : vector<4x128xf32> to vector<1x4x128xf32>
    tpu.vector_store %arg9[%c0_287, %c0_288, %c256], %898 {strides = array<i32>} : memref<1x4x384xf32, #tpu.memory_space<vmem>>, vector<1x4x128xf32>,
    return
  }
  func.func @transform_0(%arg0: i32) -> (i32, i32, i32) {
    %c0_i32 = arith.constant 0 : i32
    %c0_i32_0 = arith.constant 0 : i32
    %c0_i32_1 = arith.constant 0 : i32
    return %arg0, %c0_i32, %c0_i32_0 : i32, i32, i32
  }
  func.func @transform_1(%arg0: i32) -> (i32, i32, i32) {
    %c0_i32 = arith.constant 0 : i32
    %c0_i32_0 = arith.constant 0 : i32
    %c0_i32_1 = arith.constant 0 : i32
    return %arg0, %c0_i32, %c0_i32_0 : i32, i32, i32
  }
  func.func @transform_2(%arg0: i32) -> (i32, i32, i32) {
    %c0_i32 = arith.constant 0 : i32
    %c0_i32_0 = arith.constant 0 : i32
    %c0_i32_1 = arith.constant 0 : i32
    return %arg0, %c0_i32, %c0_i32_0 : i32, i32, i32
  }
  func.func @transform_3(%arg0: i32) -> (i32, i32) {
    %c0_i32 = arith.constant 0 : i32
    %c0_i32_0 = arith.constant 0 : i32
    %c0_i32_1 = arith.constant 0 : i32
    return %c0_i32, %c0_i32_0 : i32, i32
  }
  func.func @transform_4(%arg0: i32) -> (i32, i32) {
    %c0_i32 = arith.constant 0 : i32
    %c0_i32_0 = arith.constant 0 : i32
    %c0_i32_1 = arith.constant 0 : i32
    return %c0_i32, %c0_i32_0 : i32, i32
  }
  func.func @transform_5(%arg0: i32) -> (i32, i32) {
    %c0_i32 = arith.constant 0 : i32
    %c0_i32_0 = arith.constant 0 : i32
    %c0_i32_1 = arith.constant 0 : i32
    return %c0_i32, %c0_i32_0 : i32, i32
  }
  func.func @transform_6(%arg0: i32) -> (i32, i32) {
    %c0_i32 = arith.constant 0 : i32
    %c0_i32_0 = arith.constant 0 : i32
    %c0_i32_1 = arith.constant 0 : i32
    return %c0_i32, %c0_i32_0 : i32, i32
  }
  func.func @transform_7(%arg0: i32) -> (i32, i32, i32) {
    %c0_i32 = arith.constant 0 : i32
    %c0_i32_0 = arith.constant 0 : i32
    %c0_i32_1 = arith.constant 0 : i32
    return %arg0, %c0_i32, %c0_i32_0 : i32, i32, i32
  }
  func.func @transform_8(%arg0: i32) -> (i32, i32, i32) {
    %c0_i32 = arith.constant 0 : i32
    %c0_i32_0 = arith.constant 0 : i32
    %c0_i32_1 = arith.constant 0 : i32
    return %arg0, %c0_i32, %c0_i32_0 : i32, i32, i32
  }
}

</mosaic_0001>

<llo_original>
// kernel: _meta_forward_batched.1
$region0: #{_meta_forward_batched.1}
  #allocation0 [shape = 'u32[]', space=smem, size = 0x4, offset = 0x4, fixed_abs, tag = 'smem constant byte address 0x4 - core index']
  #allocation1 [shape = 'u32[72,128]{1,0:T(1,128)}', space=vmem, size = 0x9000, scoped, tag = 'internal scratch']
  %s0 = inlined_call_operand.vmem [shape: f32[1,8,1024], index: 0, kind: input, shape index: {}]
  %s1 = inlined_call_operand.vmem [shape: f32[1,8,1024], index: 1, kind: input, shape index: {}]
  %s2 = inlined_call_operand.vmem [shape: f32[1,4,8], index: 2, kind: input, shape index: {}]
  %s3 = inlined_call_operand.hbm [shape: bf16[1024,256], index: 3, kind: input, shape index: {}]
  %s4 = inlined_call_operand.vmem [shape: f32[1,256], index: 4, kind: input, shape index: {}]
  %s5 = inlined_call_operand.vmem [shape: f32[4,256], index: 5, kind: input, shape index: {}]
  %s6 = inlined_call_operand.vmem [shape: f32[4,1], index: 6, kind: input, shape index: {}]
  %s7 = inlined_call_operand.vmem [shape: f32[1,4,128], index: 7, kind: output, shape index: {0}]
  %s8 = inlined_call_operand.vmem [shape: f32[1,4,384], index: 8, kind: output, shape index: {1}]
  %9 = xla_tuple %s7, %s8
  %s10 = sld [smem:[#allocation0]]
  $region50: #{_meta_forward_batched.1} parent=0
    _
  %s12 = ssub.s32 1, %s10
  %s13 = scalar_select 0, %s12, %s10
  $region1: #{_meta_forward_batched.1} parent=0
    #allocation2 [shape = 'u8[524288]{0}', space=vmem, size = 0x80000, scoped, tag = 'input window, operand 3, single buffered']
    #allocation3 [shape = 's32[1]{0}', space=sflag, size = 0x4, scoped, tag = 'scoped memory for _meta_forward_batched.1']
    %14 = vsyncpa [#allocation3], 0
    // Predicated region
    $region2: #{_meta_forward_batched.1} parent=1 // pred_check
      _
    $region3: #{_meta_forward_batched.1} parent=1 // pred_check_branch
      %16 = sbr.rel (0) target = $region5
    $region4: #{_meta_forward_batched.1} parent=1 // pred_region
      _
    $region5: #{_meta_forward_batched.1} parent=1 // pred_fallthru
      _
    // Predicated region
    $region6: #{_meta_forward_batched.1} parent=1 // pred_check
      _
    $region7: #{_meta_forward_batched.1} parent=1 // pred_check_branch
      %18 = sbr.rel (0) target = $region9
    $region8: #{_meta_forward_batched.1} parent=1 // pred_region
      _
    $region9: #{_meta_forward_batched.1} parent=1 // pred_fallthru
      _
    // Predicated region
    $region10: #{_meta_forward_batched.1} parent=1 // pred_check
      _
    $region11: #{_meta_forward_batched.1} parent=1 // pred_check_branch
      %20 = sbr.rel (0) target = $region13
    $region12: #{_meta_forward_batched.1} parent=1 // pred_region
      _
    $region13: #{_meta_forward_batched.1} parent=1 // pred_fallthru
      _
    // Predicated region
    $region14: #{_meta_forward_batched.1} parent=1 // pred_check
      _
    $region15: #{_meta_forward_batched.1} parent=1 // pred_check_branch
      %22 = sbr.rel (0) target = $region17
    $region16: #{_meta_forward_batched.1} parent=1 // pred_region
      %24 = vsyncadd [#allocation3], 0
      %s25 = sshll.u32 %s3, 4
      %s26 = int_to_ptr.hbm [resolvable:$true] %s25
      %s27 = sshll.u32 [#allocation2], 4
      %s28 = int_to_ptr.vmem [resolvable:$true] %s27
      %33 = dma.hbm_to_vmem [thread:$0]  %s26, 16384, %s28, [#allocation3], 128, 128, 8
    $region17: #{_meta_forward_batched.1} parent=1 // pred_fallthru
      _
    // Predicated region
    $region18: #{_meta_forward_batched.1} parent=1 // pred_check
      _
    $region19: #{_meta_forward_batched.1} parent=1 // pred_check_branch
      %35 = sbr.rel (0) target = $region21
    $region20: #{_meta_forward_batched.1} parent=1 // pred_region
      _
    $region21: #{_meta_forward_batched.1} parent=1 // pred_fallthru
      _
    // Predicated region
    $region22: #{_meta_forward_batched.1} parent=1 // pred_check
      _
    $region23: #{_meta_forward_batched.1} parent=1 // pred_check_branch
      %37 = sbr.rel (0) target = $region25
    $region24: #{_meta_forward_batched.1} parent=1 // pred_region
      _
    $region25: #{_meta_forward_batched.1} parent=1 // pred_fallthru
      _
    // Predicated region
    $region26: #{_meta_forward_batched.1} parent=1 // pred_check
      _
    $region27: #{_meta_forward_batched.1} parent=1 // pred_check_branch
      %39 = sbr.rel (0) target = $region29
    $region28: #{_meta_forward_batched.1} parent=1 // pred_region
      _
    $region29: #{_meta_forward_batched.1} parent=1 // pred_fallthru
      _
    // Predicated region
    $region30: #{_meta_forward_batched.1} parent=1 // pred_check
      _
    $region31: #{_meta_forward_batched.1} parent=1 // pred_check_branch
      %41 = sbr.rel (0) target = $region33
    $region32: #{_meta_forward_batched.1} parent=1 // pred_region
      %43 = dma.done [#allocation3], 16384
    $region33: #{_meta_forward_batched.1} parent=1 // pred_fallthru
      _
    %v44 = vld [vmem:[#allocation2] sm:$0xff]
    %v45 = vld [vmem:[#allocation2 + $0x8] sm:$0xff]
    %v46 = vld [vmem:[#allocation2 + $0x10] sm:$0xff]
    %v47 = vld [vmem:[#allocation2 + $0x18] sm:$0xff]
    %v48 = vld [vmem:[#allocation2 + $0x20] sm:$0xff]
    %v49 = vld [vmem:[#allocation2 + $0x28] sm:$0xff]
    %v50 = vld [vmem:[#allocation2 + $0x30] sm:$0xff]
    %v51 = vld [vmem:[#allocation2 + $0x38] sm:$0xff]
    %v52 = vld [vmem:[#allocation2 + $0x40] sm:$0xff]
    %v53 = vld [vmem:[#allocation2 + $0x48] sm:$0xff]
    %v54 = vld [vmem:[#allocation2 + $0x50] sm:$0xff]
    %v55 = vld [vmem:[#allocation2 + $0x58] sm:$0xff]
    %v56 = vld [vmem:[#allocation2 + $0x60] sm:$0xff]
    %v57 = vld [vmem:[#allocation2 + $0x68] sm:$0xff]
    %v58 = vld [vmem:[#allocation2 + $0x70] sm:$0xff]
    %v59 = vld [vmem:[#allocation2 + $0x78] sm:$0xff]
    %v60 = vld [vmem:[#allocation2 + $0x80] sm:$0xff]
    %v61 = vld [vmem:[#allocation2 + $0x88] sm:$0xff]
    %v62 = vld [vmem:[#allocation2 + $0x90] sm:$0xff]
    %v63 = vld [vmem:[#allocation2 + $0x98] sm:$0xff]
    %v64 = vld [vmem:[#allocation2 + $0xa0] sm:$0xff]
    %v65 = vld [vmem:[#allocation2 + $0xa8] sm:$0xff]
    %v66 = vld [vmem:[#allocation2 + $0xb0] sm:$0xff]
    %v67 = vld [vmem:[#allocation2 + $0xb8] sm:$0xff]
    %v68 = vld [vmem:[#allocation2 + $0xc0] sm:$0xff]
    %v69 = vld [vmem:[#allocation2 + $0xc8] sm:$0xff]
    %v70 = vld [vmem:[#allocation2 + $0xd0] sm:$0xff]
    %v71 = vld [vmem:[#allocation2 + $0xd8] sm:$0xff]
    %v72 = vld [vmem:[#allocation2 + $0xe0] sm:$0xff]
    %v73 = vld [vmem:[#allocation2 + $0xe8] sm:$0xff]
    %v74 = vld [vmem:[#allocation2 + $0xf0] sm:$0xff]
    %v75 = vld [vmem:[#allocation2 + $0xf8] sm:$0xff]
    %v76 = vld [vmem:[#allocation2 + $0x100] sm:$0xff]
    %v77 = vld [vmem:[#allocation2 + $0x108] sm:$0xff]
    %v78 = vld [vmem:[#allocation2 + $0x110] sm:$0xff]
    %v79 = vld [vmem:[#allocation2 + $0x118] sm:$0xff]
    %v80 = vld [vmem:[#allocation2 + $0x120] sm:$0xff]
    %v81 = vld [vmem:[#allocation2 + $0x128] sm:$0xff]
    %v82 = vld [vmem:[#allocation2 + $0x130] sm:$0xff]
    %v83 = vld [vmem:[#allocation2 + $0x138] sm:$0xff]
    %v84 = vld [vmem:[#allocation2 + $0x140] sm:$0xff]
    %v85 = vld [vmem:[#allocation2 + $0x148] sm:$0xff]
    %v86 = vld [vmem:[#allocation2 + $0x150] sm:$0xff]
    %v87 = vld [vmem:[#allocation2 + $0x158] sm:$0xff]
    %v88 = vld [vmem:[#allocation2 + $0x160] sm:$0xff]
    %v89 = vld [vmem:[#allocation2 + $0x168] sm:$0xff]
    %v90 = vld [vmem:[#allocation2 + $0x170] sm:$0xff]
    %v91 = vld [vmem:[#allocation2 + $0x178] sm:$0xff]
    %v92 = vld [vmem:[#allocation2 + $0x180] sm:$0xff]
    %v93 = vld [vmem:[#allocation2 + $0x188] sm:$0xff]
    %v94 = vld [vmem:[#allocation2 + $0x190] sm:$0xff]
    %v95 = vld [vmem:[#allocation2 + $0x198] sm:$0xff]
    %v96 = vld [vmem:[#allocation2 + $0x1a0] sm:$0xff]
    %v97 = vld [vmem:[#allocation2 + $0x1a8] sm:$0xff]
    %v98 = vld [vmem:[#allocation2 + $0x1b0] sm:$0xff]
    %v99 = vld [vmem:[#allocation2 + $0x1b8] sm:$0xff]
    %v100 = vld [vmem:[#allocation2 + $0x1c0] sm:$0xff]
    %v101 = vld [vmem:[#allocation2 + $0x1c8] sm:$0xff]
    %v102 = vld [vmem:[#allocation2 + $0x1d0] sm:$0xff]
    %v103 = vld [vmem:[#allocation2 + $0x1d8] sm:$0xff]
    %v104 = vld [vmem:[#allocation2 + $0x1e0] sm:$0xff]
    %v105 = vld [vmem:[#allocation2 + $0x1e8] sm:$0xff]
    %v106 = vld [vmem:[#allocation2 + $0x1f0] sm:$0xff]
    %v107 = vld [vmem:[#allocation2 + $0x1f8] sm:$0xff]
    %v108 = vld [vmem:[#allocation2 + $0x200] sm:$0xff]
    %v109 = vld [vmem:[#allocation2 + $0x208] sm:$0xff]
    %v110 = vld [vmem:[#allocation2 + $0x210] sm:$0xff]
    %v111 = vld [vmem:[#allocation2 + $0x218] sm:$0xff]
    %v112 = vld [vmem:[#allocation2 + $0x220] sm:$0xff]
    %v113 = vld [vmem:[#allocation2 + $0x228] sm:$0xff]
    %v114 = vld [vmem:[#allocation2 + $0x230] sm:$0xff]
    %v115 = vld [vmem:[#allocation2 + $0x238] sm:$0xff]
    %v116 = vld [vmem:[#allocation2 + $0x240] sm:$0xff]
    %v117 = vld [vmem:[#allocation2 + $0x248] sm:$0xff]
    %v118 = vld [vmem:[#allocation2 + $0x250] sm:$0xff]
    %v119 = vld [vmem:[#allocation2 + $0x258] sm:$0xff]
    %v120 = vld [vmem:[#allocation2 + $0x260] sm:$0xff]
    %v121 = vld [vmem:[#allocation2 + $0x268] sm:$0xff]
    %v122 = vld [vmem:[#allocation2 + $0x270] sm:$0xff]
    %v123 = vld [vmem:[#allocation2 + $0x278] sm:$0xff]
    %v124 = vld [vmem:[#allocation2 + $0x280] sm:$0xff]
    %v125 = vld [vmem:[#allocation2 + $0x288] sm:$0xff]
    %v126 = vld [vmem:[#allocation2 + $0x290] sm:$0xff]
    %v127 = vld [vmem:[#allocation2 + $0x298] sm:$0xff]
    %v128 = vld [vmem:[#allocation2 + $0x2a0] sm:$0xff]
    %v129 = vld [vmem:[#allocation2 + $0x2a8] sm:$0xff]
    %v130 = vld [vmem:[#allocation2 + $0x2b0] sm:$0xff]
    %v131 = vld [vmem:[#allocation2 + $0x2b8] sm:$0xff]
    %v132 = vld [vmem:[#allocation2 + $0x2c0] sm:$0xff]
    %v133 = vld [vmem:[#allocation2 + $0x2c8] sm:$0xff]
    %v134 = vld [vmem:[#allocation2 + $0x2d0] sm:$0xff]
    %v135 = vld [vmem:[#allocation2 + $0x2d8] sm:$0xff]
    %v136 = vld [vmem:[#allocation2 + $0x2e0] sm:$0xff]
    %v137 = vld [vmem:[#allocation2 + $0x2e8] sm:$0xff]
    %v138 = vld [vmem:[#allocation2 + $0x2f0] sm:$0xff]
    %v139 = vld [vmem:[#allocation2 + $0x2f8] sm:$0xff]
    %v140 = vld [vmem:[#allocation2 + $0x300] sm:$0xff]
    %v141 = vld [vmem:[#allocation2 + $0x308] sm:$0xff]
    %v142 = vld [vmem:[#allocation2 + $0x310] sm:$0xff]
    %v143 = vld [vmem:[#allocation2 + $0x318] sm:$0xff]
    %v144 = vld [vmem:[#allocation2 + $0x320] sm:$0xff]
    %v145 = vld [vmem:[#allocation2 + $0x328] sm:$0xff]
    %v146 = vld [vmem:[#allocation2 + $0x330] sm:$0xff]
    %v147 = vld [vmem:[#allocation2 + $0x338] sm:$0xff]
    %v148 = vld [vmem:[#allocation2 + $0x340] sm:$0xff]
    %v149 = vld [vmem:[#allocation2 + $0x348] sm:$0xff]
    %v150 = vld [vmem:[#allocation2 + $0x350] sm:$0xff]
    %v151 = vld [vmem:[#allocation2 + $0x358] sm:$0xff]
    %v152 = vld [vmem:[#allocation2 + $0x360] sm:$0xff]
    %v153 = vld [vmem:[#allocation2 + $0x368] sm:$0xff]
    %v154 = vld [vmem:[#allocation2 + $0x370] sm:$0xff]
    %v155 = vld [vmem:[#allocation2 + $0x378] sm:$0xff]
    %v156 = vld [vmem:[#allocation2 + $0x380] sm:$0xff]
    %v157 = vld [vmem:[#allocation2 + $0x388] sm:$0xff]
    %v158 = vld [vmem:[#allocation2 + $0x390] sm:$0xff]
    %v159 = vld [vmem:[#allocation2 + $0x398] sm:$0xff]
    %v160 = vld [vmem:[#allocation2 + $0x3a0] sm:$0xff]
    %v161 = vld [vmem:[#allocation2 + $0x3a8] sm:$0xff]
    %v162 = vld [vmem:[#allocation2 + $0x3b0] sm:$0xff]
    %v163 = vld [vmem:[#allocation2 + $0x3b8] sm:$0xff]
    %v164 = vld [vmem:[#allocation2 + $0x3c0] sm:$0xff]
    %v165 = vld [vmem:[#allocation2 + $0x3c8] sm:$0xff]
    %v166 = vld [vmem:[#allocation2 + $0x3d0] sm:$0xff]
    %v167 = vld [vmem:[#allocation2 + $0x3d8] sm:$0xff]
    %v168 = vld [vmem:[#allocation2 + $0x3e0] sm:$0xff]
    %v169 = vld [vmem:[#allocation2 + $0x3e8] sm:$0xff]
    %v170 = vld [vmem:[#allocation2 + $0x3f0] sm:$0xff]
    %v171 = vld [vmem:[#allocation2 + $0x3f8] sm:$0xff]
    %v172 = vld [vmem:[%s4] sm:$0x3]
    %v173 = vld [vmem:[%s0] sm:$0xff]
    %v174 = vld [vmem:[%s0 + $0x8] sm:$0xff]
    %v175 = vld [vmem:[%s0 + $0x10] sm:$0xff]
    %v176 = vld [vmem:[%s0 + $0x18] sm:$0xff]
    %v177 = vld [vmem:[%s0 + $0x20] sm:$0xff]
    %v178 = vld [vmem:[%s0 + $0x28] sm:$0xff]
    %v179 = vld [vmem:[%s0 + $0x30] sm:$0xff]
    %v180 = vld [vmem:[%s0 + $0x38] sm:$0xff]
    %v181 = vpack.c.bf16 %v173, %v173
    %v182 = vpack.c.bf16 %v174, %v174
    %v183 = vpack.c.bf16 %v175, %v175
    %v184 = vpack.c.bf16 %v176, %v176
    %v185 = vpack.c.bf16 %v177, %v177
    %v186 = vpack.c.bf16 %v178, %v178
    %v187 = vpack.c.bf16 %v179, %v179
    %v188 = vpack.c.bf16 %v180, %v180
    %v190 = vperm.slane %v172, 0
    %v191 = vperm.slane %v172, 1
    %v322 = vunpack.c.l.b16 %v44
    %v323 = vunpack.c.h.b16 %v44
    %v324 = vunpack.c.l.b16 %v45
    %v325 = vunpack.c.h.b16 %v45
    %v326 = vunpack.c.l.b16 %v46
    %v327 = vunpack.c.h.b16 %v46
    %v328 = vunpack.c.l.b16 %v47
    %v329 = vunpack.c.h.b16 %v47
    %v330 = vunpack.c.l.b16 %v48
    %v331 = vunpack.c.h.b16 %v48
    %v332 = vunpack.c.l.b16 %v49
    %v333 = vunpack.c.h.b16 %v49
    %v334 = vunpack.c.l.b16 %v50
    %v335 = vunpack.c.h.b16 %v50
    %v336 = vunpack.c.l.b16 %v51
    %v337 = vunpack.c.h.b16 %v51
    %v338 = vunpack.c.l.b16 %v52
    %v339 = vunpack.c.h.b16 %v52
    %v340 = vunpack.c.l.b16 %v53
    %v341 = vunpack.c.h.b16 %v53
    %v342 = vunpack.c.l.b16 %v54
    %v343 = vunpack.c.h.b16 %v54
    %v344 = vunpack.c.l.b16 %v55
    %v345 = vunpack.c.h.b16 %v55
    %v346 = vunpack.c.l.b16 %v56
    %v347 = vunpack.c.h.b16 %v56
    %v348 = vunpack.c.l.b16 %v57
    %v349 = vunpack.c.h.b16 %v57
    %v350 = vunpack.c.l.b16 %v58
    %v351 = vunpack.c.h.b16 %v58
    %v352 = vunpack.c.l.b16 %v59
    %v353 = vunpack.c.h.b16 %v59
    %v354 = vunpack.c.l.b16 %v60
    %v355 = vunpack.c.h.b16 %v60
    %v356 = vunpack.c.l.b16 %v61
    %v357 = vunpack.c.h.b16 %v61
    %v358 = vunpack.c.l.b16 %v62
    %v359 = vunpack.c.h.b16 %v62
    %v360 = vunpack.c.l.b16 %v63
    %v361 = vunpack.c.h.b16 %v63
    %v362 = vunpack.c.l.b16 %v64
    %v363 = vunpack.c.h.b16 %v64
    %v364 = vunpack.c.l.b16 %v65
    %v365 = vunpack.c.h.b16 %v65
    %v366 = vunpack.c.l.b16 %v66
    %v367 = vunpack.c.h.b16 %v66
    %v368 = vunpack.c.l.b16 %v67
    %v369 = vunpack.c.h.b16 %v67
    %v370 = vunpack.c.l.b16 %v68
    %v371 = vunpack.c.h.b16 %v68
    %v372 = vunpack.c.l.b16 %v69
    %v373 = vunpack.c.h.b16 %v69
    %v374 = vunpack.c.l.b16 %v70
    %v375 = vunpack.c.h.b16 %v70
    %v376 = vunpack.c.l.b16 %v71
    %v377 = vunpack.c.h.b16 %v71
    %v378 = vunpack.c.l.b16 %v72
    %v379 = vunpack.c.h.b16 %v72
    %v380 = vunpack.c.l.b16 %v73
    %v381 = vunpack.c.h.b16 %v73
    %v382 = vunpack.c.l.b16 %v74
    %v383 = vunpack.c.h.b16 %v74
    %v384 = vunpack.c.l.b16 %v75
    %v385 = vunpack.c.h.b16 %v75
    %v386 = vunpack.c.l.b16 %v76
    %v387 = vunpack.c.h.b16 %v76
    %v388 = vunpack.c.l.b16 %v77
    %v389 = vunpack.c.h.b16 %v77
    %v390 = vunpack.c.l.b16 %v78
    %v391 = vunpack.c.h.b16 %v78
    %v392 = vunpack.c.l.b16 %v79
    %v393 = vunpack.c.h.b16 %v79
    %v394 = vunpack.c.l.b16 %v80
    %v395 = vunpack.c.h.b16 %v80
    %v396 = vunpack.c.l.b16 %v81
    %v397 = vunpack.c.h.b16 %v81
    %v398 = vunpack.c.l.b16 %v82
    %v399 = vunpack.c.h.b16 %v82
    %v400 = vunpack.c.l.b16 %v83
    %v401 = vunpack.c.h.b16 %v83
    %v402 = vunpack.c.l.b16 %v84
    %v403 = vunpack.c.h.b16 %v84
    %v404 = vunpack.c.l.b16 %v85
    %v405 = vunpack.c.h.b16 %v85
    %v406 = vunpack.c.l.b16 %v86
    %v407 = vunpack.c.h.b16 %v86
    %v408 = vunpack.c.l.b16 %v87
    %v409 = vunpack.c.h.b16 %v87
    %v410 = vunpack.c.l.b16 %v88
    %v411 = vunpack.c.h.b16 %v88
    %v412 = vunpack.c.l.b16 %v89
    %v413 = vunpack.c.h.b16 %v89
    %v414 = vunpack.c.l.b16 %v90
    %v415 = vunpack.c.h.b16 %v90
    %v416 = vunpack.c.l.b16 %v91
    %v417 = vunpack.c.h.b16 %v91
    %v418 = vunpack.c.l.b16 %v92
    %v419 = vunpack.c.h.b16 %v92
    %v420 = vunpack.c.l.b16 %v93
    %v421 = vunpack.c.h.b16 %v93
    %v422 = vunpack.c.l.b16 %v94
    %v423 = vunpack.c.h.b16 %v94
    %v424 = vunpack.c.l.b16 %v95
    %v425 = vunpack.c.h.b16 %v95
    %v426 = vunpack.c.l.b16 %v96
    %v427 = vunpack.c.h.b16 %v96
    %v428 = vunpack.c.l.b16 %v97
    %v429 = vunpack.c.h.b16 %v97
    %v430 = vunpack.c.l.b16 %v98
    %v431 = vunpack.c.h.b16 %v98
    %v432 = vunpack.c.l.b16 %v99
    %v433 = vunpack.c.h.b16 %v99
    %v434 = vunpack.c.l.b16 %v100
    %v435 = vunpack.c.h.b16 %v100
    %v436 = vunpack.c.l.b16 %v101
    %v437 = vunpack.c.h.b16 %v101
    %v438 = vunpack.c.l.b16 %v102
    %v439 = vunpack.c.h.b16 %v102
    %v440 = vunpack.c.l.b16 %v103
    %v441 = vunpack.c.h.b16 %v103
    %v442 = vunpack.c.l.b16 %v104
    %v443 = vunpack.c.h.b16 %v104
    %v444 = vunpack.c.l.b16 %v105
    %v445 = vunpack.c.h.b16 %v105
    %v446 = vunpack.c.l.b16 %v106
    %v447 = vunpack.c.h.b16 %v106
    %v448 = vunpack.c.l.b16 %v107
    %v449 = vunpack.c.h.b16 %v107
    %v450 = vunpack.c.l.b16 %v108
    %v451 = vunpack.c.h.b16 %v108
    %v452 = vunpack.c.l.b16 %v109
    %v453 = vunpack.c.h.b16 %v109
    %v454 = vunpack.c.l.b16 %v110
    %v455 = vunpack.c.h.b16 %v110
    %v456 = vunpack.c.l.b16 %v111
    %v457 = vunpack.c.h.b16 %v111
    %v458 = vunpack.c.l.b16 %v112
    %v459 = vunpack.c.h.b16 %v112
    %v460 = vunpack.c.l.b16 %v113
    %v461 = vunpack.c.h.b16 %v113
    %v462 = vunpack.c.l.b16 %v114
    %v463 = vunpack.c.h.b16 %v114
    %v464 = vunpack.c.l.b16 %v115
    %v465 = vunpack.c.h.b16 %v115
    %v466 = vunpack.c.l.b16 %v116
    %v467 = vunpack.c.h.b16 %v116
    %v468 = vunpack.c.l.b16 %v117
    %v469 = vunpack.c.h.b16 %v117
    %v470 = vunpack.c.l.b16 %v118
    %v471 = vunpack.c.h.b16 %v118
    %v472 = vunpack.c.l.b16 %v119
    %v473 = vunpack.c.h.b16 %v119
    %v474 = vunpack.c.l.b16 %v120
    %v475 = vunpack.c.h.b16 %v120
    %v476 = vunpack.c.l.b16 %v121
    %v477 = vunpack.c.h.b16 %v121
    %v478 = vunpack.c.l.b16 %v122
    %v479 = vunpack.c.h.b16 %v122
    %v480 = vunpack.c.l.b16 %v123
    %v481 = vunpack.c.h.b16 %v123
    %v482 = vunpack.c.l.b16 %v124
    %v483 = vunpack.c.h.b16 %v124
    %v484 = vunpack.c.l.b16 %v125
    %v485 = vunpack.c.h.b16 %v125
    %v486 = vunpack.c.l.b16 %v126
    %v487 = vunpack.c.h.b16 %v126
    %v488 = vunpack.c.l.b16 %v127
    %v489 = vunpack.c.h.b16 %v127
    %v490 = vunpack.c.l.b16 %v128
    %v491 = vunpack.c.h.b16 %v128
    %v492 = vunpack.c.l.b16 %v129
    %v493 = vunpack.c.h.b16 %v129
    %v494 = vunpack.c.l.b16 %v130
    %v495 = vunpack.c.h.b16 %v130
    %v496 = vunpack.c.l.b16 %v131
    %v497 = vunpack.c.h.b16 %v131
    %v498 = vunpack.c.l.b16 %v132
    %v499 = vunpack.c.h.b16 %v132
    %v500 = vunpack.c.l.b16 %v133
    %v501 = vunpack.c.h.b16 %v133
    %v502 = vunpack.c.l.b16 %v134
    %v503 = vunpack.c.h.b16 %v134
    %v504 = vunpack.c.l.b16 %v135
    %v505 = vunpack.c.h.b16 %v135
    %v506 = vunpack.c.l.b16 %v136
    %v507 = vunpack.c.h.b16 %v136
    %v508 = vunpack.c.l.b16 %v137
    %v509 = vunpack.c.h.b16 %v137
    %v510 = vunpack.c.l.b16 %v138
    %v511 = vunpack.c.h.b16 %v138
    %v512 = vunpack.c.l.b16 %v139
    %v513 = vunpack.c.h.b16 %v139
    %v514 = vunpack.c.l.b16 %v140
    %v515 = vunpack.c.h.b16 %v140
    %v516 = vunpack.c.l.b16 %v141
    %v517 = vunpack.c.h.b16 %v141
    %v518 = vunpack.c.l.b16 %v142
    %v519 = vunpack.c.h.b16 %v142
    %v520 = vunpack.c.l.b16 %v143
    %v521 = vunpack.c.h.b16 %v143
    %v522 = vunpack.c.l.b16 %v144
    %v523 = vunpack.c.h.b16 %v144
    %v524 = vunpack.c.l.b16 %v145
    %v525 = vunpack.c.h.b16 %v145
    %v526 = vunpack.c.l.b16 %v146
    %v527 = vunpack.c.h.b16 %v146
    %v528 = vunpack.c.l.b16 %v147
    %v529 = vunpack.c.h.b16 %v147
    %v530 = vunpack.c.l.b16 %v148
    %v531 = vunpack.c.h.b16 %v148
    %v532 = vunpack.c.l.b16 %v149
    %v533 = vunpack.c.h.b16 %v149
    %v534 = vunpack.c.l.b16 %v150
    %v535 = vunpack.c.h.b16 %v150
    %v536 = vunpack.c.l.b16 %v151
    %v537 = vunpack.c.h.b16 %v151
    %v538 = vunpack.c.l.b16 %v152
    %v539 = vunpack.c.h.b16 %v152
    %v540 = vunpack.c.l.b16 %v153
    %v541 = vunpack.c.h.b16 %v153
    %v542 = vunpack.c.l.b16 %v154
    %v543 = vunpack.c.h.b16 %v154
    %v544 = vunpack.c.l.b16 %v155
    %v545 = vunpack.c.h.b16 %v155
    %v546 = vunpack.c.l.b16 %v156
    %v547 = vunpack.c.h.b16 %v156
    %v548 = vunpack.c.l.b16 %v157
    %v549 = vunpack.c.h.b16 %v157
    %v550 = vunpack.c.l.b16 %v158
    %v551 = vunpack.c.h.b16 %v158
    %v552 = vunpack.c.l.b16 %v159
    %v553 = vunpack.c.h.b16 %v159
    %v554 = vunpack.c.l.b16 %v160
    %v555 = vunpack.c.h.b16 %v160
    %v556 = vunpack.c.l.b16 %v161
    %v557 = vunpack.c.h.b16 %v161
    %v558 = vunpack.c.l.b16 %v162
    %v559 = vunpack.c.h.b16 %v162
    %v560 = vunpack.c.l.b16 %v163
    %v561 = vunpack.c.h.b16 %v163
    %v562 = vunpack.c.l.b16 %v164
    %v563 = vunpack.c.h.b16 %v164
    %v564 = vunpack.c.l.b16 %v165
    %v565 = vunpack.c.h.b16 %v165
    %v566 = vunpack.c.l.b16 %v166
    %v567 = vunpack.c.h.b16 %v166
    %v568 = vunpack.c.l.b16 %v167
    %v569 = vunpack.c.h.b16 %v167
    %v570 = vunpack.c.l.b16 %v168
    %v571 = vunpack.c.h.b16 %v168
    %v572 = vunpack.c.l.b16 %v169
    %v573 = vunpack.c.h.b16 %v169
    %v574 = vunpack.c.l.b16 %v170
    %v575 = vunpack.c.h.b16 %v170
    %v576 = vunpack.c.l.b16 %v171
    %v577 = vunpack.c.h.b16 %v171
    %v578 = vpack.c.b16 %v324, %v322
    %v579 = vpack.c.b16 %v325, %v323
    %v580 = vpack.c.b16 %v328, %v326
    %v581 = vpack.c.b16 %v329, %v327
    %v582 = vpack.c.b16 %v332, %v330
    %v583 = vpack.c.b16 %v333, %v331
    %v584 = vpack.c.b16 %v336, %v334
    %v585 = vpack.c.b16 %v337, %v335
    %v586 = vpack.c.b16 %v340, %v338
    %v587 = vpack.c.b16 %v341, %v339
    %v588 = vpack.c.b16 %v344, %v342
    %v589 = vpack.c.b16 %v345, %v343
    %v590 = vpack.c.b16 %v348, %v346
    %v591 = vpack.c.b16 %v349, %v347
    %v592 = vpack.c.b16 %v352, %v350
    %v593 = vpack.c.b16 %v353, %v351
    %v594 = vpack.c.b16 %v356, %v354
    %v595 = vpack.c.b16 %v357, %v355
    %v596 = vpack.c.b16 %v360, %v358
    %v597 = vpack.c.b16 %v361, %v359
    %v598 = vpack.c.b16 %v364, %v362
    %v599 = vpack.c.b16 %v365, %v363
    %v600 = vpack.c.b16 %v368, %v366
    %v601 = vpack.c.b16 %v369, %v367
    %v602 = vpack.c.b16 %v372, %v370
    %v603 = vpack.c.b16 %v373, %v371
    %v604 = vpack.c.b16 %v376, %v374
    %v605 = vpack.c.b16 %v377, %v375
    %v606 = vpack.c.b16 %v380, %v378
    %v607 = vpack.c.b16 %v381, %v379
    %v608 = vpack.c.b16 %v384, %v382
    %v609 = vpack.c.b16 %v385, %v383
    %v610 = vpack.c.b16 %v388, %v386
    %v611 = vpack.c.b16 %v389, %v387
    %v612 = vpack.c.b16 %v392, %v390
    %v613 = vpack.c.b16 %v393, %v391
    %v614 = vpack.c.b16 %v396, %v394
    %v615 = vpack.c.b16 %v397, %v395
    %v616 = vpack.c.b16 %v400, %v398
    %v617 = vpack.c.b16 %v401, %v399
    %v618 = vpack.c.b16 %v404, %v402
    %v619 = vpack.c.b16 %v405, %v403
    %v620 = vpack.c.b16 %v408, %v406
    %v621 = vpack.c.b16 %v409, %v407
    %v622 = vpack.c.b16 %v412, %v410
    %v623 = vpack.c.b16 %v413, %v411
    %v624 = vpack.c.b16 %v416, %v414
    %v625 = vpack.c.b16 %v417, %v415
    %v626 = vpack.c.b16 %v420, %v418
    %v627 = vpack.c.b16 %v421, %v419
    %v628 = vpack.c.b16 %v424, %v422
    %v629 = vpack.c.b16 %v425, %v423
    %v630 = vpack.c.b16 %v428, %v426
    %v631 = vpack.c.b16 %v429, %v427
    %v632 = vpack.c.b16 %v432, %v430
    %v633 = vpack.c.b16 %v433, %v431
    %v634 = vpack.c.b16 %v436, %v434
    %v635 = vpack.c.b16 %v437, %v435
    %v636 = vpack.c.b16 %v440, %v438
    %v637 = vpack.c.b16 %v441, %v439
    %v638 = vpack.c.b16 %v444, %v442
    %v639 = vpack.c.b16 %v445, %v443
    %v640 = vpack.c.b16 %v448, %v446
    %v641 = vpack.c.b16 %v449, %v447
    %v642 = vpack.c.b16 %v452, %v450
    %v643 = vpack.c.b16 %v453, %v451
    %v644 = vpack.c.b16 %v456, %v454
    %v645 = vpack.c.b16 %v457, %v455
    %v646 = vpack.c.b16 %v460, %v458
    %v647 = vpack.c.b16 %v461, %v459
    %v648 = vpack.c.b16 %v464, %v462
    %v649 = vpack.c.b16 %v465, %v463
    %v650 = vpack.c.b16 %v468, %v466
    %v651 = vpack.c.b16 %v469, %v467
    %v652 = vpack.c.b16 %v472, %v470
    %v653 = vpack.c.b16 %v473, %v471
    %v654 = vpack.c.b16 %v476, %v474
    %v655 = vpack.c.b16 %v477, %v475
    %v656 = vpack.c.b16 %v480, %v478
    %v657 = vpack.c.b16 %v481, %v479
    %v658 = vpack.c.b16 %v484, %v482
    %v659 = vpack.c.b16 %v485, %v483
    %v660 = vpack.c.b16 %v488, %v486
    %v661 = vpack.c.b16 %v489, %v487
    %v662 = vpack.c.b16 %v492, %v490
    %v663 = vpack.c.b16 %v493, %v491
    %v664 = vpack.c.b16 %v496, %v494
    %v665 = vpack.c.b16 %v497, %v495
    %v666 = vpack.c.b16 %v500, %v498
    %v667 = vpack.c.b16 %v501, %v499
    %v668 = vpack.c.b16 %v504, %v502
    %v669 = vpack.c.b16 %v505, %v503
    %v670 = vpack.c.b16 %v508, %v506
    %v671 = vpack.c.b16 %v509, %v507
    %v672 = vpack.c.b16 %v512, %v510
    %v673 = vpack.c.b16 %v513, %v511
    %v674 = vpack.c.b16 %v516, %v514
    %v675 = vpack.c.b16 %v517, %v515
    %v676 = vpack.c.b16 %v520, %v518
    %v677 = vpack.c.b16 %v521, %v519
    %v678 = vpack.c.b16 %v524, %v522
    %v679 = vpack.c.b16 %v525, %v523
    %v680 = vpack.c.b16 %v528, %v526
    %v681 = vpack.c.b16 %v529, %v527
    %v682 = vpack.c.b16 %v532, %v530
    %v683 = vpack.c.b16 %v533, %v531
    %v684 = vpack.c.b16 %v536, %v534
    %v685 = vpack.c.b16 %v537, %v535
    %v686 = vpack.c.b16 %v540, %v538
    %v687 = vpack.c.b16 %v541, %v539
    %v688 = vpack.c.b16 %v544, %v542
    %v689 = vpack.c.b16 %v545, %v543
    %v690 = vpack.c.b16 %v548, %v546
    %v691 = vpack.c.b16 %v549, %v547
    %v692 = vpack.c.b16 %v552, %v550
    %v693 = vpack.c.b16 %v553, %v551
    %v694 = vpack.c.b16 %v556, %v554
    %v695 = vpack.c.b16 %v557, %v555
    %v696 = vpack.c.b16 %v560, %v558
    %v697 = vpack.c.b16 %v561, %v559
    %v698 = vpack.c.b16 %v564, %v562
    %v699 = vpack.c.b16 %v565, %v563
    %v700 = vpack.c.b16 %v568, %v566
    %v701 = vpack.c.b16 %v569, %v567
    %v702 = vpack.c.b16 %v572, %v570
    %v703 = vpack.c.b16 %v573, %v571
    %v704 = vpack.c.b16 %v576, %v574
    %v705 = vpack.c.b16 %v577, %v575
    %834 = vmatpush.bf16.msra.mxu0 %v592
    %835 = vmatpush.bf16.msra.mxu0 %v590
    %836 = vmatpush.bf16.msra.mxu0 %v588
    %837 = vmatpush.bf16.msra.mxu0 %v586
    %838 = vmatpush.bf16.msra.mxu0 %v584
    %839 = vmatpush.bf16.msra.mxu0 %v582
    %840 = vmatpush.bf16.msra.mxu0 %v580
    %841 = vmatpush.bf16.msra.mxu0 %v578
    %842 = vmatmul.bf16.gmra.mxu0 %v181
    %v843 = vpop.f32.mrf.mxu0
    %v844 = vadd.f32 %v190, %v843
    %v845 = vpop.f32.mrf.mxu0
    %846 = vdwg.mxu0
    %847 = vmatpush.bf16.msra.mxu0 %v608
    %848 = vmatpush.bf16.msra.mxu0 %v606
    %849 = vmatpush.bf16.msra.mxu0 %v604
    %850 = vmatpush.bf16.msra.mxu0 %v602
    %851 = vmatpush.bf16.msra.mxu0 %v600
    %852 = vmatpush.bf16.msra.mxu0 %v598
    %853 = vmatpush.bf16.msra.mxu0 %v596
    %854 = vmatpush.bf16.msra.mxu0 %v594
    %855 = vmatmul.bf16.gmra.mxu0 %v182
    %v856 = vpop.f32.mrf.mxu0
    %v857 = vadd.f32 %v844, %v856
    %v858 = vpop.f32.mrf.mxu0
    %859 = vdwg.mxu0
    %860 = vmatpush.bf16.msra.mxu0 %v624
    %861 = vmatpush.bf16.msra.mxu0 %v622
    %862 = vmatpush.bf16.msra.mxu0 %v620
    %863 = vmatpush.bf16.msra.mxu0 %v618
    %864 = vmatpush.bf16.msra.mxu0 %v616
    %865 = vmatpush.bf16.msra.mxu0 %v614
    %866 = vmatpush.bf16.msra.mxu0 %v612
    %867 = vmatpush.bf16.msra.mxu0 %v610
    %868 = vmatmul.bf16.gmra.mxu0 %v183
    %v869 = vpop.f32.mrf.mxu0
    %v870 = vadd.f32 %v857, %v869
    %v871 = vpop.f32.mrf.mxu0
    %872 = vdwg.mxu0
    %873 = vmatpush.bf16.msra.mxu0 %v640
    %874 = vmatpush.bf16.msra.mxu0 %v638
    %875 = vmatpush.bf16.msra.mxu0 %v636
    %876 = vmatpush.bf16.msra.mxu0 %v634
    %877 = vmatpush.bf16.msra.mxu0 %v632
    %878 = vmatpush.bf16.msra.mxu0 %v630
    %879 = vmatpush.bf16.msra.mxu0 %v628
    %880 = vmatpush.bf16.msra.mxu0 %v626
    %881 = vmatmul.bf16.gmra.mxu0 %v184
    %v882 = vpop.f32.mrf.mxu0
    %v883 = vadd.f32 %v870, %v882
    %v884 = vpop.f32.mrf.mxu0
    %885 = vdwg.mxu0
    %886 = vmatpush.bf16.msra.mxu0 %v656
    %887 = vmatpush.bf16.msra.mxu0 %v654
    %888 = vmatpush.bf16.msra.mxu0 %v652
    %889 = vmatpush.bf16.msra.mxu0 %v650
    %890 = vmatpush.bf16.msra.mxu0 %v648
    %891 = vmatpush.bf16.msra.mxu0 %v646
    %892 = vmatpush.bf16.msra.mxu0 %v644
    %893 = vmatpush.bf16.msra.mxu0 %v642
    %894 = vmatmul.bf16.gmra.mxu0 %v185
    %v895 = vpop.f32.mrf.mxu0
    %v896 = vadd.f32 %v883, %v895
    %v897 = vpop.f32.mrf.mxu0
    %898 = vdwg.mxu0
    %899 = vmatpush.bf16.msra.mxu0 %v672
    %900 = vmatpush.bf16.msra.mxu0 %v670
    %901 = vmatpush.bf16.msra.mxu0 %v668
    %902 = vmatpush.bf16.msra.mxu0 %v666
    %903 = vmatpush.bf16.msra.mxu0 %v664
    %904 = vmatpush.bf16.msra.mxu0 %v662
    %905 = vmatpush.bf16.msra.mxu0 %v660
    %906 = vmatpush.bf16.msra.mxu0 %v658
    %907 = vmatmul.bf16.gmra.mxu0 %v186
    %v908 = vpop.f32.mrf.mxu0
    %v909 = vadd.f32 %v896, %v908
    %v910 = vpop.f32.mrf.mxu0
    %911 = vdwg.mxu0
    %912 = vmatpush.bf16.msra.mxu0 %v688
    %913 = vmatpush.bf16.msra.mxu0 %v686
    %914 = vmatpush.bf16.msra.mxu0 %v684
    %915 = vmatpush.bf16.msra.mxu0 %v682
    %916 = vmatpush.bf16.msra.mxu0 %v680
    %917 = vmatpush.bf16.msra.mxu0 %v678
    %918 = vmatpush.bf16.msra.mxu0 %v676
    %919 = vmatpush.bf16.msra.mxu0 %v674
    %920 = vmatmul.bf16.gmra.mxu0 %v187
    %v921 = vpop.f32.mrf.mxu0
    %v922 = vadd.f32 %v909, %v921
    %v923 = vpop.f32.mrf.mxu0
    %924 = vdwg.mxu0
    %925 = vmatpush.bf16.msra.mxu0 %v704
    %926 = vmatpush.bf16.msra.mxu0 %v702
    %927 = vmatpush.bf16.msra.mxu0 %v700
    %928 = vmatpush.bf16.msra.mxu0 %v698
    %929 = vmatpush.bf16.msra.mxu0 %v696
    %930 = vmatpush.bf16.msra.mxu0 %v694
    %931 = vmatpush.bf16.msra.mxu0 %v692
    %932 = vmatpush.bf16.msra.mxu0 %v690
    %933 = vmatmul.bf16.gmra.mxu0 %v188
    %v934 = vpop.f32.mrf.mxu0
    %v935 = vadd.f32 %v922, %v934
    %v936 = vpop.f32.mrf.mxu0
    %937 = vdwg.mxu0
    %938 = vmatpush.bf16.msra.mxu0 %v593
    %939 = vmatpush.bf16.msra.mxu0 %v591
    %940 = vmatpush.bf16.msra.mxu0 %v589
    %941 = vmatpush.bf16.msra.mxu0 %v587
    %942 = vmatpush.bf16.msra.mxu0 %v585
    %943 = vmatpush.bf16.msra.mxu0 %v583
    %944 = vmatpush.bf16.msra.mxu0 %v581
    %945 = vmatpush.bf16.msra.mxu0 %v579
    %946 = vmatmul.bf16.gmra.mxu0 %v181
    %v947 = vpop.f32.mrf.mxu0
    %v948 = vadd.f32 %v191, %v947
    %v949 = vpop.f32.mrf.mxu0
    %950 = vdwg.mxu0
    %951 = vmatpush.bf16.msra.mxu0 %v609
    %952 = vmatpush.bf16.msra.mxu0 %v607
    %953 = vmatpush.bf16.msra.mxu0 %v605
    %954 = vmatpush.bf16.msra.mxu0 %v603
    %955 = vmatpush.bf16.msra.mxu0 %v601
    %956 = vmatpush.bf16.msra.mxu0 %v599
    %957 = vmatpush.bf16.msra.mxu0 %v597
    %958 = vmatpush.bf16.msra.mxu0 %v595
    %959 = vmatmul.bf16.gmra.mxu0 %v182
    %v960 = vpop.f32.mrf.mxu0
    %v961 = vadd.f32 %v948, %v960
    %v962 = vpop.f32.mrf.mxu0
    %963 = vdwg.mxu0
    %964 = vmatpush.bf16.msra.mxu0 %v625
    %965 = vmatpush.bf16.msra.mxu0 %v623
    %966 = vmatpush.bf16.msra.mxu0 %v621
    %967 = vmatpush.bf16.msra.mxu0 %v619
    %968 = vmatpush.bf16.msra.mxu0 %v617
    %969 = vmatpush.bf16.msra.mxu0 %v615
    %970 = vmatpush.bf16.msra.mxu0 %v613
    %971 = vmatpush.bf16.msra.mxu0 %v611
    %972 = vmatmul.bf16.gmra.mxu0 %v183
    %v973 = vpop.f32.mrf.mxu0
    %v974 = vadd.f32 %v961, %v973
    %v975 = vpop.f32.mrf.mxu0
    %976 = vdwg.mxu0
    %977 = vmatpush.bf16.msra.mxu0 %v641
    %978 = vmatpush.bf16.msra.mxu0 %v639
    %979 = vmatpush.bf16.msra.mxu0 %v637
    %980 = vmatpush.bf16.msra.mxu0 %v635
    %981 = vmatpush.bf16.msra.mxu0 %v633
    %982 = vmatpush.bf16.msra.mxu0 %v631
    %983 = vmatpush.bf16.msra.mxu0 %v629
    %984 = vmatpush.bf16.msra.mxu0 %v627
    %985 = vmatmul.bf16.gmra.mxu0 %v184
    %v986 = vpop.f32.mrf.mxu0
    %v987 = vadd.f32 %v974, %v986
    %v988 = vpop.f32.mrf.mxu0
    %989 = vdwg.mxu0
    %990 = vmatpush.bf16.msra.mxu0 %v657
    %991 = vmatpush.bf16.msra.mxu0 %v655
    %992 = vmatpush.bf16.msra.mxu0 %v653
    %993 = vmatpush.bf16.msra.mxu0 %v651
    %994 = vmatpush.bf16.msra.mxu0 %v649
    %995 = vmatpush.bf16.msra.mxu0 %v647
    %996 = vmatpush.bf16.msra.mxu0 %v645
    %997 = vmatpush.bf16.msra.mxu0 %v643
    %998 = vmatmul.bf16.gmra.mxu0 %v185
    %v999 = vpop.f32.mrf.mxu0
    %v1000 = vadd.f32 %v987, %v999
    %v1001 = vpop.f32.mrf.mxu0
    %1002 = vdwg.mxu0
    %1003 = vmatpush.bf16.msra.mxu0 %v673
    %1004 = vmatpush.bf16.msra.mxu0 %v671
    %1005 = vmatpush.bf16.msra.mxu0 %v669
    %1006 = vmatpush.bf16.msra.mxu0 %v667
    %1007 = vmatpush.bf16.msra.mxu0 %v665
    %1008 = vmatpush.bf16.msra.mxu0 %v663
    %1009 = vmatpush.bf16.msra.mxu0 %v661
    %1010 = vmatpush.bf16.msra.mxu0 %v659
    %1011 = vmatmul.bf16.gmra.mxu0 %v186
    %v1012 = vpop.f32.mrf.mxu0
    %v1013 = vadd.f32 %v1000, %v1012
    %v1014 = vpop.f32.mrf.mxu0
    %1015 = vdwg.mxu0
    %1016 = vmatpush.bf16.msra.mxu0 %v689
    %1017 = vmatpush.bf16.msra.mxu0 %v687
    %1018 = vmatpush.bf16.msra.mxu0 %v685
    %1019 = vmatpush.bf16.msra.mxu0 %v683
    %1020 = vmatpush.bf16.msra.mxu0 %v681
    %1021 = vmatpush.bf16.msra.mxu0 %v679
    %1022 = vmatpush.bf16.msra.mxu0 %v677
    %1023 = vmatpush.bf16.msra.mxu0 %v675
    %1024 = vmatmul.bf16.gmra.mxu0 %v187
    %v1025 = vpop.f32.mrf.mxu0
    %v1026 = vadd.f32 %v1013, %v1025
    %v1027 = vpop.f32.mrf.mxu0
    %1028 = vdwg.mxu0
    %1029 = vmatpush.bf16.msra.mxu0 %v705
    %1030 = vmatpush.bf16.msra.mxu0 %v703
    %1031 = vmatpush.bf16.msra.mxu0 %v701
    %1032 = vmatpush.bf16.msra.mxu0 %v699
    %1033 = vmatpush.bf16.msra.mxu0 %v697
    %1034 = vmatpush.bf16.msra.mxu0 %v695
    %1035 = vmatpush.bf16.msra.mxu0 %v693
    %1036 = vmatpush.bf16.msra.mxu0 %v691
    %1037 = vmatmul.bf16.gmra.mxu0 %v188
    %v1038 = vpop.f32.mrf.mxu0
    %v1039 = vadd.f32 %v1026, %v1038
    %v1040 = vpop.f32.mrf.mxu0
    %1041 = vdwg.mxu0
    %v1042 = vld [vmem:[%s1] sm:$0xff]
    %v1043 = vld [vmem:[%s1 + $0x8] sm:$0xff]
    %v1044 = vld [vmem:[%s1 + $0x10] sm:$0xff]
    %v1045 = vld [vmem:[%s1 + $0x18] sm:$0xff]
    %v1046 = vld [vmem:[%s1 + $0x20] sm:$0xff]
    %v1047 = vld [vmem:[%s1 + $0x28] sm:$0xff]
    %v1048 = vld [vmem:[%s1 + $0x30] sm:$0xff]
    %v1049 = vld [vmem:[%s1 + $0x38] sm:$0xff]
    %v1050 = vpack.c.bf16 %v1042, %v1042
    %v1051 = vpack.c.bf16 %v1043, %v1043
    %v1052 = vpack.c.bf16 %v1044, %v1044
    %v1053 = vpack.c.bf16 %v1045, %v1045
    %v1054 = vpack.c.bf16 %v1046, %v1046
    %v1055 = vpack.c.bf16 %v1047, %v1047
    %v1056 = vpack.c.bf16 %v1048, %v1048
    %v1057 = vpack.c.bf16 %v1049, %v1049
    %1058 = vmatpush.bf16.msra.mxu0 %v592
    %1059 = vmatpush.bf16.msra.mxu0 %v590
    %1060 = vmatpush.bf16.msra.mxu0 %v588
    %1061 = vmatpush.bf16.msra.mxu0 %v586
    %1062 = vmatpush.bf16.msra.mxu0 %v584
    %1063 = vmatpush.bf16.msra.mxu0 %v582
    %1064 = vmatpush.bf16.msra.mxu0 %v580
    %1065 = vmatpush.bf16.msra.mxu0 %v578
    %1066 = vmatmul.bf16.gmra.mxu0 %v1050
    %v1067 = vpop.f32.mrf.mxu0
    %v1068 = vadd.f32 %v190, %v1067
    %v1069 = vpop.f32.mrf.mxu0
    %1070 = vdwg.mxu0
    %1071 = vmatpush.bf16.msra.mxu0 %v608
    %1072 = vmatpush.bf16.msra.mxu0 %v606
    %1073 = vmatpush.bf16.msra.mxu0 %v604
    %1074 = vmatpush.bf16.msra.mxu0 %v602
    %1075 = vmatpush.bf16.msra.mxu0 %v600
    %1076 = vmatpush.bf16.msra.mxu0 %v598
    %1077 = vmatpush.bf16.msra.mxu0 %v596
    %1078 = vmatpush.bf16.msra.mxu0 %v594
    %1079 = vmatmul.bf16.gmra.mxu0 %v1051
    %v1080 = vpop.f32.mrf.mxu0
    %v1081 = vadd.f32 %v1068, %v1080
    %v1082 = vpop.f32.mrf.mxu0
    %1083 = vdwg.mxu0
    %1084 = vmatpush.bf16.msra.mxu0 %v624
    %1085 = vmatpush.bf16.msra.mxu0 %v622
    %1086 = vmatpush.bf16.msra.mxu0 %v620
    %1087 = vmatpush.bf16.msra.mxu0 %v618
    %1088 = vmatpush.bf16.msra.mxu0 %v616
    %1089 = vmatpush.bf16.msra.mxu0 %v614
    %1090 = vmatpush.bf16.msra.mxu0 %v612
    %1091 = vmatpush.bf16.msra.mxu0 %v610
    %1092 = vmatmul.bf16.gmra.mxu0 %v1052
    %v1093 = vpop.f32.mrf.mxu0
    %v1094 = vadd.f32 %v1081, %v1093
    %v1095 = vpop.f32.mrf.mxu0
    %1096 = vdwg.mxu0
    %1097 = vmatpush.bf16.msra.mxu0 %v640
    %1098 = vmatpush.bf16.msra.mxu0 %v638
    %1099 = vmatpush.bf16.msra.mxu0 %v636
    %1100 = vmatpush.bf16.msra.mxu0 %v634
    %1101 = vmatpush.bf16.msra.mxu0 %v632
    %1102 = vmatpush.bf16.msra.mxu0 %v630
    %1103 = vmatpush.bf16.msra.mxu0 %v628
    %1104 = vmatpush.bf16.msra.mxu0 %v626
    %1105 = vmatmul.bf16.gmra.mxu0 %v1053
    %v1106 = vpop.f32.mrf.mxu0
    %v1107 = vadd.f32 %v1094, %v1106
    %v1108 = vpop.f32.mrf.mxu0
    %1109 = vdwg.mxu0
    %1110 = vmatpush.bf16.msra.mxu0 %v656
    %1111 = vmatpush.bf16.msra.mxu0 %v654
    %1112 = vmatpush.bf16.msra.mxu0 %v652
    %1113 = vmatpush.bf16.msra.mxu0 %v650
    %1114 = vmatpush.bf16.msra.mxu0 %v648
    %1115 = vmatpush.bf16.msra.mxu0 %v646
    %1116 = vmatpush.bf16.msra.mxu0 %v644
    %1117 = vmatpush.bf16.msra.mxu0 %v642
    %1118 = vmatmul.bf16.gmra.mxu0 %v1054
    %v1119 = vpop.f32.mrf.mxu0
    %v1120 = vadd.f32 %v1107, %v1119
    %v1121 = vpop.f32.mrf.mxu0
    %1122 = vdwg.mxu0
    %1123 = vmatpush.bf16.msra.mxu0 %v672
    %1124 = vmatpush.bf16.msra.mxu0 %v670
    %1125 = vmatpush.bf16.msra.mxu0 %v668
    %1126 = vmatpush.bf16.msra.mxu0 %v666
    %1127 = vmatpush.bf16.msra.mxu0 %v664
    %1128 = vmatpush.bf16.msra.mxu0 %v662
    %1129 = vmatpush.bf16.msra.mxu0 %v660
    %1130 = vmatpush.bf16.msra.mxu0 %v658
    %1131 = vmatmul.bf16.gmra.mxu0 %v1055
    %v1132 = vpop.f32.mrf.mxu0
    %v1133 = vadd.f32 %v1120, %v1132
    %v1134 = vpop.f32.mrf.mxu0
    %1135 = vdwg.mxu0
    %1136 = vmatpush.bf16.msra.mxu0 %v688
    %1137 = vmatpush.bf16.msra.mxu0 %v686
    %1138 = vmatpush.bf16.msra.mxu0 %v684
    %1139 = vmatpush.bf16.msra.mxu0 %v682
    %1140 = vmatpush.bf16.msra.mxu0 %v680
    %1141 = vmatpush.bf16.msra.mxu0 %v678
    %1142 = vmatpush.bf16.msra.mxu0 %v676
    %1143 = vmatpush.bf16.msra.mxu0 %v674
    %1144 = vmatmul.bf16.gmra.mxu0 %v1056
    %v1145 = vpop.f32.mrf.mxu0
    %v1146 = vadd.f32 %v1133, %v1145
    %v1147 = vpop.f32.mrf.mxu0
    %1148 = vdwg.mxu0
    %1149 = vmatpush.bf16.msra.mxu0 %v704
    %1150 = vmatpush.bf16.msra.mxu0 %v702
    %1151 = vmatpush.bf16.msra.mxu0 %v700
    %1152 = vmatpush.bf16.msra.mxu0 %v698
    %1153 = vmatpush.bf16.msra.mxu0 %v696
    %1154 = vmatpush.bf16.msra.mxu0 %v694
    %1155 = vmatpush.bf16.msra.mxu0 %v692
    %1156 = vmatpush.bf16.msra.mxu0 %v690
    %1157 = vmatmul.bf16.gmra.mxu0 %v1057
    %v1158 = vpop.f32.mrf.mxu0
    %v1159 = vadd.f32 %v1146, %v1158
    %v1160 = vpop.f32.mrf.mxu0
    %1161 = vdwg.mxu0
    %1162 = vmatpush.bf16.msra.mxu0 %v593
    %1163 = vmatpush.bf16.msra.mxu0 %v591
    %1164 = vmatpush.bf16.msra.mxu0 %v589
    %1165 = vmatpush.bf16.msra.mxu0 %v587
    %1166 = vmatpush.bf16.msra.mxu0 %v585
    %1167 = vmatpush.bf16.msra.mxu0 %v583
    %1168 = vmatpush.bf16.msra.mxu0 %v581
    %1169 = vmatpush.bf16.msra.mxu0 %v579
    %1170 = vmatmul.bf16.gmra.mxu0 %v1050
    %v1171 = vpop.f32.mrf.mxu0
    %v1172 = vadd.f32 %v191, %v1171
    %v1173 = vpop.f32.mrf.mxu0
    %1174 = vdwg.mxu0
    %1175 = vmatpush.bf16.msra.mxu0 %v609
    %1176 = vmatpush.bf16.msra.mxu0 %v607
    %1177 = vmatpush.bf16.msra.mxu0 %v605
    %1178 = vmatpush.bf16.msra.mxu0 %v603
    %1179 = vmatpush.bf16.msra.mxu0 %v601
    %1180 = vmatpush.bf16.msra.mxu0 %v599
    %1181 = vmatpush.bf16.msra.mxu0 %v597
    %1182 = vmatpush.bf16.msra.mxu0 %v595
    %1183 = vmatmul.bf16.gmra.mxu0 %v1051
    %v1184 = vpop.f32.mrf.mxu0
    %v1185 = vadd.f32 %v1172, %v1184
    %v1186 = vpop.f32.mrf.mxu0
    %1187 = vdwg.mxu0
    %1188 = vmatpush.bf16.msra.mxu0 %v625
    %1189 = vmatpush.bf16.msra.mxu0 %v623
    %1190 = vmatpush.bf16.msra.mxu0 %v621
    %1191 = vmatpush.bf16.msra.mxu0 %v619
    %1192 = vmatpush.bf16.msra.mxu0 %v617
    %1193 = vmatpush.bf16.msra.mxu0 %v615
    %1194 = vmatpush.bf16.msra.mxu0 %v613
    %1195 = vmatpush.bf16.msra.mxu0 %v611
    %1196 = vmatmul.bf16.gmra.mxu0 %v1052
    %v1197 = vpop.f32.mrf.mxu0
    %v1198 = vadd.f32 %v1185, %v1197
    %v1199 = vpop.f32.mrf.mxu0
    %1200 = vdwg.mxu0
    %1201 = vmatpush.bf16.msra.mxu0 %v641
    %1202 = vmatpush.bf16.msra.mxu0 %v639
    %1203 = vmatpush.bf16.msra.mxu0 %v637
    %1204 = vmatpush.bf16.msra.mxu0 %v635
    %1205 = vmatpush.bf16.msra.mxu0 %v633
    %1206 = vmatpush.bf16.msra.mxu0 %v631
    %1207 = vmatpush.bf16.msra.mxu0 %v629
    %1208 = vmatpush.bf16.msra.mxu0 %v627
    %1209 = vmatmul.bf16.gmra.mxu0 %v1053
    %v1210 = vpop.f32.mrf.mxu0
    %v1211 = vadd.f32 %v1198, %v1210
    %v1212 = vpop.f32.mrf.mxu0
    %1213 = vdwg.mxu0
    %1214 = vmatpush.bf16.msra.mxu0 %v657
    %1215 = vmatpush.bf16.msra.mxu0 %v655
    %1216 = vmatpush.bf16.msra.mxu0 %v653
    %1217 = vmatpush.bf16.msra.mxu0 %v651
    %1218 = vmatpush.bf16.msra.mxu0 %v649
    %1219 = vmatpush.bf16.msra.mxu0 %v647
    %1220 = vmatpush.bf16.msra.mxu0 %v645
    %1221 = vmatpush.bf16.msra.mxu0 %v643
    %1222 = vmatmul.bf16.gmra.mxu0 %v1054
    %v1223 = vpop.f32.mrf.mxu0
    %v1224 = vadd.f32 %v1211, %v1223
    %v1225 = vpop.f32.mrf.mxu0
    %1226 = vdwg.mxu0
    %1227 = vmatpush.bf16.msra.mxu0 %v673
    %1228 = vmatpush.bf16.msra.mxu0 %v671
    %1229 = vmatpush.bf16.msra.mxu0 %v669
    %1230 = vmatpush.bf16.msra.mxu0 %v667
    %1231 = vmatpush.bf16.msra.mxu0 %v665
    %1232 = vmatpush.bf16.msra.mxu0 %v663
    %1233 = vmatpush.bf16.msra.mxu0 %v661
    %1234 = vmatpush.bf16.msra.mxu0 %v659
    %1235 = vmatmul.bf16.gmra.mxu0 %v1055
    %v1236 = vpop.f32.mrf.mxu0
    %v1237 = vadd.f32 %v1224, %v1236
    %v1238 = vpop.f32.mrf.mxu0
    %1239 = vdwg.mxu0
    %1240 = vmatpush.bf16.msra.mxu0 %v689
    %1241 = vmatpush.bf16.msra.mxu0 %v687
    %1242 = vmatpush.bf16.msra.mxu0 %v685
    %1243 = vmatpush.bf16.msra.mxu0 %v683
    %1244 = vmatpush.bf16.msra.mxu0 %v681
    %1245 = vmatpush.bf16.msra.mxu0 %v679
    %1246 = vmatpush.bf16.msra.mxu0 %v677
    %1247 = vmatpush.bf16.msra.mxu0 %v675
    %1248 = vmatmul.bf16.gmra.mxu0 %v1056
    %v1249 = vpop.f32.mrf.mxu0
    %v1250 = vadd.f32 %v1237, %v1249
    %v1251 = vpop.f32.mrf.mxu0
    %1252 = vdwg.mxu0
    %1253 = vmatpush.bf16.msra.mxu0 %v705
    %1254 = vmatpush.bf16.msra.mxu0 %v703
    %1255 = vmatpush.bf16.msra.mxu0 %v701
    %1256 = vmatpush.bf16.msra.mxu0 %v699
    %1257 = vmatpush.bf16.msra.mxu0 %v697
    %1258 = vmatpush.bf16.msra.mxu0 %v695
    %1259 = vmatpush.bf16.msra.mxu0 %v693
    %1260 = vmatpush.bf16.msra.mxu0 %v691
    %1261 = vmatmul.bf16.gmra.mxu0 %v1057
    %v1262 = vpop.f32.mrf.mxu0
    %v1263 = vadd.f32 %v1250, %v1262
    %v1264 = vpop.f32.mrf.mxu0
    %1265 = vdwg.mxu0
    %v1266 = vld [vmem:[%s2] sm:$0xf]
    %v1267 = vld [vmem:[%s5] sm:$0xff]
    %v1268 = vld [vmem:[%s6] sm:$0xf]
    %1270 = vset.pattern.permute.xlu0 0
    %1271 = vperm.xlu0 %1270, %v1268
    %v1272 = vpop.permute.xlu0 %1271
    %1275 = vst [vmem:[#allocation1] ss:$2 sm:$0xff] %v1267
    %v1276 = vld.sshfl [vmem:[#allocation1] sm:$0xff pattern:$0x75316420]
    %v1277 = vld.sshfl [vmem:[#allocation1 + $0x8] sm:$0xff pattern:$0x75316420]
    %1280 = vmatpush.xpose.msra.mxu0 0.0
    %1281 = vmatpush.xpose.msra.mxu0 0.0
    %1282 = vmatpush.xpose.msra.mxu0 0.0
    %1283 = vmatpush.xpose.msra.mxu0 0.0
    %1284 = vmatpush.xpose.msra.mxu0 0.0
    %1285 = vmatpush.xpose.msra.mxu0 0.0
    %1286 = vmatpush.xpose.msra.mxu0 0.0
    %1287 = vmatpush.xpose.msra.mxu0 0.0
    %1288 = vmatpush.xpose.msra.mxu0 0.0
    %1289 = vmatpush.xpose.msra.mxu0 0.0
    %1290 = vmatpush.xpose.msra.mxu0 0.0
    %1291 = vmatpush.xpose.msra.mxu0 0.0
    %1292 = vmatpush.xpose.msra.mxu0 0.0
    %1293 = vmatpush.xpose.msra.mxu0 0.0
    %1294 = vmatpush.xpose.msra.mxu0 0.0
    %1295 = vmatpush.xpose.msra.mxu0 %v935
    %1296 = vmatmul.f32.gmra.mxu0 %v1276
    %v1297 = vpop.f32.mrf.mxu0
    %v1298 = vadd.f32 %v1272, %v1297
    %1299 = vdwg.mxu0
    %1300 = vmatpush.xpose.msra.mxu0 0.0
    %1301 = vmatpush.xpose.msra.mxu0 0.0
    %1302 = vmatpush.xpose.msra.mxu0 0.0
    %1303 = vmatpush.xpose.msra.mxu0 0.0
    %1304 = vmatpush.xpose.msra.mxu0 0.0
    %1305 = vmatpush.xpose.msra.mxu0 0.0
    %1306 = vmatpush.xpose.msra.mxu0 0.0
    %1307 = vmatpush.xpose.msra.mxu0 0.0
    %1308 = vmatpush.xpose.msra.mxu0 0.0
    %1309 = vmatpush.xpose.msra.mxu0 0.0
    %1310 = vmatpush.xpose.msra.mxu0 0.0
    %1311 = vmatpush.xpose.msra.mxu0 0.0
    %1312 = vmatpush.xpose.msra.mxu0 0.0
    %1313 = vmatpush.xpose.msra.mxu0 0.0
    %1314 = vmatpush.xpose.msra.mxu0 0.0
    %1315 = vmatpush.xpose.msra.mxu0 %v1039
    %1316 = vmatmul.f32.gmra.mxu0 %v1277
    %v1317 = vpop.f32.mrf.mxu0
    %v1318 = vadd.f32 %v1298, %v1317
    %1319 = vdwg.mxu0
    %vm1320 = vcmask 60416
    %v1321 = vsel %vm1320, %v1318, -inf
    %v1322 = vrot.slane %v1321, 4
    %v1323 = vmax.f32 %v1321, %v1322
    %v1324 = vrot.slane %v1323, 2
    %v1325 = vmax.f32 %v1323, %v1324
    %v1326 = vrot.slane %v1325, 1
    %v1327 = vmax.f32 %v1325, %v1326
    %v1328 = vsub.f32 %v1318, %v1327
    %v1329 = vmul.f32 %v1328, 1.442695
    %v1330 = vpow.pop %v1329
    %v1331 = vsel %vm1320, %v1330, 0.0
    %v1332 = vrot.slane %v1331, 4
    %v1333 = vadd.f32 %v1331, %v1332
    %v1334 = vrot.slane %v1333, 2
    %v1335 = vadd.f32 %v1333, %v1334
    %v1336 = vrot.slane %v1335, 1
    %v1337 = vadd.f32 %v1335, %v1336
    %v1338 = vrcp.pop %v1337
    %v1339 = vmul.f32 %v1330, %v1338
    %v1340 = vsel %vm1320, %v1339, -inf
    %v1341 = vrot.slane %v1340, 4
    %v1342 = vmax.f32 %v1340, %v1341
    %v1343 = vrot.slane %v1342, 2
    %v1344 = vmax.f32 %v1342, %v1343
    %v1345 = vrot.slane %v1344, 1
    %v1346 = vmax.f32 %v1344, %v1345
    %v1347 = vsub.f32 %v1339, %v1346
    %v1348 = vmul.f32 %v1347, 1.442695
    %v1349 = vpow.pop %v1348
    %v1350 = vsel %vm1320, %v1349, 0.0
    %v1351 = vrot.slane %v1350, 4
    %v1352 = vadd.f32 %v1350, %v1351
    %v1353 = vrot.slane %v1352, 2
    %v1354 = vadd.f32 %v1352, %v1353
    %v1355 = vrot.slane %v1354, 1
    %v1356 = vadd.f32 %v1354, %v1355
    %v1357 = vrcp.pop %v1356
    %v1358 = vmul.f32 %v1356, %v1357
    %v1359 = vsub.f32 1.0, %v1358
    %v1360 = vmul.f32 %v1357, %v1359
    %v1361 = vadd.f32 %v1357, %v1360
    %vm1362 = vweird.f32 %v1356
    %vm1363 = vweird.f32 %v1357
    %vm1364 = vmor %vm1362, %vm1363
    %v1365 = vsel %vm1364, %v1357, %v1361
    %v1366 = vand.u32 2147483647, %v1356
    %vm1367 = vcmp.eq.f32.partialorder %v1366, 8.507059e+37
    %v1368 = vand.u32 %v1356, 2147483648
    %v1369 = vor.u32 1.1754944e-38, %v1368
    %v1370 = vsel %vm1367, %v1369, %v1365
    %v1371 = vmul.f32 %v1349, %v1370
    %v1372 = vsub.f32 %v1371, %v1266
    %v1373 = vmul.f32 %v1372, 0.125
    %v1374 = vmul.f32 %v1373, %v1339
    %v1375 = vsel %vm1320, %v1374, 0.0
    %v1376 = vrot.slane %v1375, 4
    %v1377 = vadd.f32 %v1375, %v1376
    %v1378 = vrot.slane %v1377, 2
    %v1379 = vadd.f32 %v1377, %v1378
    %v1380 = vrot.slane %v1379, 1
    %v1381 = vadd.f32 %v1379, %v1380
    %v1382 = vsub.f32 %v1373, %v1381
    %v1383 = vmul.f32 %v1339, %v1382
    %vm1384 = vcmask 64512
    %v1386 = vsel %vm1384, %v1383, 0
    %1388 = vmatpush.msra.mxu0 0.0
    %1389 = vmatpush.msra.mxu0 0.0
    %1390 = vmatpush.msra.mxu0 0.0
    %1391 = vmatpush.msra.mxu0 0.0
    %1392 = vmatpush.msra.mxu0 0.0
    %1393 = vmatpush.msra.mxu0 0.0
    %1394 = vmatpush.msra.mxu0 0.0
    %1395 = vmatpush.msra.mxu0 0.0
    %1396 = vmatpush.msra.mxu0 0.0
    %1397 = vmatpush.msra.mxu0 0.0
    %1398 = vmatpush.msra.mxu0 0.0
    %1399 = vmatpush.msra.mxu0 0.0
    %1400 = vmatpush.msra.mxu0 0.0
    %1401 = vmatpush.msra.mxu0 0.0
    %1402 = vmatpush.msra.mxu0 0.0
    %1403 = vmatpush.msra.mxu0 %v935
    %1404 = vmatmul.f32.gmra.mxu0 %v1386
    %v1405 = vpop.f32.mrf.mxu0
    %v1406 = vadd.f32 0.0, %v1405
    %1407 = vdwg.mxu0
    %1408 = vmatpush.msra.mxu0 0.0
    %1409 = vmatpush.msra.mxu0 0.0
    %1410 = vmatpush.msra.mxu0 0.0
    %1411 = vmatpush.msra.mxu0 0.0
    %1412 = vmatpush.msra.mxu0 0.0
    %1413 = vmatpush.msra.mxu0 0.0
    %1414 = vmatpush.msra.mxu0 0.0
    %1415 = vmatpush.msra.mxu0 0.0
    %1416 = vmatpush.msra.mxu0 0.0
    %1417 = vmatpush.msra.mxu0 0.0
    %1418 = vmatpush.msra.mxu0 0.0
    %1419 = vmatpush.msra.mxu0 0.0
    %1420 = vmatpush.msra.mxu0 0.0
    %1421 = vmatpush.msra.mxu0 0.0
    %1422 = vmatpush.msra.mxu0 0.0
    %1423 = vmatpush.msra.mxu0 %v1039
    %1424 = vmatmul.f32.gmra.mxu0 %v1386
    %v1425 = vpop.f32.mrf.mxu0
    %v1426 = vadd.f32 0.0, %v1425
    %1427 = vdwg.mxu0
    %v1428 = vsel %vm1320, %v1383, 0.0
    %1429 = vadd.xlane.f32.xlu0 %v1428
    %v1430 = vpop.xlane.xlu0 %1429
    %v1431 = vmul.f32 %v1406, 0.1
    %v1432 = vmul.f32 %v1426, 0.1
    %v1433 = vadd.f32 %v1431, 0.0
    %v1434 = vadd.f32 %v1432, 0.0
    %v1435 = vmul.f32 %v1406, 0.001
    %v1436 = vmul.f32 %v1426, 0.001
    %v1437 = vmul.f32 %v1435, %v1406
    %v1438 = vmul.f32 %v1436, %v1426
    %v1439 = vadd.f32 %v1437, 0.0
    %v1440 = vadd.f32 %v1438, 0.0
    %v1441 = vmul.f32 %v1430, 0.1
    %v1442 = vadd.f32 %v1441, 0.0
    %v1443 = vmul.f32 %v1430, 0.001
    %v1444 = vmul.f32 %v1443, %v1430
    %v1445 = vadd.f32 %v1444, 0.0
    %v1446 = vmul.f32 %v1433, 0.01
    %v1447 = vmul.f32 %v1434, 0.01
    %v1448 = vmul.f32 %v1439, 1000.0
    %v1449 = vmul.f32 %v1440, 1000.0
    %v1450 = vrsqrt.pop %v1448
    %v1451 = vmul.f32 %v1450, %v1448
    %v1452 = vmul.f32 %v1451, %v1450
    %v1453 = vmul.f32 0.5, %v1452
    %v1454 = vsub.f32 1.5, %v1453
    %v1455 = vmul.f32 %v1450, %v1454
    %v1456 = vmul.f32 %v1448, %v1455
    %vm1457 = vcmp.eq.f32.partialorder %v1448, inf
    %v1458 = vsel %vm1457, %v1448, %v1456
    %vm1459 = vcmp.eq.f32.partialorder %v1448, 0.0
    %v1460 = vand.u32 %v1448, 2147483648
    %v1461 = vsel %vm1459, %v1460, %v1458
    %v1462 = vrsqrt.pop %v1449
    %v1463 = vmul.f32 %v1462, %v1449
    %v1464 = vmul.f32 %v1463, %v1462
    %v1465 = vmul.f32 0.5, %v1464
    %v1466 = vsub.f32 1.5, %v1465
    %v1467 = vmul.f32 %v1462, %v1466
    %v1468 = vmul.f32 %v1449, %v1467
    %vm1469 = vcmp.eq.f32.partialorder %v1449, inf
    %v1470 = vsel %vm1469, %v1449, %v1468
    %vm1471 = vcmp.eq.f32.partialorder %v1449, 0.0
    %v1472 = vand.u32 %v1449, 2147483648
    %v1473 = vsel %vm1471, %v1472, %v1470
    %v1474 = vadd.f32 %v1461, 1e-08
    %v1475 = vadd.f32 %v1473, 1e-08
    %v1476 = vrcp.pop %v1474
    %v1477 = vrcp.pop %v1475
    %v1478 = vmul.f32 %v1446, %v1476
    %v1479 = vmul.f32 %v1447, %v1477
    %v1482 = vrot.slane %v1479, 4
    %vm1483 = vcmask 1043456
    %v1484 = vsel %vm1483, %v1478, %v1482
    %v1486 = vsub.f32 %v1267, %v1484
    %v1487 = vmul.f32 %v1442, 0.01
    %v1488 = vmul.f32 %v1445, 1000.0
    %v1489 = vrsqrt.pop %v1488
    %v1490 = vmul.f32 %v1489, %v1488
    %v1491 = vmul.f32 %v1490, %v1489
    %v1492 = vmul.f32 0.5, %v1491
    %v1493 = vsub.f32 1.5, %v1492
    %v1494 = vmul.f32 %v1489, %v1493
    %v1495 = vmul.f32 %v1488, %v1494
    %vm1496 = vcmp.eq.f32.partialorder %v1488, inf
    %v1497 = vsel %vm1496, %v1488, %v1495
    %vm1498 = vcmp.eq.f32.partialorder %v1488, 0.0
    %v1499 = vand.u32 %v1488, 2147483648
    %v1500 = vsel %vm1498, %v1499, %v1497
    %v1501 = vadd.f32 %v1500, 1e-08
    %v1502 = vrcp.pop %v1501
    %v1503 = vmul.f32 %v1487, %v1502
    %v1504 = vsub.f32 %v1268, %v1503
    %1506 = vset.pattern.permute.xlu0 0
    %1507 = vperm.xlu0 %1506, %v1504
    %v1508 = vpop.permute.xlu0 %1507
    %1511 = vst [vmem:[#allocation1] ss:$2 sm:$0xff] %v1486
    %v1512 = vld.sshfl [vmem:[#allocation1] sm:$0xff pattern:$0x75316420]
    %v1513 = vld.sshfl [vmem:[#allocation1 + $0x8] sm:$0xff pattern:$0x75316420]
    %1516 = vmatpush.xpose.msra.mxu0 0.0
    %1517 = vmatpush.xpose.msra.mxu0 0.0
    %1518 = vmatpush.xpose.msra.mxu0 0.0
    %1519 = vmatpush.xpose.msra.mxu0 0.0
    %1520 = vmatpush.xpose.msra.mxu0 0.0
    %1521 = vmatpush.xpose.msra.mxu0 0.0
    %1522 = vmatpush.xpose.msra.mxu0 0.0
    %1523 = vmatpush.xpose.msra.mxu0 0.0
    %1524 = vmatpush.xpose.msra.mxu0 0.0
    %1525 = vmatpush.xpose.msra.mxu0 0.0
    %1526 = vmatpush.xpose.msra.mxu0 0.0
    %1527 = vmatpush.xpose.msra.mxu0 0.0
    %1528 = vmatpush.xpose.msra.mxu0 0.0
    %1529 = vmatpush.xpose.msra.mxu0 0.0
    %1530 = vmatpush.xpose.msra.mxu0 0.0
    %1531 = vmatpush.xpose.msra.mxu0 %v935
    %1532 = vmatmul.f32.gmra.mxu0 %v1512
    %v1533 = vpop.f32.mrf.mxu0
    %v1534 = vadd.f32 %v1508, %v1533
    %1535 = vdwg.mxu0
    %1536 = vmatpush.xpose.msra.mxu0 0.0
    %1537 = vmatpush.xpose.msra.mxu0 0.0
    %1538 = vmatpush.xpose.msra.mxu0 0.0
    %1539 = vmatpush.xpose.msra.mxu0 0.0
    %1540 = vmatpush.xpose.msra.mxu0 0.0
    %1541 = vmatpush.xpose.msra.mxu0 0.0
    %1542 = vmatpush.xpose.msra.mxu0 0.0
    %1543 = vmatpush.xpose.msra.mxu0 0.0
    %1544 = vmatpush.xpose.msra.mxu0 0.0
    %1545 = vmatpush.xpose.msra.mxu0 0.0
    %1546 = vmatpush.xpose.msra.mxu0 0.0
    %1547 = vmatpush.xpose.msra.mxu0 0.0
    %1548 = vmatpush.xpose.msra.mxu0 0.0
    %1549 = vmatpush.xpose.msra.mxu0 0.0
    %1550 = vmatpush.xpose.msra.mxu0 0.0
    %1551 = vmatpush.xpose.msra.mxu0 %v1039
    %1552 = vmatmul.f32.gmra.mxu0 %v1513
    %v1553 = vpop.f32.mrf.mxu0
    %v1554 = vadd.f32 %v1534, %v1553
    %1555 = vdwg.mxu0
    %v1556 = vsel %vm1320, %v1554, -inf
    %v1557 = vrot.slane %v1556, 4
    %v1558 = vmax.f32 %v1556, %v1557
    %v1559 = vrot.slane %v1558, 2
    %v1560 = vmax.f32 %v1558, %v1559
    %v1561 = vrot.slane %v1560, 1
    %v1562 = vmax.f32 %v1560, %v1561
    %v1563 = vsub.f32 %v1554, %v1562
    %v1564 = vmul.f32 %v1563, 1.442695
    %v1565 = vpow.pop %v1564
    %v1566 = vsel %vm1320, %v1565, 0.0
    %v1567 = vrot.slane %v1566, 4
    %v1568 = vadd.f32 %v1566, %v1567
    %v1569 = vrot.slane %v1568, 2
    %v1570 = vadd.f32 %v1568, %v1569
    %v1571 = vrot.slane %v1570, 1
    %v1572 = vadd.f32 %v1570, %v1571
    %v1573 = vrcp.pop %v1572
    %v1574 = vmul.f32 %v1565, %v1573
    %v1575 = vsel %vm1320, %v1574, -inf
    %v1576 = vrot.slane %v1575, 4
    %v1577 = vmax.f32 %v1575, %v1576
    %v1578 = vrot.slane %v1577, 2
    %v1579 = vmax.f32 %v1577, %v1578
    %v1580 = vrot.slane %v1579, 1
    %v1581 = vmax.f32 %v1579, %v1580
    %v1582 = vsub.f32 %v1574, %v1581
    %v1583 = vmul.f32 %v1582, 1.442695
    %v1584 = vpow.pop %v1583
    %v1585 = vsel %vm1320, %v1584, 0.0
    %v1586 = vrot.slane %v1585, 4
    %v1587 = vadd.f32 %v1585, %v1586
    %v1588 = vrot.slane %v1587, 2
    %v1589 = vadd.f32 %v1587, %v1588
    %v1590 = vrot.slane %v1589, 1
    %v1591 = vadd.f32 %v1589, %v1590
    %v1592 = vrcp.pop %v1591
    %v1593 = vmul.f32 %v1591, %v1592
    %v1594 = vsub.f32 1.0, %v1593
    %v1595 = vmul.f32 %v1592, %v1594
    %v1596 = vadd.f32 %v1592, %v1595
    %vm1597 = vweird.f32 %v1591
    %vm1598 = vweird.f32 %v1592
    %vm1599 = vmor %vm1597, %vm1598
    %v1600 = vsel %vm1599, %v1592, %v1596
    %v1601 = vand.u32 2147483647, %v1591
    %vm1602 = vcmp.eq.f32.partialorder %v1601, 8.507059e+37
    %v1603 = vand.u32 %v1591, 2147483648
    %v1604 = vor.u32 1.1754944e-38, %v1603
    %v1605 = vsel %vm1602, %v1604, %v1600
    %v1606 = vmul.f32 %v1584, %v1605
    %v1607 = vsub.f32 %v1606, %v1266
    %v1608 = vmul.f32 %v1607, 0.125
    %v1609 = vmul.f32 %v1608, %v1574
    %v1610 = vsel %vm1320, %v1609, 0.0
    %v1611 = vrot.slane %v1610, 4
    %v1612 = vadd.f32 %v1610, %v1611
    %v1613 = vrot.slane %v1612, 2
    %v1614 = vadd.f32 %v1612, %v1613
    %v1615 = vrot.slane %v1614, 1
    %v1616 = vadd.f32 %v1614, %v1615
    %v1617 = vsub.f32 %v1608, %v1616
    %v1618 = vmul.f32 %v1574, %v1617
    %v1620 = vsel %vm1384, %v1618, 0
    %1622 = vmatpush.msra.mxu0 0.0
    %1623 = vmatpush.msra.mxu0 0.0
    %1624 = vmatpush.msra.mxu0 0.0
    %1625 = vmatpush.msra.mxu0 0.0
    %1626 = vmatpush.msra.mxu0 0.0
    %1627 = vmatpush.msra.mxu0 0.0
    %1628 = vmatpush.msra.mxu0 0.0
    %1629 = vmatpush.msra.mxu0 0.0
    %1630 = vmatpush.msra.mxu0 0.0
    %1631 = vmatpush.msra.mxu0 0.0
    %1632 = vmatpush.msra.mxu0 0.0
    %1633 = vmatpush.msra.mxu0 0.0
    %1634 = vmatpush.msra.mxu0 0.0
    %1635 = vmatpush.msra.mxu0 0.0
    %1636 = vmatpush.msra.mxu0 0.0
    %1637 = vmatpush.msra.mxu0 %v935
    %1638 = vmatmul.f32.gmra.mxu0 %v1620
    %v1639 = vpop.f32.mrf.mxu0
    %v1640 = vadd.f32 0.0, %v1639
    %1641 = vdwg.mxu0
    %1642 = vmatpush.msra.mxu0 0.0
    %1643 = vmatpush.msra.mxu0 0.0
    %1644 = vmatpush.msra.mxu0 0.0
    %1645 = vmatpush.msra.mxu0 0.0
    %1646 = vmatpush.msra.mxu0 0.0
    %1647 = vmatpush.msra.mxu0 0.0
    %1648 = vmatpush.msra.mxu0 0.0
    %1649 = vmatpush.msra.mxu0 0.0
    %1650 = vmatpush.msra.mxu0 0.0
    %1651 = vmatpush.msra.mxu0 0.0
    %1652 = vmatpush.msra.mxu0 0.0
    %1653 = vmatpush.msra.mxu0 0.0
    %1654 = vmatpush.msra.mxu0 0.0
    %1655 = vmatpush.msra.mxu0 0.0
    %1656 = vmatpush.msra.mxu0 0.0
    %1657 = vmatpush.msra.mxu0 %v1039
    %1658 = vmatmul.f32.gmra.mxu0 %v1620
    %v1659 = vpop.f32.mrf.mxu0
    %v1660 = vadd.f32 0.0, %v1659
    %1661 = vdwg.mxu0
    %v1662 = vsel %vm1320, %v1618, 0.0
    %1663 = vadd.xlane.f32.xlu0 %v1662
    %v1664 = vpop.xlane.xlu0 %1663
    %v1665 = vmul.f32 %v1433, 0.9
    %v1666 = vmul.f32 %v1434, 0.9
    %v1667 = vmul.f32 %v1640, 0.1
    %v1668 = vmul.f32 %v1660, 0.1
    %v1669 = vadd.f32 %v1665, %v1667
    %v1670 = vadd.f32 %v1666, %v1668
    %v1671 = vmul.f32 %v1439, 0.999
    %v1672 = vmul.f32 %v1440, 0.999
    %v1673 = vmul.f32 %v1640, 0.001
    %v1674 = vmul.f32 %v1660, 0.001
    %v1675 = vmul.f32 %v1673, %v1640
    %v1676 = vmul.f32 %v1674, %v1660
    %v1677 = vadd.f32 %v1671, %v1675
    %v1678 = vadd.f32 %v1672, %v1676
    %v1679 = vmul.f32 %v1442, 0.9
    %v1680 = vmul.f32 %v1664, 0.1
    %v1681 = vadd.f32 %v1679, %v1680
    %v1682 = vmul.f32 %v1445, 0.999
    %v1683 = vmul.f32 %v1664, 0.001
    %v1684 = vmul.f32 %v1683, %v1664
    %v1685 = vadd.f32 %v1682, %v1684
    %v1686 = vmul.f32 %v1669, 0.005263158
    %v1687 = vmul.f32 %v1670, 0.005263158
    %v1688 = vmul.f32 %v1677, 500.25012
    %v1689 = vmul.f32 %v1678, 500.25012
    %v1690 = vrsqrt.pop %v1688
    %v1691 = vmul.f32 %v1690, %v1688
    %v1692 = vmul.f32 %v1691, %v1690
    %v1693 = vmul.f32 0.5, %v1692
    %v1694 = vsub.f32 1.5, %v1693
    %v1695 = vmul.f32 %v1690, %v1694
    %v1696 = vmul.f32 %v1688, %v1695
    %vm1697 = vcmp.eq.f32.partialorder %v1688, inf
    %v1698 = vsel %vm1697, %v1688, %v1696
    %vm1699 = vcmp.eq.f32.partialorder %v1688, 0.0
    %v1700 = vand.u32 %v1688, 2147483648
    %v1701 = vsel %vm1699, %v1700, %v1698
    %v1702 = vrsqrt.pop %v1689
    %v1703 = vmul.f32 %v1702, %v1689
    %v1704 = vmul.f32 %v1703, %v1702
    %v1705 = vmul.f32 0.5, %v1704
    %v1706 = vsub.f32 1.5, %v1705
    %v1707 = vmul.f32 %v1702, %v1706
    %v1708 = vmul.f32 %v1689, %v1707
    %vm1709 = vcmp.eq.f32.partialorder %v1689, inf
    %v1710 = vsel %vm1709, %v1689, %v1708
    %vm1711 = vcmp.eq.f32.partialorder %v1689, 0.0
    %v1712 = vand.u32 %v1689, 2147483648
    %v1713 = vsel %vm1711, %v1712, %v1710
    %v1714 = vadd.f32 %v1701, 1e-08
    %v1715 = vadd.f32 %v1713, 1e-08
    %v1716 = vrcp.pop %v1714
    %v1717 = vrcp.pop %v1715
    %v1718 = vmul.f32 %v1686, %v1716
    %v1719 = vmul.f32 %v1687, %v1717
    %v1722 = vrot.slane %v1719, 4
    %v1723 = vsel %vm1483, %v1718, %v1722
    %v1725 = vsub.f32 %v1486, %v1723
    %v1726 = vmul.f32 %v1681, 0.005263158
    %v1727 = vmul.f32 %v1685, 500.25012
    %v1728 = vrsqrt.pop %v1727
    %v1729 = vmul.f32 %v1728, %v1727
    %v1730 = vmul.f32 %v1729, %v1728
    %v1731 = vmul.f32 0.5, %v1730
    %v1732 = vsub.f32 1.5, %v1731
    %v1733 = vmul.f32 %v1728, %v1732
    %v1734 = vmul.f32 %v1727, %v1733
    %vm1735 = vcmp.eq.f32.partialorder %v1727, inf
    %v1736 = vsel %vm1735, %v1727, %v1734
    %vm1737 = vcmp.eq.f32.partialorder %v1727, 0.0
    %v1738 = vand.u32 %v1727, 2147483648
    %v1739 = vsel %vm1737, %v1738, %v1736
    %v1740 = vadd.f32 %v1739, 1e-08
    %v1741 = vrcp.pop %v1740
    %v1742 = vmul.f32 %v1726, %v1741
    %v1743 = vsub.f32 %v1504, %v1742
    %1745 = vset.pattern.permute.xlu0 0
    %1746 = vperm.xlu0 %1745, %v1743
    %v1747 = vpop.permute.xlu0 %1746
    %1750 = vst [vmem:[#allocation1] ss:$2 sm:$0xff] %v1725
    %v1751 = vld.sshfl [vmem:[#allocation1] sm:$0xff pattern:$0x75316420]
    %v1752 = vld.sshfl [vmem:[#allocation1 + $0x8] sm:$0xff pattern:$0x75316420]
    %1755 = vmatpush.xpose.msra.mxu0 0.0
    %1756 = vmatpush.xpose.msra.mxu0 0.0
    %1757 = vmatpush.xpose.msra.mxu0 0.0
    %1758 = vmatpush.xpose.msra.mxu0 0.0
    %1759 = vmatpush.xpose.msra.mxu0 0.0
    %1760 = vmatpush.xpose.msra.mxu0 0.0
    %1761 = vmatpush.xpose.msra.mxu0 0.0
    %1762 = vmatpush.xpose.msra.mxu0 0.0
    %1763 = vmatpush.xpose.msra.mxu0 0.0
    %1764 = vmatpush.xpose.msra.mxu0 0.0
    %1765 = vmatpush.xpose.msra.mxu0 0.0
    %1766 = vmatpush.xpose.msra.mxu0 0.0
    %1767 = vmatpush.xpose.msra.mxu0 0.0
    %1768 = vmatpush.xpose.msra.mxu0 0.0
    %1769 = vmatpush.xpose.msra.mxu0 0.0
    %1770 = vmatpush.xpose.msra.mxu0 %v935
    %1771 = vmatmul.f32.gmra.mxu0 %v1751
    %v1772 = vpop.f32.mrf.mxu0
    %v1773 = vadd.f32 %v1747, %v1772
    %1774 = vdwg.mxu0
    %1775 = vmatpush.xpose.msra.mxu0 0.0
    %1776 = vmatpush.xpose.msra.mxu0 0.0
    %1777 = vmatpush.xpose.msra.mxu0 0.0
    %1778 = vmatpush.xpose.msra.mxu0 0.0
    %1779 = vmatpush.xpose.msra.mxu0 0.0
    %1780 = vmatpush.xpose.msra.mxu0 0.0
    %1781 = vmatpush.xpose.msra.mxu0 0.0
    %1782 = vmatpush.xpose.msra.mxu0 0.0
    %1783 = vmatpush.xpose.msra.mxu0 0.0
    %1784 = vmatpush.xpose.msra.mxu0 0.0
    %1785 = vmatpush.xpose.msra.mxu0 0.0
    %1786 = vmatpush.xpose.msra.mxu0 0.0
    %1787 = vmatpush.xpose.msra.mxu0 0.0
    %1788 = vmatpush.xpose.msra.mxu0 0.0
    %1789 = vmatpush.xpose.msra.mxu0 0.0
    %1790 = vmatpush.xpose.msra.mxu0 %v1039
    %1791 = vmatmul.f32.gmra.mxu0 %v1752
    %v1792 = vpop.f32.mrf.mxu0
    %v1793 = vadd.f32 %v1773, %v1792
    %1794 = vdwg.mxu0
    %v1795 = vsel %vm1320, %v1793, -inf
    %v1796 = vrot.slane %v1795, 4
    %v1797 = vmax.f32 %v1795, %v1796
    %v1798 = vrot.slane %v1797, 2
    %v1799 = vmax.f32 %v1797, %v1798
    %v1800 = vrot.slane %v1799, 1
    %v1801 = vmax.f32 %v1799, %v1800
    %v1802 = vsub.f32 %v1793, %v1801
    %v1803 = vmul.f32 %v1802, 1.442695
    %v1804 = vpow.pop %v1803
    %v1805 = vsel %vm1320, %v1804, 0.0
    %v1806 = vrot.slane %v1805, 4
    %v1807 = vadd.f32 %v1805, %v1806
    %v1808 = vrot.slane %v1807, 2
    %v1809 = vadd.f32 %v1807, %v1808
    %v1810 = vrot.slane %v1809, 1
    %v1811 = vadd.f32 %v1809, %v1810
    %v1812 = vrcp.pop %v1811
    %v1813 = vmul.f32 %v1804, %v1812
    %v1814 = vsel %vm1320, %v1813, -inf
    %v1815 = vrot.slane %v1814, 4
    %v1816 = vmax.f32 %v1814, %v1815
    %v1817 = vrot.slane %v1816, 2
    %v1818 = vmax.f32 %v1816, %v1817
    %v1819 = vrot.slane %v1818, 1
    %v1820 = vmax.f32 %v1818, %v1819
    %v1821 = vsub.f32 %v1813, %v1820
    %v1822 = vmul.f32 %v1821, 1.442695
    %v1823 = vpow.pop %v1822
    %v1824 = vsel %vm1320, %v1823, 0.0
    %v1825 = vrot.slane %v1824, 4
    %v1826 = vadd.f32 %v1824, %v1825
    %v1827 = vrot.slane %v1826, 2
    %v1828 = vadd.f32 %v1826, %v1827
    %v1829 = vrot.slane %v1828, 1
    %v1830 = vadd.f32 %v1828, %v1829
    %v1831 = vrcp.pop %v1830
    %v1832 = vmul.f32 %v1830, %v1831
    %v1833 = vsub.f32 1.0, %v1832
    %v1834 = vmul.f32 %v1831, %v1833
    %v1835 = vadd.f32 %v1831, %v1834
    %vm1836 = vweird.f32 %v1830
    %vm1837 = vweird.f32 %v1831
    %vm1838 = vmor %vm1836, %vm1837
    %v1839 = vsel %vm1838, %v1831, %v1835
    %v1840 = vand.u32 2147483647, %v1830
    %vm1841 = vcmp.eq.f32.partialorder %v1840, 8.507059e+37
    %v1842 = vand.u32 %v1830, 2147483648
    %v1843 = vor.u32 1.1754944e-38, %v1842
    %v1844 = vsel %vm1841, %v1843, %v1839
    %v1845 = vmul.f32 %v1823, %v1844
    %v1846 = vsub.f32 %v1845, %v1266
    %v1847 = vmul.f32 %v1846, 0.125
    %v1848 = vmul.f32 %v1847, %v1813
    %v1849 = vsel %vm1320, %v1848, 0.0
    %v1850 = vrot.slane %v1849, 4
    %v1851 = vadd.f32 %v1849, %v1850
    %v1852 = vrot.slane %v1851, 2
    %v1853 = vadd.f32 %v1851, %v1852
    %v1854 = vrot.slane %v1853, 1
    %v1855 = vadd.f32 %v1853, %v1854
    %v1856 = vsub.f32 %v1847, %v1855
    %v1857 = vmul.f32 %v1813, %v1856
    %v1859 = vsel %vm1384, %v1857, 0
    %1861 = vmatpush.msra.mxu0 0.0
    %1862 = vmatpush.msra.mxu0 0.0
    %1863 = vmatpush.msra.mxu0 0.0
    %1864 = vmatpush.msra.mxu0 0.0
    %1865 = vmatpush.msra.mxu0 0.0
    %1866 = vmatpush.msra.mxu0 0.0
    %1867 = vmatpush.msra.mxu0 0.0
    %1868 = vmatpush.msra.mxu0 0.0
    %1869 = vmatpush.msra.mxu0 0.0
    %1870 = vmatpush.msra.mxu0 0.0
    %1871 = vmatpush.msra.mxu0 0.0
    %1872 = vmatpush.msra.mxu0 0.0
    %1873 = vmatpush.msra.mxu0 0.0
    %1874 = vmatpush.msra.mxu0 0.0
    %1875 = vmatpush.msra.mxu0 0.0
    %1876 = vmatpush.msra.mxu0 %v935
    %1877 = vmatmul.f32.gmra.mxu0 %v1859
    %v1878 = vpop.f32.mrf.mxu0
    %v1879 = vadd.f32 0.0, %v1878
    %1880 = vdwg.mxu0
    %1881 = vmatpush.msra.mxu0 0.0
    %1882 = vmatpush.msra.mxu0 0.0
    %1883 = vmatpush.msra.mxu0 0.0
    %1884 = vmatpush.msra.mxu0 0.0
    %1885 = vmatpush.msra.mxu0 0.0
    %1886 = vmatpush.msra.mxu0 0.0
    %1887 = vmatpush.msra.mxu0 0.0
    %1888 = vmatpush.msra.mxu0 0.0
    %1889 = vmatpush.msra.mxu0 0.0
    %1890 = vmatpush.msra.mxu0 0.0
    %1891 = vmatpush.msra.mxu0 0.0
    %1892 = vmatpush.msra.mxu0 0.0
    %1893 = vmatpush.msra.mxu0 0.0
    %1894 = vmatpush.msra.mxu0 0.0
    %1895 = vmatpush.msra.mxu0 0.0
    %1896 = vmatpush.msra.mxu0 %v1039
    %1897 = vmatmul.f32.gmra.mxu0 %v1859
    %v1898 = vpop.f32.mrf.mxu0
    %v1899 = vadd.f32 0.0, %v1898
    %1900 = vdwg.mxu0
    %v1901 = vsel %vm1320, %v1857, 0.0
    %1902 = vadd.xlane.f32.xlu0 %v1901
    %v1903 = vpop.xlane.xlu0 %1902
    %v1904 = vmul.f32 %v1669, 0.9
    %v1905 = vmul.f32 %v1670, 0.9
    %v1906 = vmul.f32 %v1879, 0.1
    %v1907 = vmul.f32 %v1899, 0.1
    %v1908 = vadd.f32 %v1904, %v1906
    %v1909 = vadd.f32 %v1905, %v1907
    %v1910 = vmul.f32 %v1677, 0.999
    %v1911 = vmul.f32 %v1678, 0.999
    %v1912 = vmul.f32 %v1879, 0.001
    %v1913 = vmul.f32 %v1899, 0.001
    %v1914 = vmul.f32 %v1912, %v1879
    %v1915 = vmul.f32 %v1913, %v1899
    %v1916 = vadd.f32 %v1910, %v1914
    %v1917 = vadd.f32 %v1911, %v1915
    %v1918 = vmul.f32 %v1681, 0.9
    %v1919 = vmul.f32 %v1903, 0.1
    %v1920 = vadd.f32 %v1918, %v1919
    %v1921 = vmul.f32 %v1685, 0.999
    %v1922 = vmul.f32 %v1903, 0.001
    %v1923 = vmul.f32 %v1922, %v1903
    %v1924 = vadd.f32 %v1921, %v1923
    %v1925 = vmul.f32 %v1908, 0.003690037
    %v1926 = vmul.f32 %v1909, 0.003690037
    %v1927 = vmul.f32 %v1916, 333.6669
    %v1928 = vmul.f32 %v1917, 333.6669
    %v1929 = vrsqrt.pop %v1927
    %v1930 = vmul.f32 %v1929, %v1927
    %v1931 = vmul.f32 %v1930, %v1929
    %v1932 = vmul.f32 0.5, %v1931
    %v1933 = vsub.f32 1.5, %v1932
    %v1934 = vmul.f32 %v1929, %v1933
    %v1935 = vmul.f32 %v1927, %v1934
    %vm1936 = vcmp.eq.f32.partialorder %v1927, inf
    %v1937 = vsel %vm1936, %v1927, %v1935
    %vm1938 = vcmp.eq.f32.partialorder %v1927, 0.0
    %v1939 = vand.u32 %v1927, 2147483648
    %v1940 = vsel %vm1938, %v1939, %v1937
    %v1941 = vrsqrt.pop %v1928
    %v1942 = vmul.f32 %v1941, %v1928
    %v1943 = vmul.f32 %v1942, %v1941
    %v1944 = vmul.f32 0.5, %v1943
    %v1945 = vsub.f32 1.5, %v1944
    %v1946 = vmul.f32 %v1941, %v1945
    %v1947 = vmul.f32 %v1928, %v1946
    %vm1948 = vcmp.eq.f32.partialorder %v1928, inf
    %v1949 = vsel %vm1948, %v1928, %v1947
    %vm1950 = vcmp.eq.f32.partialorder %v1928, 0.0
    %v1951 = vand.u32 %v1928, 2147483648
    %v1952 = vsel %vm1950, %v1951, %v1949
    %v1953 = vadd.f32 %v1940, 1e-08
    %v1954 = vadd.f32 %v1952, 1e-08
    %v1955 = vrcp.pop %v1953
    %v1956 = vrcp.pop %v1954
    %v1957 = vmul.f32 %v1925, %v1955
    %v1958 = vmul.f32 %v1926, %v1956
    %v1961 = vrot.slane %v1958, 4
    %v1962 = vsel %vm1483, %v1957, %v1961
    %v1964 = vsub.f32 %v1725, %v1962
    %v1965 = vmul.f32 %v1920, 0.003690037
    %v1966 = vmul.f32 %v1924, 333.6669
    %v1967 = vrsqrt.pop %v1966
    %v1968 = vmul.f32 %v1967, %v1966
    %v1969 = vmul.f32 %v1968, %v1967
    %v1970 = vmul.f32 0.5, %v1969
    %v1971 = vsub.f32 1.5, %v1970
    %v1972 = vmul.f32 %v1967, %v1971
    %v1973 = vmul.f32 %v1966, %v1972
    %vm1974 = vcmp.eq.f32.partialorder %v1966, inf
    %v1975 = vsel %vm1974, %v1966, %v1973
    %vm1976 = vcmp.eq.f32.partialorder %v1966, 0.0
    %v1977 = vand.u32 %v1966, 2147483648
    %v1978 = vsel %vm1976, %v1977, %v1975
    %v1979 = vadd.f32 %v1978, 1e-08
    %v1980 = vrcp.pop %v1979
    %v1981 = vmul.f32 %v1965, %v1980
    %v1982 = vsub.f32 %v1743, %v1981
    %1984 = vset.pattern.permute.xlu0 0
    %1985 = vperm.xlu0 %1984, %v1982
    %v1986 = vpop.permute.xlu0 %1985
    %1989 = vst [vmem:[#allocation1] ss:$2 sm:$0xff] %v1964
    %v1990 = vld.sshfl [vmem:[#allocation1] sm:$0xff pattern:$0x75316420]
    %v1991 = vld.sshfl [vmem:[#allocation1 + $0x8] sm:$0xff pattern:$0x75316420]
    %1994 = vmatpush.xpose.msra.mxu0 0.0
    %1995 = vmatpush.xpose.msra.mxu0 0.0
    %1996 = vmatpush.xpose.msra.mxu0 0.0
    %1997 = vmatpush.xpose.msra.mxu0 0.0
    %1998 = vmatpush.xpose.msra.mxu0 0.0
    %1999 = vmatpush.xpose.msra.mxu0 0.0
    %2000 = vmatpush.xpose.msra.mxu0 0.0
    %2001 = vmatpush.xpose.msra.mxu0 0.0
    %2002 = vmatpush.xpose.msra.mxu0 0.0
    %2003 = vmatpush.xpose.msra.mxu0 0.0
    %2004 = vmatpush.xpose.msra.mxu0 0.0
    %2005 = vmatpush.xpose.msra.mxu0 0.0
    %2006 = vmatpush.xpose.msra.mxu0 0.0
    %2007 = vmatpush.xpose.msra.mxu0 0.0
    %2008 = vmatpush.xpose.msra.mxu0 0.0
    %2009 = vmatpush.xpose.msra.mxu0 %v935
    %2010 = vmatmul.f32.gmra.mxu0 %v1990
    %v2011 = vpop.f32.mrf.mxu0
    %v2012 = vadd.f32 %v1986, %v2011
    %2013 = vdwg.mxu0
    %2014 = vmatpush.xpose.msra.mxu0 0.0
    %2015 = vmatpush.xpose.msra.mxu0 0.0
    %2016 = vmatpush.xpose.msra.mxu0 0.0
    %2017 = vmatpush.xpose.msra.mxu0 0.0
    %2018 = vmatpush.xpose.msra.mxu0 0.0
    %2019 = vmatpush.xpose.msra.mxu0 0.0
    %2020 = vmatpush.xpose.msra.mxu0 0.0
    %2021 = vmatpush.xpose.msra.mxu0 0.0
    %2022 = vmatpush.xpose.msra.mxu0 0.0
    %2023 = vmatpush.xpose.msra.mxu0 0.0
    %2024 = vmatpush.xpose.msra.mxu0 0.0
    %2025 = vmatpush.xpose.msra.mxu0 0.0
    %2026 = vmatpush.xpose.msra.mxu0 0.0
    %2027 = vmatpush.xpose.msra.mxu0 0.0
    %2028 = vmatpush.xpose.msra.mxu0 0.0
    %2029 = vmatpush.xpose.msra.mxu0 %v1039
    %2030 = vmatmul.f32.gmra.mxu0 %v1991
    %v2031 = vpop.f32.mrf.mxu0
    %v2032 = vadd.f32 %v2012, %v2031
    %2033 = vdwg.mxu0
    %v2034 = vsel %vm1320, %v2032, -inf
    %v2035 = vrot.slane %v2034, 4
    %v2036 = vmax.f32 %v2034, %v2035
    %v2037 = vrot.slane %v2036, 2
    %v2038 = vmax.f32 %v2036, %v2037
    %v2039 = vrot.slane %v2038, 1
    %v2040 = vmax.f32 %v2038, %v2039
    %v2041 = vsub.f32 %v2032, %v2040
    %v2042 = vmul.f32 %v2041, 1.442695
    %v2043 = vpow.pop %v2042
    %v2044 = vsel %vm1320, %v2043, 0.0
    %v2045 = vrot.slane %v2044, 4
    %v2046 = vadd.f32 %v2044, %v2045
    %v2047 = vrot.slane %v2046, 2
    %v2048 = vadd.f32 %v2046, %v2047
    %v2049 = vrot.slane %v2048, 1
    %v2050 = vadd.f32 %v2048, %v2049
    %v2051 = vrcp.pop %v2050
    %v2052 = vmul.f32 %v2043, %v2051
    %v2053 = vsel %vm1320, %v2052, -inf
    %v2054 = vrot.slane %v2053, 4
    %v2055 = vmax.f32 %v2053, %v2054
    %v2056 = vrot.slane %v2055, 2
    %v2057 = vmax.f32 %v2055, %v2056
    %v2058 = vrot.slane %v2057, 1
    %v2059 = vmax.f32 %v2057, %v2058
    %v2060 = vsub.f32 %v2052, %v2059
    %v2061 = vmul.f32 %v2060, 1.442695
    %v2062 = vpow.pop %v2061
    %v2063 = vsel %vm1320, %v2062, 0.0
    %v2064 = vrot.slane %v2063, 4
    %v2065 = vadd.f32 %v2063, %v2064
    %v2066 = vrot.slane %v2065, 2
    %v2067 = vadd.f32 %v2065, %v2066
    %v2068 = vrot.slane %v2067, 1
    %v2069 = vadd.f32 %v2067, %v2068
    %v2070 = vrcp.pop %v2069
    %v2071 = vmul.f32 %v2069, %v2070
    %v2072 = vsub.f32 1.0, %v2071
    %v2073 = vmul.f32 %v2070, %v2072
    %v2074 = vadd.f32 %v2070, %v2073
    %vm2075 = vweird.f32 %v2069
    %vm2076 = vweird.f32 %v2070
    %vm2077 = vmor %vm2075, %vm2076
    %v2078 = vsel %vm2077, %v2070, %v2074
    %v2079 = vand.u32 2147483647, %v2069
    %vm2080 = vcmp.eq.f32.partialorder %v2079, 8.507059e+37
    %v2081 = vand.u32 %v2069, 2147483648
    %v2082 = vor.u32 1.1754944e-38, %v2081
    %v2083 = vsel %vm2080, %v2082, %v2078
    %v2084 = vmul.f32 %v2062, %v2083
    %v2085 = vsub.f32 %v2084, %v1266
    %v2086 = vmul.f32 %v2085, 0.125
    %v2087 = vmul.f32 %v2086, %v2052
    %v2088 = vsel %vm1320, %v2087, 0.0
    %v2089 = vrot.slane %v2088, 4
    %v2090 = vadd.f32 %v2088, %v2089
    %v2091 = vrot.slane %v2090, 2
    %v2092 = vadd.f32 %v2090, %v2091
    %v2093 = vrot.slane %v2092, 1
    %v2094 = vadd.f32 %v2092, %v2093
    %v2095 = vsub.f32 %v2086, %v2094
    %v2096 = vmul.f32 %v2052, %v2095
    %v2098 = vsel %vm1384, %v2096, 0
    %2100 = vmatpush.msra.mxu0 0.0
    %2101 = vmatpush.msra.mxu0 0.0
    %2102 = vmatpush.msra.mxu0 0.0
    %2103 = vmatpush.msra.mxu0 0.0
    %2104 = vmatpush.msra.mxu0 0.0
    %2105 = vmatpush.msra.mxu0 0.0
    %2106 = vmatpush.msra.mxu0 0.0
    %2107 = vmatpush.msra.mxu0 0.0
    %2108 = vmatpush.msra.mxu0 0.0
    %2109 = vmatpush.msra.mxu0 0.0
    %2110 = vmatpush.msra.mxu0 0.0
    %2111 = vmatpush.msra.mxu0 0.0
    %2112 = vmatpush.msra.mxu0 0.0
    %2113 = vmatpush.msra.mxu0 0.0
    %2114 = vmatpush.msra.mxu0 0.0
    %2115 = vmatpush.msra.mxu0 %v935
    %2116 = vmatmul.f32.gmra.mxu0 %v2098
    %v2117 = vpop.f32.mrf.mxu0
    %v2118 = vadd.f32 0.0, %v2117
    %2119 = vdwg.mxu0
    %2120 = vmatpush.msra.mxu0 0.0
    %2121 = vmatpush.msra.mxu0 0.0
    %2122 = vmatpush.msra.mxu0 0.0
    %2123 = vmatpush.msra.mxu0 0.0
    %2124 = vmatpush.msra.mxu0 0.0
    %2125 = vmatpush.msra.mxu0 0.0
    %2126 = vmatpush.msra.mxu0 0.0
    %2127 = vmatpush.msra.mxu0 0.0
    %2128 = vmatpush.msra.mxu0 0.0
    %2129 = vmatpush.msra.mxu0 0.0
    %2130 = vmatpush.msra.mxu0 0.0
    %2131 = vmatpush.msra.mxu0 0.0
    %2132 = vmatpush.msra.mxu0 0.0
    %2133 = vmatpush.msra.mxu0 0.0
    %2134 = vmatpush.msra.mxu0 0.0
    %2135 = vmatpush.msra.mxu0 %v1039
    %2136 = vmatmul.f32.gmra.mxu0 %v2098
    %v2137 = vpop.f32.mrf.mxu0
    %v2138 = vadd.f32 0.0, %v2137
    %2139 = vdwg.mxu0
    %v2140 = vsel %vm1320, %v2096, 0.0
    %2141 = vadd.xlane.f32.xlu0 %v2140
    %v2142 = vpop.xlane.xlu0 %2141
    %v2143 = vmul.f32 %v1908, 0.9
    %v2144 = vmul.f32 %v1909, 0.9
    %v2145 = vmul.f32 %v2118, 0.1
    %v2146 = vmul.f32 %v2138, 0.1
    %v2147 = vadd.f32 %v2143, %v2145
    %v2148 = vadd.f32 %v2144, %v2146
    %v2149 = vmul.f32 %v1916, 0.999
    %v2150 = vmul.f32 %v1917, 0.999
    %v2151 = vmul.f32 %v2118, 0.001
    %v2152 = vmul.f32 %v2138, 0.001
    %v2153 = vmul.f32 %v2151, %v2118
    %v2154 = vmul.f32 %v2152, %v2138
    %v2155 = vadd.f32 %v2149, %v2153
    %v2156 = vadd.f32 %v2150, %v2154
    %v2157 = vmul.f32 %v1920, 0.9
    %v2158 = vmul.f32 %v2142, 0.1
    %v2159 = vadd.f32 %v2157, %v2158
    %v2160 = vmul.f32 %v1924, 0.999
    %v2161 = vmul.f32 %v2142, 0.001
    %v2162 = vmul.f32 %v2161, %v2142
    %v2163 = vadd.f32 %v2160, %v2162
    %v2164 = vmul.f32 %v2147, 0.0029078221
    %v2165 = vmul.f32 %v2148, 0.0029078221
    %v2166 = vmul.f32 %v2155, 250.3753
    %v2167 = vmul.f32 %v2156, 250.3753
    %v2168 = vrsqrt.pop %v2166
    %v2169 = vmul.f32 %v2168, %v2166
    %v2170 = vmul.f32 %v2169, %v2168
    %v2171 = vmul.f32 0.5, %v2170
    %v2172 = vsub.f32 1.5, %v2171
    %v2173 = vmul.f32 %v2168, %v2172
    %v2174 = vmul.f32 %v2166, %v2173
    %vm2175 = vcmp.eq.f32.partialorder %v2166, inf
    %v2176 = vsel %vm2175, %v2166, %v2174
    %vm2177 = vcmp.eq.f32.partialorder %v2166, 0.0
    %v2178 = vand.u32 %v2166, 2147483648
    %v2179 = vsel %vm2177, %v2178, %v2176
    %v2180 = vrsqrt.pop %v2167
    %v2181 = vmul.f32 %v2180, %v2167
    %v2182 = vmul.f32 %v2181, %v2180
    %v2183 = vmul.f32 0.5, %v2182
    %v2184 = vsub.f32 1.5, %v2183
    %v2185 = vmul.f32 %v2180, %v2184
    %v2186 = vmul.f32 %v2167, %v2185
    %vm2187 = vcmp.eq.f32.partialorder %v2167, inf
    %v2188 = vsel %vm2187, %v2167, %v2186
    %vm2189 = vcmp.eq.f32.partialorder %v2167, 0.0
    %v2190 = vand.u32 %v2167, 2147483648
    %v2191 = vsel %vm2189, %v2190, %v2188
    %v2192 = vadd.f32 %v2179, 1e-08
    %v2193 = vadd.f32 %v2191, 1e-08
    %v2194 = vrcp.pop %v2192
    %v2195 = vrcp.pop %v2193
    %v2196 = vmul.f32 %v2164, %v2194
    %v2197 = vmul.f32 %v2165, %v2195
    %v2200 = vrot.slane %v2197, 4
    %v2201 = vsel %vm1483, %v2196, %v2200
    %v2203 = vsub.f32 %v1964, %v2201
    %v2204 = vmul.f32 %v2159, 0.0029078221
    %v2205 = vmul.f32 %v2163, 250.3753
    %v2206 = vrsqrt.pop %v2205
    %v2207 = vmul.f32 %v2206, %v2205
    %v2208 = vmul.f32 %v2207, %v2206
    %v2209 = vmul.f32 0.5, %v2208
    %v2210 = vsub.f32 1.5, %v2209
    %v2211 = vmul.f32 %v2206, %v2210
    %v2212 = vmul.f32 %v2205, %v2211
    %vm2213 = vcmp.eq.f32.partialorder %v2205, inf
    %v2214 = vsel %vm2213, %v2205, %v2212
    %vm2215 = vcmp.eq.f32.partialorder %v2205, 0.0
    %v2216 = vand.u32 %v2205, 2147483648
    %v2217 = vsel %vm2215, %v2216, %v2214
    %v2218 = vadd.f32 %v2217, 1e-08
    %v2219 = vrcp.pop %v2218
    %v2220 = vmul.f32 %v2204, %v2219
    %v2221 = vsub.f32 %v1982, %v2220
    %2223 = vset.pattern.permute.xlu0 0
    %2224 = vperm.xlu0 %2223, %v2221
    %v2225 = vpop.permute.xlu0 %2224
    %2228 = vst [vmem:[#allocation1] ss:$2 sm:$0xff] %v2203
    %v2229 = vld.sshfl [vmem:[#allocation1] sm:$0xff pattern:$0x75316420]
    %v2230 = vld.sshfl [vmem:[#allocation1 + $0x8] sm:$0xff pattern:$0x75316420]
    %2233 = vmatpush.xpose.msra.mxu0 0.0
    %2234 = vmatpush.xpose.msra.mxu0 0.0
    %2235 = vmatpush.xpose.msra.mxu0 0.0
    %2236 = vmatpush.xpose.msra.mxu0 0.0
    %2237 = vmatpush.xpose.msra.mxu0 0.0
    %2238 = vmatpush.xpose.msra.mxu0 0.0
    %2239 = vmatpush.xpose.msra.mxu0 0.0
    %2240 = vmatpush.xpose.msra.mxu0 0.0
    %2241 = vmatpush.xpose.msra.mxu0 0.0
    %2242 = vmatpush.xpose.msra.mxu0 0.0
    %2243 = vmatpush.xpose.msra.mxu0 0.0
    %2244 = vmatpush.xpose.msra.mxu0 0.0
    %2245 = vmatpush.xpose.msra.mxu0 0.0
    %2246 = vmatpush.xpose.msra.mxu0 0.0
    %2247 = vmatpush.xpose.msra.mxu0 0.0
    %2248 = vmatpush.xpose.msra.mxu0 %v935
    %2249 = vmatmul.f32.gmra.mxu0 %v2229
    %v2250 = vpop.f32.mrf.mxu0
    %v2251 = vadd.f32 %v2225, %v2250
    %2252 = vdwg.mxu0
    %2253 = vmatpush.xpose.msra.mxu0 0.0
    %2254 = vmatpush.xpose.msra.mxu0 0.0
    %2255 = vmatpush.xpose.msra.mxu0 0.0
    %2256 = vmatpush.xpose.msra.mxu0 0.0
    %2257 = vmatpush.xpose.msra.mxu0 0.0
    %2258 = vmatpush.xpose.msra.mxu0 0.0
    %2259 = vmatpush.xpose.msra.mxu0 0.0
    %2260 = vmatpush.xpose.msra.mxu0 0.0
    %2261 = vmatpush.xpose.msra.mxu0 0.0
    %2262 = vmatpush.xpose.msra.mxu0 0.0
    %2263 = vmatpush.xpose.msra.mxu0 0.0
    %2264 = vmatpush.xpose.msra.mxu0 0.0
    %2265 = vmatpush.xpose.msra.mxu0 0.0
    %2266 = vmatpush.xpose.msra.mxu0 0.0
    %2267 = vmatpush.xpose.msra.mxu0 0.0
    %2268 = vmatpush.xpose.msra.mxu0 %v1039
    %2269 = vmatmul.f32.gmra.mxu0 %v2230
    %v2270 = vpop.f32.mrf.mxu0
    %v2271 = vadd.f32 %v2251, %v2270
    %2272 = vdwg.mxu0
    %v2273 = vsel %vm1320, %v2271, -inf
    %v2274 = vrot.slane %v2273, 4
    %v2275 = vmax.f32 %v2273, %v2274
    %v2276 = vrot.slane %v2275, 2
    %v2277 = vmax.f32 %v2275, %v2276
    %v2278 = vrot.slane %v2277, 1
    %v2279 = vmax.f32 %v2277, %v2278
    %v2280 = vsub.f32 %v2271, %v2279
    %v2281 = vmul.f32 %v2280, 1.442695
    %v2282 = vpow.pop %v2281
    %v2283 = vsel %vm1320, %v2282, 0.0
    %v2284 = vrot.slane %v2283, 4
    %v2285 = vadd.f32 %v2283, %v2284
    %v2286 = vrot.slane %v2285, 2
    %v2287 = vadd.f32 %v2285, %v2286
    %v2288 = vrot.slane %v2287, 1
    %v2289 = vadd.f32 %v2287, %v2288
    %v2290 = vrcp.pop %v2289
    %v2291 = vmul.f32 %v2282, %v2290
    %v2292 = vsel %vm1320, %v2291, -inf
    %v2293 = vrot.slane %v2292, 4
    %v2294 = vmax.f32 %v2292, %v2293
    %v2295 = vrot.slane %v2294, 2
    %v2296 = vmax.f32 %v2294, %v2295
    %v2297 = vrot.slane %v2296, 1
    %v2298 = vmax.f32 %v2296, %v2297
    %v2299 = vsub.f32 %v2291, %v2298
    %v2300 = vmul.f32 %v2299, 1.442695
    %v2301 = vpow.pop %v2300
    %v2302 = vsel %vm1320, %v2301, 0.0
    %v2303 = vrot.slane %v2302, 4
    %v2304 = vadd.f32 %v2302, %v2303
    %v2305 = vrot.slane %v2304, 2
    %v2306 = vadd.f32 %v2304, %v2305
    %v2307 = vrot.slane %v2306, 1
    %v2308 = vadd.f32 %v2306, %v2307
    %v2309 = vrcp.pop %v2308
    %v2310 = vmul.f32 %v2308, %v2309
    %v2311 = vsub.f32 1.0, %v2310
    %v2312 = vmul.f32 %v2309, %v2311
    %v2313 = vadd.f32 %v2309, %v2312
    %vm2314 = vweird.f32 %v2308
    %vm2315 = vweird.f32 %v2309
    %vm2316 = vmor %vm2314, %vm2315
    %v2317 = vsel %vm2316, %v2309, %v2313
    %v2318 = vand.u32 2147483647, %v2308
    %vm2319 = vcmp.eq.f32.partialorder %v2318, 8.507059e+37
    %v2320 = vand.u32 %v2308, 2147483648
    %v2321 = vor.u32 1.1754944e-38, %v2320
    %v2322 = vsel %vm2319, %v2321, %v2317
    %v2323 = vmul.f32 %v2301, %v2322
    %v2324 = vsub.f32 %v2323, %v1266
    %v2325 = vmul.f32 %v2324, 0.125
    %v2326 = vmul.f32 %v2325, %v2291
    %v2327 = vsel %vm1320, %v2326, 0.0
    %v2328 = vrot.slane %v2327, 4
    %v2329 = vadd.f32 %v2327, %v2328
    %v2330 = vrot.slane %v2329, 2
    %v2331 = vadd.f32 %v2329, %v2330
    %v2332 = vrot.slane %v2331, 1
    %v2333 = vadd.f32 %v2331, %v2332
    %v2334 = vsub.f32 %v2325, %v2333
    %v2335 = vmul.f32 %v2291, %v2334
    %v2337 = vsel %vm1384, %v2335, 0
    %2339 = vmatpush.msra.mxu0 0.0
    %2340 = vmatpush.msra.mxu0 0.0
    %2341 = vmatpush.msra.mxu0 0.0
    %2342 = vmatpush.msra.mxu0 0.0
    %2343 = vmatpush.msra.mxu0 0.0
    %2344 = vmatpush.msra.mxu0 0.0
    %2345 = vmatpush.msra.mxu0 0.0
    %2346 = vmatpush.msra.mxu0 0.0
    %2347 = vmatpush.msra.mxu0 0.0
    %2348 = vmatpush.msra.mxu0 0.0
    %2349 = vmatpush.msra.mxu0 0.0
    %2350 = vmatpush.msra.mxu0 0.0
    %2351 = vmatpush.msra.mxu0 0.0
    %2352 = vmatpush.msra.mxu0 0.0
    %2353 = vmatpush.msra.mxu0 0.0
    %2354 = vmatpush.msra.mxu0 %v935
    %2355 = vmatmul.f32.gmra.mxu0 %v2337
    %v2356 = vpop.f32.mrf.mxu0
    %v2357 = vadd.f32 0.0, %v2356
    %2358 = vdwg.mxu0
    %2359 = vmatpush.msra.mxu0 0.0
    %2360 = vmatpush.msra.mxu0 0.0
    %2361 = vmatpush.msra.mxu0 0.0
    %2362 = vmatpush.msra.mxu0 0.0
    %2363 = vmatpush.msra.mxu0 0.0
    %2364 = vmatpush.msra.mxu0 0.0
    %2365 = vmatpush.msra.mxu0 0.0
    %2366 = vmatpush.msra.mxu0 0.0
    %2367 = vmatpush.msra.mxu0 0.0
    %2368 = vmatpush.msra.mxu0 0.0
    %2369 = vmatpush.msra.mxu0 0.0
    %2370 = vmatpush.msra.mxu0 0.0
    %2371 = vmatpush.msra.mxu0 0.0
    %2372 = vmatpush.msra.mxu0 0.0
    %2373 = vmatpush.msra.mxu0 0.0
    %2374 = vmatpush.msra.mxu0 %v1039
    %2375 = vmatmul.f32.gmra.mxu0 %v2337
    %v2376 = vpop.f32.mrf.mxu0
    %v2377 = vadd.f32 0.0, %v2376
    %2378 = vdwg.mxu0
    %v2379 = vsel %vm1320, %v2335, 0.0
    %2380 = vadd.xlane.f32.xlu0 %v2379
    %v2381 = vpop.xlane.xlu0 %2380
    %v2382 = vmul.f32 %v2147, 0.9
    %v2383 = vmul.f32 %v2148, 0.9
    %v2384 = vmul.f32 %v2357, 0.1
    %v2385 = vmul.f32 %v2377, 0.1
    %v2386 = vadd.f32 %v2382, %v2384
    %v2387 = vadd.f32 %v2383, %v2385
    %v2388 = vmul.f32 %v2155, 0.999
    %v2389 = vmul.f32 %v2156, 0.999
    %v2390 = vmul.f32 %v2357, 0.001
    %v2391 = vmul.f32 %v2377, 0.001
    %v2392 = vmul.f32 %v2390, %v2357
    %v2393 = vmul.f32 %v2391, %v2377
    %v2394 = vadd.f32 %v2388, %v2392
    %v2395 = vadd.f32 %v2389, %v2393
    %v2396 = vmul.f32 %v2159, 0.9
    %v2397 = vmul.f32 %v2381, 0.1
    %v2398 = vadd.f32 %v2396, %v2397
    %v2399 = vmul.f32 %v2163, 0.999
    %v2400 = vmul.f32 %v2381, 0.001
    %v2401 = vmul.f32 %v2400, %v2381
    %v2402 = vadd.f32 %v2399, %v2401
    %v2403 = vmul.f32 %v2386, 0.002441943
    %v2404 = vmul.f32 %v2387, 0.002441943
    %v2405 = vmul.f32 %v2394, 200.4004
    %v2406 = vmul.f32 %v2395, 200.4004
    %v2407 = vrsqrt.pop %v2405
    %v2408 = vmul.f32 %v2407, %v2405
    %v2409 = vmul.f32 %v2408, %v2407
    %v2410 = vmul.f32 0.5, %v2409
    %v2411 = vsub.f32 1.5, %v2410
    %v2412 = vmul.f32 %v2407, %v2411
    %v2413 = vmul.f32 %v2405, %v2412
    %vm2414 = vcmp.eq.f32.partialorder %v2405, inf
    %v2415 = vsel %vm2414, %v2405, %v2413
    %vm2416 = vcmp.eq.f32.partialorder %v2405, 0.0
    %v2417 = vand.u32 %v2405, 2147483648
    %v2418 = vsel %vm2416, %v2417, %v2415
    %v2419 = vrsqrt.pop %v2406
    %v2420 = vmul.f32 %v2419, %v2406
    %v2421 = vmul.f32 %v2420, %v2419
    %v2422 = vmul.f32 0.5, %v2421
    %v2423 = vsub.f32 1.5, %v2422
    %v2424 = vmul.f32 %v2419, %v2423
    %v2425 = vmul.f32 %v2406, %v2424
    %vm2426 = vcmp.eq.f32.partialorder %v2406, inf
    %v2427 = vsel %vm2426, %v2406, %v2425
    %vm2428 = vcmp.eq.f32.partialorder %v2406, 0.0
    %v2429 = vand.u32 %v2406, 2147483648
    %v2430 = vsel %vm2428, %v2429, %v2427
    %v2431 = vadd.f32 %v2418, 1e-08
    %v2432 = vadd.f32 %v2430, 1e-08
    %v2433 = vrcp.pop %v2431
    %v2434 = vrcp.pop %v2432
    %v2435 = vmul.f32 %v2403, %v2433
    %v2436 = vmul.f32 %v2404, %v2434
    %v2439 = vrot.slane %v2436, 4
    %v2440 = vsel %vm1483, %v2435, %v2439
    %v2442 = vsub.f32 %v2203, %v2440
    %v2443 = vmul.f32 %v2398, 0.002441943
    %v2444 = vmul.f32 %v2402, 200.4004
    %v2445 = vrsqrt.pop %v2444
    %v2446 = vmul.f32 %v2445, %v2444
    %v2447 = vmul.f32 %v2446, %v2445
    %v2448 = vmul.f32 0.5, %v2447
    %v2449 = vsub.f32 1.5, %v2448
    %v2450 = vmul.f32 %v2445, %v2449
    %v2451 = vmul.f32 %v2444, %v2450
    %vm2452 = vcmp.eq.f32.partialorder %v2444, inf
    %v2453 = vsel %vm2452, %v2444, %v2451
    %vm2454 = vcmp.eq.f32.partialorder %v2444, 0.0
    %v2455 = vand.u32 %v2444, 2147483648
    %v2456 = vsel %vm2454, %v2455, %v2453
    %v2457 = vadd.f32 %v2456, 1e-08
    %v2458 = vrcp.pop %v2457
    %v2459 = vmul.f32 %v2443, %v2458
    %v2460 = vsub.f32 %v2221, %v2459
    %2462 = vset.pattern.permute.xlu0 0
    %2463 = vperm.xlu0 %2462, %v2460
    %v2464 = vpop.permute.xlu0 %2463
    %2467 = vst [vmem:[#allocation1] ss:$2 sm:$0xff] %v2442
    %v2468 = vld.sshfl [vmem:[#allocation1] sm:$0xff pattern:$0x75316420]
    %v2469 = vld.sshfl [vmem:[#allocation1 + $0x8] sm:$0xff pattern:$0x75316420]
    %2472 = vmatpush.xpose.msra.mxu0 0.0
    %2473 = vmatpush.xpose.msra.mxu0 0.0
    %2474 = vmatpush.xpose.msra.mxu0 0.0
    %2475 = vmatpush.xpose.msra.mxu0 0.0
    %2476 = vmatpush.xpose.msra.mxu0 0.0
    %2477 = vmatpush.xpose.msra.mxu0 0.0
    %2478 = vmatpush.xpose.msra.mxu0 0.0
    %2479 = vmatpush.xpose.msra.mxu0 0.0
    %2480 = vmatpush.xpose.msra.mxu0 0.0
    %2481 = vmatpush.xpose.msra.mxu0 0.0
    %2482 = vmatpush.xpose.msra.mxu0 0.0
    %2483 = vmatpush.xpose.msra.mxu0 0.0
    %2484 = vmatpush.xpose.msra.mxu0 0.0
    %2485 = vmatpush.xpose.msra.mxu0 0.0
    %2486 = vmatpush.xpose.msra.mxu0 0.0
    %2487 = vmatpush.xpose.msra.mxu0 %v935
    %2488 = vmatmul.f32.gmra.mxu0 %v2468
    %v2489 = vpop.f32.mrf.mxu0
    %v2490 = vadd.f32 %v2464, %v2489
    %2491 = vdwg.mxu0
    %2492 = vmatpush.xpose.msra.mxu0 0.0
    %2493 = vmatpush.xpose.msra.mxu0 0.0
    %2494 = vmatpush.xpose.msra.mxu0 0.0
    %2495 = vmatpush.xpose.msra.mxu0 0.0
    %2496 = vmatpush.xpose.msra.mxu0 0.0
    %2497 = vmatpush.xpose.msra.mxu0 0.0
    %2498 = vmatpush.xpose.msra.mxu0 0.0
    %2499 = vmatpush.xpose.msra.mxu0 0.0
    %2500 = vmatpush.xpose.msra.mxu0 0.0
    %2501 = vmatpush.xpose.msra.mxu0 0.0
    %2502 = vmatpush.xpose.msra.mxu0 0.0
    %2503 = vmatpush.xpose.msra.mxu0 0.0
    %2504 = vmatpush.xpose.msra.mxu0 0.0
    %2505 = vmatpush.xpose.msra.mxu0 0.0
    %2506 = vmatpush.xpose.msra.mxu0 0.0
    %2507 = vmatpush.xpose.msra.mxu0 %v1039
    %2508 = vmatmul.f32.gmra.mxu0 %v2469
    %v2509 = vpop.f32.mrf.mxu0
    %v2510 = vadd.f32 %v2490, %v2509
    %2511 = vdwg.mxu0
    %v2512 = vsel %vm1320, %v2510, -inf
    %v2513 = vrot.slane %v2512, 4
    %v2514 = vmax.f32 %v2512, %v2513
    %v2515 = vrot.slane %v2514, 2
    %v2516 = vmax.f32 %v2514, %v2515
    %v2517 = vrot.slane %v2516, 1
    %v2518 = vmax.f32 %v2516, %v2517
    %v2519 = vsub.f32 %v2510, %v2518
    %v2520 = vmul.f32 %v2519, 1.442695
    %v2521 = vpow.pop %v2520
    %v2522 = vsel %vm1320, %v2521, 0.0
    %v2523 = vrot.slane %v2522, 4
    %v2524 = vadd.f32 %v2522, %v2523
    %v2525 = vrot.slane %v2524, 2
    %v2526 = vadd.f32 %v2524, %v2525
    %v2527 = vrot.slane %v2526, 1
    %v2528 = vadd.f32 %v2526, %v2527
    %v2529 = vrcp.pop %v2528
    %v2530 = vmul.f32 %v2521, %v2529
    %v2531 = vsel %vm1320, %v2530, -inf
    %v2532 = vrot.slane %v2531, 4
    %v2533 = vmax.f32 %v2531, %v2532
    %v2534 = vrot.slane %v2533, 2
    %v2535 = vmax.f32 %v2533, %v2534
    %v2536 = vrot.slane %v2535, 1
    %v2537 = vmax.f32 %v2535, %v2536
    %v2538 = vsub.f32 %v2530, %v2537
    %v2539 = vmul.f32 %v2538, 1.442695
    %v2540 = vpow.pop %v2539
    %v2541 = vsel %vm1320, %v2540, 0.0
    %v2542 = vrot.slane %v2541, 4
    %v2543 = vadd.f32 %v2541, %v2542
    %v2544 = vrot.slane %v2543, 2
    %v2545 = vadd.f32 %v2543, %v2544
    %v2546 = vrot.slane %v2545, 1
    %v2547 = vadd.f32 %v2545, %v2546
    %v2548 = vrcp.pop %v2547
    %v2549 = vmul.f32 %v2547, %v2548
    %v2550 = vsub.f32 1.0, %v2549
    %v2551 = vmul.f32 %v2548, %v2550
    %v2552 = vadd.f32 %v2548, %v2551
    %vm2553 = vweird.f32 %v2547
    %vm2554 = vweird.f32 %v2548
    %vm2555 = vmor %vm2553, %vm2554
    %v2556 = vsel %vm2555, %v2548, %v2552
    %v2557 = vand.u32 2147483647, %v2547
    %vm2558 = vcmp.eq.f32.partialorder %v2557, 8.507059e+37
    %v2559 = vand.u32 %v2547, 2147483648
    %v2560 = vor.u32 1.1754944e-38, %v2559
    %v2561 = vsel %vm2558, %v2560, %v2556
    %v2562 = vmul.f32 %v2540, %v2561
    %v2563 = vsub.f32 %v2562, %v1266
    %v2564 = vmul.f32 %v2563, 0.125
    %v2565 = vmul.f32 %v2564, %v2530
    %v2566 = vsel %vm1320, %v2565, 0.0
    %v2567 = vrot.slane %v2566, 4
    %v2568 = vadd.f32 %v2566, %v2567
    %v2569 = vrot.slane %v2568, 2
    %v2570 = vadd.f32 %v2568, %v2569
    %v2571 = vrot.slane %v2570, 1
    %v2572 = vadd.f32 %v2570, %v2571
    %v2573 = vsub.f32 %v2564, %v2572
    %v2574 = vmul.f32 %v2530, %v2573
    %v2576 = vsel %vm1384, %v2574, 0
    %2578 = vmatpush.msra.mxu0 0.0
    %2579 = vmatpush.msra.mxu0 0.0
    %2580 = vmatpush.msra.mxu0 0.0
    %2581 = vmatpush.msra.mxu0 0.0
    %2582 = vmatpush.msra.mxu0 0.0
    %2583 = vmatpush.msra.mxu0 0.0
    %2584 = vmatpush.msra.mxu0 0.0
    %2585 = vmatpush.msra.mxu0 0.0
    %2586 = vmatpush.msra.mxu0 0.0
    %2587 = vmatpush.msra.mxu0 0.0
    %2588 = vmatpush.msra.mxu0 0.0
    %2589 = vmatpush.msra.mxu0 0.0
    %2590 = vmatpush.msra.mxu0 0.0
    %2591 = vmatpush.msra.mxu0 0.0
    %2592 = vmatpush.msra.mxu0 0.0
    %2593 = vmatpush.msra.mxu0 %v935
    %2594 = vmatmul.f32.gmra.mxu0 %v2576
    %v2595 = vpop.f32.mrf.mxu0
    %v2596 = vadd.f32 0.0, %v2595
    %2597 = vdwg.mxu0
    %2598 = vmatpush.msra.mxu0 0.0
    %2599 = vmatpush.msra.mxu0 0.0
    %2600 = vmatpush.msra.mxu0 0.0
    %2601 = vmatpush.msra.mxu0 0.0
    %2602 = vmatpush.msra.mxu0 0.0
    %2603 = vmatpush.msra.mxu0 0.0
    %2604 = vmatpush.msra.mxu0 0.0
    %2605 = vmatpush.msra.mxu0 0.0
    %2606 = vmatpush.msra.mxu0 0.0
    %2607 = vmatpush.msra.mxu0 0.0
    %2608 = vmatpush.msra.mxu0 0.0
    %2609 = vmatpush.msra.mxu0 0.0
    %2610 = vmatpush.msra.mxu0 0.0
    %2611 = vmatpush.msra.mxu0 0.0
    %2612 = vmatpush.msra.mxu0 0.0
    %2613 = vmatpush.msra.mxu0 %v1039
    %2614 = vmatmul.f32.gmra.mxu0 %v2576
    %v2615 = vpop.f32.mrf.mxu0
    %v2616 = vadd.f32 0.0, %v2615
    %2617 = vdwg.mxu0
    %v2618 = vsel %vm1320, %v2574, 0.0
    %2619 = vadd.xlane.f32.xlu0 %v2618
    %v2620 = vpop.xlane.xlu0 %2619
    %v2621 = vmul.f32 %v2386, 0.9
    %v2622 = vmul.f32 %v2387, 0.9
    %v2623 = vmul.f32 %v2596, 0.1
    %v2624 = vmul.f32 %v2616, 0.1
    %v2625 = vadd.f32 %v2621, %v2623
    %v2626 = vadd.f32 %v2622, %v2624
    %v2627 = vmul.f32 %v2394, 0.999
    %v2628 = vmul.f32 %v2395, 0.999
    %v2629 = vmul.f32 %v2596, 0.001
    %v2630 = vmul.f32 %v2616, 0.001
    %v2631 = vmul.f32 %v2629, %v2596
    %v2632 = vmul.f32 %v2630, %v2616
    %v2633 = vadd.f32 %v2627, %v2631
    %v2634 = vadd.f32 %v2628, %v2632
    %v2635 = vmul.f32 %v2398, 0.9
    %v2636 = vmul.f32 %v2620, 0.1
    %v2637 = vadd.f32 %v2635, %v2636
    %v2638 = vmul.f32 %v2402, 0.999
    %v2639 = vmul.f32 %v2620, 0.001
    %v2640 = vmul.f32 %v2639, %v2620
    %v2641 = vadd.f32 %v2638, %v2640
    %v2642 = vmul.f32 %v2625, 0.002134203
    %v2643 = vmul.f32 %v2626, 0.002134203
    %v2644 = vmul.f32 %v2633, 167.08382
    %v2645 = vmul.f32 %v2634, 167.08382
    %v2646 = vrsqrt.pop %v2644
    %v2647 = vmul.f32 %v2646, %v2644
    %v2648 = vmul.f32 %v2647, %v2646
    %v2649 = vmul.f32 0.5, %v2648
    %v2650 = vsub.f32 1.5, %v2649
    %v2651 = vmul.f32 %v2646, %v2650
    %v2652 = vmul.f32 %v2644, %v2651
    %vm2653 = vcmp.eq.f32.partialorder %v2644, inf
    %v2654 = vsel %vm2653, %v2644, %v2652
    %vm2655 = vcmp.eq.f32.partialorder %v2644, 0.0
    %v2656 = vand.u32 %v2644, 2147483648
    %v2657 = vsel %vm2655, %v2656, %v2654
    %v2658 = vrsqrt.pop %v2645
    %v2659 = vmul.f32 %v2658, %v2645
    %v2660 = vmul.f32 %v2659, %v2658
    %v2661 = vmul.f32 0.5, %v2660
    %v2662 = vsub.f32 1.5, %v2661
    %v2663 = vmul.f32 %v2658, %v2662
    %v2664 = vmul.f32 %v2645, %v2663
    %vm2665 = vcmp.eq.f32.partialorder %v2645, inf
    %v2666 = vsel %vm2665, %v2645, %v2664
    %vm2667 = vcmp.eq.f32.partialorder %v2645, 0.0
    %v2668 = vand.u32 %v2645, 2147483648
    %v2669 = vsel %vm2667, %v2668, %v2666
    %v2670 = vadd.f32 %v2657, 1e-08
    %v2671 = vadd.f32 %v2669, 1e-08
    %v2672 = vrcp.pop %v2670
    %v2673 = vrcp.pop %v2671
    %v2674 = vmul.f32 %v2642, %v2672
    %v2675 = vmul.f32 %v2643, %v2673
    %v2678 = vrot.slane %v2675, 4
    %v2679 = vsel %vm1483, %v2674, %v2678
    %v2681 = vsub.f32 %v2442, %v2679
    %v2682 = vmul.f32 %v2637, 0.002134203
    %v2683 = vmul.f32 %v2641, 167.08382
    %v2684 = vrsqrt.pop %v2683
    %v2685 = vmul.f32 %v2684, %v2683
    %v2686 = vmul.f32 %v2685, %v2684
    %v2687 = vmul.f32 0.5, %v2686
    %v2688 = vsub.f32 1.5, %v2687
    %v2689 = vmul.f32 %v2684, %v2688
    %v2690 = vmul.f32 %v2683, %v2689
    %vm2691 = vcmp.eq.f32.partialorder %v2683, inf
    %v2692 = vsel %vm2691, %v2683, %v2690
    %vm2693 = vcmp.eq.f32.partialorder %v2683, 0.0
    %v2694 = vand.u32 %v2683, 2147483648
    %v2695 = vsel %vm2693, %v2694, %v2692
    %v2696 = vadd.f32 %v2695, 1e-08
    %v2697 = vrcp.pop %v2696
    %v2698 = vmul.f32 %v2682, %v2697
    %v2699 = vsub.f32 %v2460, %v2698
    %2701 = vset.pattern.permute.xlu0 0
    %2702 = vperm.xlu0 %2701, %v2699
    %v2703 = vpop.permute.xlu0 %2702
    %2706 = vst [vmem:[#allocation1] ss:$2 sm:$0xff] %v2681
    %v2707 = vld.sshfl [vmem:[#allocation1] sm:$0xff pattern:$0x75316420]
    %v2708 = vld.sshfl [vmem:[#allocation1 + $0x8] sm:$0xff pattern:$0x75316420]
    %2711 = vmatpush.xpose.msra.mxu0 0.0
    %2712 = vmatpush.xpose.msra.mxu0 0.0
    %2713 = vmatpush.xpose.msra.mxu0 0.0
    %2714 = vmatpush.xpose.msra.mxu0 0.0
    %2715 = vmatpush.xpose.msra.mxu0 0.0
    %2716 = vmatpush.xpose.msra.mxu0 0.0
    %2717 = vmatpush.xpose.msra.mxu0 0.0
    %2718 = vmatpush.xpose.msra.mxu0 0.0
    %2719 = vmatpush.xpose.msra.mxu0 0.0
    %2720 = vmatpush.xpose.msra.mxu0 0.0
    %2721 = vmatpush.xpose.msra.mxu0 0.0
    %2722 = vmatpush.xpose.msra.mxu0 0.0
    %2723 = vmatpush.xpose.msra.mxu0 0.0
    %2724 = vmatpush.xpose.msra.mxu0 0.0
    %2725 = vmatpush.xpose.msra.mxu0 0.0
    %2726 = vmatpush.xpose.msra.mxu0 %v935
    %2727 = vmatmul.f32.gmra.mxu0 %v2707
    %v2728 = vpop.f32.mrf.mxu0
    %v2729 = vadd.f32 %v2703, %v2728
    %2730 = vdwg.mxu0
    %2731 = vmatpush.xpose.msra.mxu0 0.0
    %2732 = vmatpush.xpose.msra.mxu0 0.0
    %2733 = vmatpush.xpose.msra.mxu0 0.0
    %2734 = vmatpush.xpose.msra.mxu0 0.0
    %2735 = vmatpush.xpose.msra.mxu0 0.0
    %2736 = vmatpush.xpose.msra.mxu0 0.0
    %2737 = vmatpush.xpose.msra.mxu0 0.0
    %2738 = vmatpush.xpose.msra.mxu0 0.0
    %2739 = vmatpush.xpose.msra.mxu0 0.0
    %2740 = vmatpush.xpose.msra.mxu0 0.0
    %2741 = vmatpush.xpose.msra.mxu0 0.0
    %2742 = vmatpush.xpose.msra.mxu0 0.0
    %2743 = vmatpush.xpose.msra.mxu0 0.0
    %2744 = vmatpush.xpose.msra.mxu0 0.0
    %2745 = vmatpush.xpose.msra.mxu0 0.0
    %2746 = vmatpush.xpose.msra.mxu0 %v1039
    %2747 = vmatmul.f32.gmra.mxu0 %v2708
    %v2748 = vpop.f32.mrf.mxu0
    %v2749 = vadd.f32 %v2729, %v2748
    %2750 = vdwg.mxu0
    %v2751 = vsel %vm1320, %v2749, -inf
    %v2752 = vrot.slane %v2751, 4
    %v2753 = vmax.f32 %v2751, %v2752
    %v2754 = vrot.slane %v2753, 2
    %v2755 = vmax.f32 %v2753, %v2754
    %v2756 = vrot.slane %v2755, 1
    %v2757 = vmax.f32 %v2755, %v2756
    %v2758 = vsub.f32 %v2749, %v2757
    %v2759 = vmul.f32 %v2758, 1.442695
    %v2760 = vpow.pop %v2759
    %v2761 = vsel %vm1320, %v2760, 0.0
    %v2762 = vrot.slane %v2761, 4
    %v2763 = vadd.f32 %v2761, %v2762
    %v2764 = vrot.slane %v2763, 2
    %v2765 = vadd.f32 %v2763, %v2764
    %v2766 = vrot.slane %v2765, 1
    %v2767 = vadd.f32 %v2765, %v2766
    %v2768 = vrcp.pop %v2767
    %v2769 = vmul.f32 %v2760, %v2768
    %v2770 = vsel %vm1320, %v2769, -inf
    %v2771 = vrot.slane %v2770, 4
    %v2772 = vmax.f32 %v2770, %v2771
    %v2773 = vrot.slane %v2772, 2
    %v2774 = vmax.f32 %v2772, %v2773
    %v2775 = vrot.slane %v2774, 1
    %v2776 = vmax.f32 %v2774, %v2775
    %v2777 = vsub.f32 %v2769, %v2776
    %v2778 = vmul.f32 %v2777, 1.442695
    %v2779 = vpow.pop %v2778
    %v2780 = vsel %vm1320, %v2779, 0.0
    %v2781 = vrot.slane %v2780, 4
    %v2782 = vadd.f32 %v2780, %v2781
    %v2783 = vrot.slane %v2782, 2
    %v2784 = vadd.f32 %v2782, %v2783
    %v2785 = vrot.slane %v2784, 1
    %v2786 = vadd.f32 %v2784, %v2785
    %v2787 = vrcp.pop %v2786
    %v2788 = vmul.f32 %v2786, %v2787
    %v2789 = vsub.f32 1.0, %v2788
    %v2790 = vmul.f32 %v2787, %v2789
    %v2791 = vadd.f32 %v2787, %v2790
    %vm2792 = vweird.f32 %v2786
    %vm2793 = vweird.f32 %v2787
    %vm2794 = vmor %vm2792, %vm2793
    %v2795 = vsel %vm2794, %v2787, %v2791
    %v2796 = vand.u32 2147483647, %v2786
    %vm2797 = vcmp.eq.f32.partialorder %v2796, 8.507059e+37
    %v2798 = vand.u32 %v2786, 2147483648
    %v2799 = vor.u32 1.1754944e-38, %v2798
    %v2800 = vsel %vm2797, %v2799, %v2795
    %v2801 = vmul.f32 %v2779, %v2800
    %v2802 = vsub.f32 %v2801, %v1266
    %v2803 = vmul.f32 %v2802, 0.125
    %v2804 = vmul.f32 %v2803, %v2769
    %v2805 = vsel %vm1320, %v2804, 0.0
    %v2806 = vrot.slane %v2805, 4
    %v2807 = vadd.f32 %v2805, %v2806
    %v2808 = vrot.slane %v2807, 2
    %v2809 = vadd.f32 %v2807, %v2808
    %v2810 = vrot.slane %v2809, 1
    %v2811 = vadd.f32 %v2809, %v2810
    %v2812 = vsub.f32 %v2803, %v2811
    %v2813 = vmul.f32 %v2769, %v2812
    %v2815 = vsel %vm1384, %v2813, 0
    %2817 = vmatpush.msra.mxu0 0.0
    %2818 = vmatpush.msra.mxu0 0.0
    %2819 = vmatpush.msra.mxu0 0.0
    %2820 = vmatpush.msra.mxu0 0.0
    %2821 = vmatpush.msra.mxu0 0.0
    %2822 = vmatpush.msra.mxu0 0.0
    %2823 = vmatpush.msra.mxu0 0.0
    %2824 = vmatpush.msra.mxu0 0.0
    %2825 = vmatpush.msra.mxu0 0.0
    %2826 = vmatpush.msra.mxu0 0.0
    %2827 = vmatpush.msra.mxu0 0.0
    %2828 = vmatpush.msra.mxu0 0.0
    %2829 = vmatpush.msra.mxu0 0.0
    %2830 = vmatpush.msra.mxu0 0.0
    %2831 = vmatpush.msra.mxu0 0.0
    %2832 = vmatpush.msra.mxu0 %v935
    %2833 = vmatmul.f32.gmra.mxu0 %v2815
    %v2834 = vpop.f32.mrf.mxu0
    %v2835 = vadd.f32 0.0, %v2834
    %2836 = vdwg.mxu0
    %2837 = vmatpush.msra.mxu0 0.0
    %2838 = vmatpush.msra.mxu0 0.0
    %2839 = vmatpush.msra.mxu0 0.0
    %2840 = vmatpush.msra.mxu0 0.0
    %2841 = vmatpush.msra.mxu0 0.0
    %2842 = vmatpush.msra.mxu0 0.0
    %2843 = vmatpush.msra.mxu0 0.0
    %2844 = vmatpush.msra.mxu0 0.0
    %2845 = vmatpush.msra.mxu0 0.0
    %2846 = vmatpush.msra.mxu0 0.0
    %2847 = vmatpush.msra.mxu0 0.0
    %2848 = vmatpush.msra.mxu0 0.0
    %2849 = vmatpush.msra.mxu0 0.0
    %2850 = vmatpush.msra.mxu0 0.0
    %2851 = vmatpush.msra.mxu0 0.0
    %2852 = vmatpush.msra.mxu0 %v1039
    %2853 = vmatmul.f32.gmra.mxu0 %v2815
    %v2854 = vpop.f32.mrf.mxu0
    %v2855 = vadd.f32 0.0, %v2854
    %2856 = vdwg.mxu0
    %v2857 = vsel %vm1320, %v2813, 0.0
    %2858 = vadd.xlane.f32.xlu0 %v2857
    %v2859 = vpop.xlane.xlu0 %2858
    %v2860 = vmul.f32 %v2625, 0.9
    %v2861 = vmul.f32 %v2626, 0.9
    %v2862 = vmul.f32 %v2835, 0.1
    %v2863 = vmul.f32 %v2855, 0.1
    %v2864 = vadd.f32 %v2860, %v2862
    %v2865 = vadd.f32 %v2861, %v2863
    %v2866 = vmul.f32 %v2633, 0.999
    %v2867 = vmul.f32 %v2634, 0.999
    %v2868 = vmul.f32 %v2835, 0.001
    %v2869 = vmul.f32 %v2855, 0.001
    %v2870 = vmul.f32 %v2868, %v2835
    %v2871 = vmul.f32 %v2869, %v2855
    %v2872 = vadd.f32 %v2866, %v2870
    %v2873 = vadd.f32 %v2867, %v2871
    %v2874 = vmul.f32 %v2637, 0.9
    %v2875 = vmul.f32 %v2859, 0.1
    %v2876 = vadd.f32 %v2874, %v2875
    %v2877 = vmul.f32 %v2641, 0.999
    %v2878 = vmul.f32 %v2859, 0.001
    %v2879 = vmul.f32 %v2878, %v2859
    %v2880 = vadd.f32 %v2877, %v2879
    %v2881 = vmul.f32 %v2864, 0.001916799
    %v2882 = vmul.f32 %v2865, 0.001916799
    %v2883 = vmul.f32 %v2872, 143.28629
    %v2884 = vmul.f32 %v2873, 143.28629
    %v2885 = vrsqrt.pop %v2883
    %v2886 = vmul.f32 %v2885, %v2883
    %v2887 = vmul.f32 %v2886, %v2885
    %v2888 = vmul.f32 0.5, %v2887
    %v2889 = vsub.f32 1.5, %v2888
    %v2890 = vmul.f32 %v2885, %v2889
    %v2891 = vmul.f32 %v2883, %v2890
    %vm2892 = vcmp.eq.f32.partialorder %v2883, inf
    %v2893 = vsel %vm2892, %v2883, %v2891
    %vm2894 = vcmp.eq.f32.partialorder %v2883, 0.0
    %v2895 = vand.u32 %v2883, 2147483648
    %v2896 = vsel %vm2894, %v2895, %v2893
    %v2897 = vrsqrt.pop %v2884
    %v2898 = vmul.f32 %v2897, %v2884
    %v2899 = vmul.f32 %v2898, %v2897
    %v2900 = vmul.f32 0.5, %v2899
    %v2901 = vsub.f32 1.5, %v2900
    %v2902 = vmul.f32 %v2897, %v2901
    %v2903 = vmul.f32 %v2884, %v2902
    %vm2904 = vcmp.eq.f32.partialorder %v2884, inf
    %v2905 = vsel %vm2904, %v2884, %v2903
    %vm2906 = vcmp.eq.f32.partialorder %v2884, 0.0
    %v2907 = vand.u32 %v2884, 2147483648
    %v2908 = vsel %vm2906, %v2907, %v2905
    %v2909 = vadd.f32 %v2896, 1e-08
    %v2910 = vadd.f32 %v2908, 1e-08
    %v2911 = vrcp.pop %v2909
    %v2912 = vrcp.pop %v2910
    %v2913 = vmul.f32 %v2881, %v2911
    %v2914 = vmul.f32 %v2882, %v2912
    %v2917 = vrot.slane %v2914, 4
    %v2918 = vsel %vm1483, %v2913, %v2917
    %v2920 = vsub.f32 %v2681, %v2918
    %v2921 = vmul.f32 %v2876, 0.001916799
    %v2922 = vmul.f32 %v2880, 143.28629
    %v2923 = vrsqrt.pop %v2922
    %v2924 = vmul.f32 %v2923, %v2922
    %v2925 = vmul.f32 %v2924, %v2923
    %v2926 = vmul.f32 0.5, %v2925
    %v2927 = vsub.f32 1.5, %v2926
    %v2928 = vmul.f32 %v2923, %v2927
    %v2929 = vmul.f32 %v2922, %v2928
    %vm2930 = vcmp.eq.f32.partialorder %v2922, inf
    %v2931 = vsel %vm2930, %v2922, %v2929
    %vm2932 = vcmp.eq.f32.partialorder %v2922, 0.0
    %v2933 = vand.u32 %v2922, 2147483648
    %v2934 = vsel %vm2932, %v2933, %v2931
    %v2935 = vadd.f32 %v2934, 1e-08
    %v2936 = vrcp.pop %v2935
    %v2937 = vmul.f32 %v2921, %v2936
    %v2938 = vsub.f32 %v2699, %v2937
    %2940 = vset.pattern.permute.xlu0 0
    %2941 = vperm.xlu0 %2940, %v2938
    %v2942 = vpop.permute.xlu0 %2941
    %2945 = vst [vmem:[#allocation1] ss:$2 sm:$0xff] %v2920
    %v2946 = vld.sshfl [vmem:[#allocation1] sm:$0xff pattern:$0x75316420]
    %v2947 = vld.sshfl [vmem:[#allocation1 + $0x8] sm:$0xff pattern:$0x75316420]
    %2950 = vmatpush.xpose.msra.mxu0 0.0
    %2951 = vmatpush.xpose.msra.mxu0 0.0
    %2952 = vmatpush.xpose.msra.mxu0 0.0
    %2953 = vmatpush.xpose.msra.mxu0 0.0
    %2954 = vmatpush.xpose.msra.mxu0 0.0
    %2955 = vmatpush.xpose.msra.mxu0 0.0
    %2956 = vmatpush.xpose.msra.mxu0 0.0
    %2957 = vmatpush.xpose.msra.mxu0 0.0
    %2958 = vmatpush.xpose.msra.mxu0 0.0
    %2959 = vmatpush.xpose.msra.mxu0 0.0
    %2960 = vmatpush.xpose.msra.mxu0 0.0
    %2961 = vmatpush.xpose.msra.mxu0 0.0
    %2962 = vmatpush.xpose.msra.mxu0 0.0
    %2963 = vmatpush.xpose.msra.mxu0 0.0
    %2964 = vmatpush.xpose.msra.mxu0 0.0
    %2965 = vmatpush.xpose.msra.mxu0 %v935
    %2966 = vmatmul.f32.gmra.mxu0 %v2946
    %v2967 = vpop.f32.mrf.mxu0
    %v2968 = vadd.f32 %v2942, %v2967
    %2969 = vdwg.mxu0
    %2970 = vmatpush.xpose.msra.mxu0 0.0
    %2971 = vmatpush.xpose.msra.mxu0 0.0
    %2972 = vmatpush.xpose.msra.mxu0 0.0
    %2973 = vmatpush.xpose.msra.mxu0 0.0
    %2974 = vmatpush.xpose.msra.mxu0 0.0
    %2975 = vmatpush.xpose.msra.mxu0 0.0
    %2976 = vmatpush.xpose.msra.mxu0 0.0
    %2977 = vmatpush.xpose.msra.mxu0 0.0
    %2978 = vmatpush.xpose.msra.mxu0 0.0
    %2979 = vmatpush.xpose.msra.mxu0 0.0
    %2980 = vmatpush.xpose.msra.mxu0 0.0
    %2981 = vmatpush.xpose.msra.mxu0 0.0
    %2982 = vmatpush.xpose.msra.mxu0 0.0
    %2983 = vmatpush.xpose.msra.mxu0 0.0
    %2984 = vmatpush.xpose.msra.mxu0 0.0
    %2985 = vmatpush.xpose.msra.mxu0 %v1039
    %2986 = vmatmul.f32.gmra.mxu0 %v2947
    %v2987 = vpop.f32.mrf.mxu0
    %v2988 = vadd.f32 %v2968, %v2987
    %2989 = vdwg.mxu0
    %v2990 = vsel %vm1320, %v2988, -inf
    %v2991 = vrot.slane %v2990, 4
    %v2992 = vmax.f32 %v2990, %v2991
    %v2993 = vrot.slane %v2992, 2
    %v2994 = vmax.f32 %v2992, %v2993
    %v2995 = vrot.slane %v2994, 1
    %v2996 = vmax.f32 %v2994, %v2995
    %v2997 = vsub.f32 %v2988, %v2996
    %v2998 = vmul.f32 %v2997, 1.442695
    %v2999 = vpow.pop %v2998
    %v3000 = vsel %vm1320, %v2999, 0.0
    %v3001 = vrot.slane %v3000, 4
    %v3002 = vadd.f32 %v3000, %v3001
    %v3003 = vrot.slane %v3002, 2
    %v3004 = vadd.f32 %v3002, %v3003
    %v3005 = vrot.slane %v3004, 1
    %v3006 = vadd.f32 %v3004, %v3005
    %v3007 = vrcp.pop %v3006
    %v3008 = vmul.f32 %v2999, %v3007
    %v3009 = vsel %vm1320, %v3008, -inf
    %v3010 = vrot.slane %v3009, 4
    %v3011 = vmax.f32 %v3009, %v3010
    %v3012 = vrot.slane %v3011, 2
    %v3013 = vmax.f32 %v3011, %v3012
    %v3014 = vrot.slane %v3013, 1
    %v3015 = vmax.f32 %v3013, %v3014
    %v3016 = vsub.f32 %v3008, %v3015
    %v3017 = vmul.f32 %v3016, 1.442695
    %v3018 = vpow.pop %v3017
    %v3019 = vsel %vm1320, %v3018, 0.0
    %v3020 = vrot.slane %v3019, 4
    %v3021 = vadd.f32 %v3019, %v3020
    %v3022 = vrot.slane %v3021, 2
    %v3023 = vadd.f32 %v3021, %v3022
    %v3024 = vrot.slane %v3023, 1
    %v3025 = vadd.f32 %v3023, %v3024
    %v3026 = vrcp.pop %v3025
    %v3027 = vmul.f32 %v3025, %v3026
    %v3028 = vsub.f32 1.0, %v3027
    %v3029 = vmul.f32 %v3026, %v3028
    %v3030 = vadd.f32 %v3026, %v3029
    %vm3031 = vweird.f32 %v3025
    %vm3032 = vweird.f32 %v3026
    %vm3033 = vmor %vm3031, %vm3032
    %v3034 = vsel %vm3033, %v3026, %v3030
    %v3035 = vand.u32 2147483647, %v3025
    %vm3036 = vcmp.eq.f32.partialorder %v3035, 8.507059e+37
    %v3037 = vand.u32 %v3025, 2147483648
    %v3038 = vor.u32 1.1754944e-38, %v3037
    %v3039 = vsel %vm3036, %v3038, %v3034
    %v3040 = vmul.f32 %v3018, %v3039
    %v3041 = vsub.f32 %v3040, %v1266
    %v3042 = vmul.f32 %v3041, 0.125
    %v3043 = vmul.f32 %v3042, %v3008
    %v3044 = vsel %vm1320, %v3043, 0.0
    %v3045 = vrot.slane %v3044, 4
    %v3046 = vadd.f32 %v3044, %v3045
    %v3047 = vrot.slane %v3046, 2
    %v3048 = vadd.f32 %v3046, %v3047
    %v3049 = vrot.slane %v3048, 1
    %v3050 = vadd.f32 %v3048, %v3049
    %v3051 = vsub.f32 %v3042, %v3050
    %v3052 = vmul.f32 %v3008, %v3051
    %v3054 = vsel %vm1384, %v3052, 0
    %3056 = vmatpush.msra.mxu0 0.0
    %3057 = vmatpush.msra.mxu0 0.0
    %3058 = vmatpush.msra.mxu0 0.0
    %3059 = vmatpush.msra.mxu0 0.0
    %3060 = vmatpush.msra.mxu0 0.0
    %3061 = vmatpush.msra.mxu0 0.0
    %3062 = vmatpush.msra.mxu0 0.0
    %3063 = vmatpush.msra.mxu0 0.0
    %3064 = vmatpush.msra.mxu0 0.0
    %3065 = vmatpush.msra.mxu0 0.0
    %3066 = vmatpush.msra.mxu0 0.0
    %3067 = vmatpush.msra.mxu0 0.0
    %3068 = vmatpush.msra.mxu0 0.0
    %3069 = vmatpush.msra.mxu0 0.0
    %3070 = vmatpush.msra.mxu0 0.0
    %3071 = vmatpush.msra.mxu0 %v935
    %3072 = vmatmul.f32.gmra.mxu0 %v3054
    %v3073 = vpop.f32.mrf.mxu0
    %v3074 = vadd.f32 0.0, %v3073
    %3075 = vdwg.mxu0
    %3076 = vmatpush.msra.mxu0 0.0
    %3077 = vmatpush.msra.mxu0 0.0
    %3078 = vmatpush.msra.mxu0 0.0
    %3079 = vmatpush.msra.mxu0 0.0
    %3080 = vmatpush.msra.mxu0 0.0
    %3081 = vmatpush.msra.mxu0 0.0
    %3082 = vmatpush.msra.mxu0 0.0
    %3083 = vmatpush.msra.mxu0 0.0
    %3084 = vmatpush.msra.mxu0 0.0
    %3085 = vmatpush.msra.mxu0 0.0
    %3086 = vmatpush.msra.mxu0 0.0
    %3087 = vmatpush.msra.mxu0 0.0
    %3088 = vmatpush.msra.mxu0 0.0
    %3089 = vmatpush.msra.mxu0 0.0
    %3090 = vmatpush.msra.mxu0 0.0
    %3091 = vmatpush.msra.mxu0 %v1039
    %3092 = vmatmul.f32.gmra.mxu0 %v3054
    %v3093 = vpop.f32.mrf.mxu0
    %v3094 = vadd.f32 0.0, %v3093
    %3095 = vdwg.mxu0
    %v3096 = vsel %vm1320, %v3052, 0.0
    %3097 = vadd.xlane.f32.xlu0 %v3096
    %v3098 = vpop.xlane.xlu0 %3097
    %v3099 = vmul.f32 %v2864, 0.9
    %v3100 = vmul.f32 %v2865, 0.9
    %v3101 = vmul.f32 %v3074, 0.1
    %v3102 = vmul.f32 %v3094, 0.1
    %v3103 = vadd.f32 %v3099, %v3101
    %v3104 = vadd.f32 %v3100, %v3102
    %v3105 = vmul.f32 %v2872, 0.999
    %v3106 = vmul.f32 %v2873, 0.999
    %v3107 = vmul.f32 %v3074, 0.001
    %v3108 = vmul.f32 %v3094, 0.001
    %v3109 = vmul.f32 %v3107, %v3074
    %v3110 = vmul.f32 %v3108, %v3094
    %v3111 = vadd.f32 %v3105, %v3109
    %v3112 = vadd.f32 %v3106, %v3110
    %v3113 = vmul.f32 %v2876, 0.9
    %v3114 = vmul.f32 %v3098, 0.1
    %v3115 = vadd.f32 %v3113, %v3114
    %v3116 = vmul.f32 %v2880, 0.999
    %v3117 = vmul.f32 %v3098, 0.001
    %v3118 = vmul.f32 %v3117, %v3098
    %v3119 = vadd.f32 %v3116, %v3118
    %v3120 = vmul.f32 %v3103, 0.0017558251
    %v3121 = vmul.f32 %v3104, 0.0017558251
    %v3122 = vmul.f32 %v3111, 125.438156
    %v3123 = vmul.f32 %v3112, 125.438156
    %v3124 = vrsqrt.pop %v3122
    %v3125 = vmul.f32 %v3124, %v3122
    %v3126 = vmul.f32 %v3125, %v3124
    %v3127 = vmul.f32 0.5, %v3126
    %v3128 = vsub.f32 1.5, %v3127
    %v3129 = vmul.f32 %v3124, %v3128
    %v3130 = vmul.f32 %v3122, %v3129
    %vm3131 = vcmp.eq.f32.partialorder %v3122, inf
    %v3132 = vsel %vm3131, %v3122, %v3130
    %vm3133 = vcmp.eq.f32.partialorder %v3122, 0.0
    %v3134 = vand.u32 %v3122, 2147483648
    %v3135 = vsel %vm3133, %v3134, %v3132
    %v3136 = vrsqrt.pop %v3123
    %v3137 = vmul.f32 %v3136, %v3123
    %v3138 = vmul.f32 %v3137, %v3136
    %v3139 = vmul.f32 0.5, %v3138
    %v3140 = vsub.f32 1.5, %v3139
    %v3141 = vmul.f32 %v3136, %v3140
    %v3142 = vmul.f32 %v3123, %v3141
    %vm3143 = vcmp.eq.f32.partialorder %v3123, inf
    %v3144 = vsel %vm3143, %v3123, %v3142
    %vm3145 = vcmp.eq.f32.partialorder %v3123, 0.0
    %v3146 = vand.u32 %v3123, 2147483648
    %v3147 = vsel %vm3145, %v3146, %v3144
    %v3148 = vadd.f32 %v3135, 1e-08
    %v3149 = vadd.f32 %v3147, 1e-08
    %v3150 = vrcp.pop %v3148
    %v3151 = vrcp.pop %v3149
    %v3152 = vmul.f32 %v3120, %v3150
    %v3153 = vmul.f32 %v3121, %v3151
    %v3156 = vrot.slane %v3153, 4
    %v3157 = vsel %vm1483, %v3152, %v3156
    %v3159 = vsub.f32 %v2920, %v3157
    %v3160 = vmul.f32 %v3115, 0.0017558251
    %v3161 = vmul.f32 %v3119, 125.438156
    %v3162 = vrsqrt.pop %v3161
    %v3163 = vmul.f32 %v3162, %v3161
    %v3164 = vmul.f32 %v3163, %v3162
    %v3165 = vmul.f32 0.5, %v3164
    %v3166 = vsub.f32 1.5, %v3165
    %v3167 = vmul.f32 %v3162, %v3166
    %v3168 = vmul.f32 %v3161, %v3167
    %vm3169 = vcmp.eq.f32.partialorder %v3161, inf
    %v3170 = vsel %vm3169, %v3161, %v3168
    %vm3171 = vcmp.eq.f32.partialorder %v3161, 0.0
    %v3172 = vand.u32 %v3161, 2147483648
    %v3173 = vsel %vm3171, %v3172, %v3170
    %v3174 = vadd.f32 %v3173, 1e-08
    %v3175 = vrcp.pop %v3174
    %v3176 = vmul.f32 %v3160, %v3175
    %v3177 = vsub.f32 %v2938, %v3176
    %3179 = vset.pattern.permute.xlu0 0
    %3180 = vperm.xlu0 %3179, %v3177
    %v3181 = vpop.permute.xlu0 %3180
    %3184 = vst [vmem:[#allocation1] ss:$2 sm:$0xff] %v3159
    %v3185 = vld.sshfl [vmem:[#allocation1] sm:$0xff pattern:$0x75316420]
    %v3186 = vld.sshfl [vmem:[#allocation1 + $0x8] sm:$0xff pattern:$0x75316420]
    %3189 = vmatpush.xpose.msra.mxu0 0.0
    %3190 = vmatpush.xpose.msra.mxu0 0.0
    %3191 = vmatpush.xpose.msra.mxu0 0.0
    %3192 = vmatpush.xpose.msra.mxu0 0.0
    %3193 = vmatpush.xpose.msra.mxu0 0.0
    %3194 = vmatpush.xpose.msra.mxu0 0.0
    %3195 = vmatpush.xpose.msra.mxu0 0.0
    %3196 = vmatpush.xpose.msra.mxu0 0.0
    %3197 = vmatpush.xpose.msra.mxu0 0.0
    %3198 = vmatpush.xpose.msra.mxu0 0.0
    %3199 = vmatpush.xpose.msra.mxu0 0.0
    %3200 = vmatpush.xpose.msra.mxu0 0.0
    %3201 = vmatpush.xpose.msra.mxu0 0.0
    %3202 = vmatpush.xpose.msra.mxu0 0.0
    %3203 = vmatpush.xpose.msra.mxu0 0.0
    %3204 = vmatpush.xpose.msra.mxu0 %v935
    %3205 = vmatmul.f32.gmra.mxu0 %v3185
    %v3206 = vpop.f32.mrf.mxu0
    %v3207 = vadd.f32 %v3181, %v3206
    %3208 = vdwg.mxu0
    %3209 = vmatpush.xpose.msra.mxu0 0.0
    %3210 = vmatpush.xpose.msra.mxu0 0.0
    %3211 = vmatpush.xpose.msra.mxu0 0.0
    %3212 = vmatpush.xpose.msra.mxu0 0.0
    %3213 = vmatpush.xpose.msra.mxu0 0.0
    %3214 = vmatpush.xpose.msra.mxu0 0.0
    %3215 = vmatpush.xpose.msra.mxu0 0.0
    %3216 = vmatpush.xpose.msra.mxu0 0.0
    %3217 = vmatpush.xpose.msra.mxu0 0.0
    %3218 = vmatpush.xpose.msra.mxu0 0.0
    %3219 = vmatpush.xpose.msra.mxu0 0.0
    %3220 = vmatpush.xpose.msra.mxu0 0.0
    %3221 = vmatpush.xpose.msra.mxu0 0.0
    %3222 = vmatpush.xpose.msra.mxu0 0.0
    %3223 = vmatpush.xpose.msra.mxu0 0.0
    %3224 = vmatpush.xpose.msra.mxu0 %v1039
    %3225 = vmatmul.f32.gmra.mxu0 %v3186
    %v3226 = vpop.f32.mrf.mxu0
    %v3227 = vadd.f32 %v3207, %v3226
    %3228 = vdwg.mxu0
    %v3229 = vsel %vm1320, %v3227, -inf
    %v3230 = vrot.slane %v3229, 4
    %v3231 = vmax.f32 %v3229, %v3230
    %v3232 = vrot.slane %v3231, 2
    %v3233 = vmax.f32 %v3231, %v3232
    %v3234 = vrot.slane %v3233, 1
    %v3235 = vmax.f32 %v3233, %v3234
    %v3236 = vsub.f32 %v3227, %v3235
    %v3237 = vmul.f32 %v3236, 1.442695
    %v3238 = vpow.pop %v3237
    %v3239 = vsel %vm1320, %v3238, 0.0
    %v3240 = vrot.slane %v3239, 4
    %v3241 = vadd.f32 %v3239, %v3240
    %v3242 = vrot.slane %v3241, 2
    %v3243 = vadd.f32 %v3241, %v3242
    %v3244 = vrot.slane %v3243, 1
    %v3245 = vadd.f32 %v3243, %v3244
    %v3246 = vrcp.pop %v3245
    %v3247 = vmul.f32 %v3238, %v3246
    %v3248 = vsel %vm1320, %v3247, -inf
    %v3249 = vrot.slane %v3248, 4
    %v3250 = vmax.f32 %v3248, %v3249
    %v3251 = vrot.slane %v3250, 2
    %v3252 = vmax.f32 %v3250, %v3251
    %v3253 = vrot.slane %v3252, 1
    %v3254 = vmax.f32 %v3252, %v3253
    %v3255 = vsub.f32 %v3247, %v3254
    %v3256 = vmul.f32 %v3255, 1.442695
    %v3257 = vpow.pop %v3256
    %v3258 = vsel %vm1320, %v3257, 0.0
    %v3259 = vrot.slane %v3258, 4
    %v3260 = vadd.f32 %v3258, %v3259
    %v3261 = vrot.slane %v3260, 2
    %v3262 = vadd.f32 %v3260, %v3261
    %v3263 = vrot.slane %v3262, 1
    %v3264 = vadd.f32 %v3262, %v3263
    %v3265 = vrcp.pop %v3264
    %v3266 = vmul.f32 %v3264, %v3265
    %v3267 = vsub.f32 1.0, %v3266
    %v3268 = vmul.f32 %v3265, %v3267
    %v3269 = vadd.f32 %v3265, %v3268
    %vm3270 = vweird.f32 %v3264
    %vm3271 = vweird.f32 %v3265
    %vm3272 = vmor %vm3270, %vm3271
    %v3273 = vsel %vm3272, %v3265, %v3269
    %v3274 = vand.u32 2147483647, %v3264
    %vm3275 = vcmp.eq.f32.partialorder %v3274, 8.507059e+37
    %v3276 = vand.u32 %v3264, 2147483648
    %v3277 = vor.u32 1.1754944e-38, %v3276
    %v3278 = vsel %vm3275, %v3277, %v3273
    %v3279 = vmul.f32 %v3257, %v3278
    %v3280 = vsub.f32 %v3279, %v1266
    %v3281 = vmul.f32 %v3280, 0.125
    %v3282 = vmul.f32 %v3281, %v3247
    %v3283 = vsel %vm1320, %v3282, 0.0
    %v3284 = vrot.slane %v3283, 4
    %v3285 = vadd.f32 %v3283, %v3284
    %v3286 = vrot.slane %v3285, 2
    %v3287 = vadd.f32 %v3285, %v3286
    %v3288 = vrot.slane %v3287, 1
    %v3289 = vadd.f32 %v3287, %v3288
    %v3290 = vsub.f32 %v3281, %v3289
    %v3291 = vmul.f32 %v3247, %v3290
    %v3293 = vsel %vm1384, %v3291, 0
    %3295 = vmatpush.msra.mxu0 0.0
    %3296 = vmatpush.msra.mxu0 0.0
    %3297 = vmatpush.msra.mxu0 0.0
    %3298 = vmatpush.msra.mxu0 0.0
    %3299 = vmatpush.msra.mxu0 0.0
    %3300 = vmatpush.msra.mxu0 0.0
    %3301 = vmatpush.msra.mxu0 0.0
    %3302 = vmatpush.msra.mxu0 0.0
    %3303 = vmatpush.msra.mxu0 0.0
    %3304 = vmatpush.msra.mxu0 0.0
    %3305 = vmatpush.msra.mxu0 0.0
    %3306 = vmatpush.msra.mxu0 0.0
    %3307 = vmatpush.msra.mxu0 0.0
    %3308 = vmatpush.msra.mxu0 0.0
    %3309 = vmatpush.msra.mxu0 0.0
    %3310 = vmatpush.msra.mxu0 %v935
    %3311 = vmatmul.f32.gmra.mxu0 %v3293
    %v3312 = vpop.f32.mrf.mxu0
    %v3313 = vadd.f32 0.0, %v3312
    %3314 = vdwg.mxu0
    %3315 = vmatpush.msra.mxu0 0.0
    %3316 = vmatpush.msra.mxu0 0.0
    %3317 = vmatpush.msra.mxu0 0.0
    %3318 = vmatpush.msra.mxu0 0.0
    %3319 = vmatpush.msra.mxu0 0.0
    %3320 = vmatpush.msra.mxu0 0.0
    %3321 = vmatpush.msra.mxu0 0.0
    %3322 = vmatpush.msra.mxu0 0.0
    %3323 = vmatpush.msra.mxu0 0.0
    %3324 = vmatpush.msra.mxu0 0.0
    %3325 = vmatpush.msra.mxu0 0.0
    %3326 = vmatpush.msra.mxu0 0.0
    %3327 = vmatpush.msra.mxu0 0.0
    %3328 = vmatpush.msra.mxu0 0.0
    %3329 = vmatpush.msra.mxu0 0.0
    %3330 = vmatpush.msra.mxu0 %v1039
    %3331 = vmatmul.f32.gmra.mxu0 %v3293
    %v3332 = vpop.f32.mrf.mxu0
    %v3333 = vadd.f32 0.0, %v3332
    %3334 = vdwg.mxu0
    %v3335 = vsel %vm1320, %v3291, 0.0
    %3336 = vadd.xlane.f32.xlu0 %v3335
    %v3337 = vpop.xlane.xlu0 %3336
    %v3338 = vmul.f32 %v3103, 0.9
    %v3339 = vmul.f32 %v3104, 0.9
    %v3340 = vmul.f32 %v3313, 0.1
    %v3341 = vmul.f32 %v3333, 0.1
    %v3342 = vadd.f32 %v3338, %v3340
    %v3343 = vadd.f32 %v3339, %v3341
    %v3344 = vmul.f32 %v3111, 0.999
    %v3345 = vmul.f32 %v3112, 0.999
    %v3346 = vmul.f32 %v3313, 0.001
    %v3347 = vmul.f32 %v3333, 0.001
    %v3348 = vmul.f32 %v3346, %v3313
    %v3349 = vmul.f32 %v3347, %v3333
    %v3350 = vadd.f32 %v3344, %v3348
    %v3351 = vadd.f32 %v3345, %v3349
    %v3352 = vmul.f32 %v3115, 0.9
    %v3353 = vmul.f32 %v3337, 0.1
    %v3354 = vadd.f32 %v3352, %v3353
    %v3355 = vmul.f32 %v3119, 0.999
    %v3356 = vmul.f32 %v3337, 0.001
    %v3357 = vmul.f32 %v3356, %v3337
    %v3358 = vadd.f32 %v3355, %v3357
    %v3359 = vmul.f32 %v3342, 0.0016324412
    %v3360 = vmul.f32 %v3343, 0.0016324412
    %v3361 = vmul.f32 %v3350, 111.5563
    %v3362 = vmul.f32 %v3351, 111.5563
    %v3363 = vrsqrt.pop %v3361
    %v3364 = vmul.f32 %v3363, %v3361
    %v3365 = vmul.f32 %v3364, %v3363
    %v3366 = vmul.f32 0.5, %v3365
    %v3367 = vsub.f32 1.5, %v3366
    %v3368 = vmul.f32 %v3363, %v3367
    %v3369 = vmul.f32 %v3361, %v3368
    %vm3370 = vcmp.eq.f32.partialorder %v3361, inf
    %v3371 = vsel %vm3370, %v3361, %v3369
    %vm3372 = vcmp.eq.f32.partialorder %v3361, 0.0
    %v3373 = vand.u32 %v3361, 2147483648
    %v3374 = vsel %vm3372, %v3373, %v3371
    %v3375 = vrsqrt.pop %v3362
    %v3376 = vmul.f32 %v3375, %v3362
    %v3377 = vmul.f32 %v3376, %v3375
    %v3378 = vmul.f32 0.5, %v3377
    %v3379 = vsub.f32 1.5, %v3378
    %v3380 = vmul.f32 %v3375, %v3379
    %v3381 = vmul.f32 %v3362, %v3380
    %vm3382 = vcmp.eq.f32.partialorder %v3362, inf
    %v3383 = vsel %vm3382, %v3362, %v3381
    %vm3384 = vcmp.eq.f32.partialorder %v3362, 0.0
    %v3385 = vand.u32 %v3362, 2147483648
    %v3386 = vsel %vm3384, %v3385, %v3383
    %v3387 = vadd.f32 %v3374, 1e-08
    %v3388 = vadd.f32 %v3386, 1e-08
    %v3389 = vrcp.pop %v3387
    %v3390 = vrcp.pop %v3388
    %v3391 = vmul.f32 %v3359, %v3389
    %v3392 = vmul.f32 %v3360, %v3390
    %v3395 = vrot.slane %v3392, 4
    %v3396 = vsel %vm1483, %v3391, %v3395
    %v3398 = vsub.f32 %v3159, %v3396
    %v3399 = vmul.f32 %v3354, 0.0016324412
    %v3400 = vmul.f32 %v3358, 111.5563
    %v3401 = vrsqrt.pop %v3400
    %v3402 = vmul.f32 %v3401, %v3400
    %v3403 = vmul.f32 %v3402, %v3401
    %v3404 = vmul.f32 0.5, %v3403
    %v3405 = vsub.f32 1.5, %v3404
    %v3406 = vmul.f32 %v3401, %v3405
    %v3407 = vmul.f32 %v3400, %v3406
    %vm3408 = vcmp.eq.f32.partialorder %v3400, inf
    %v3409 = vsel %vm3408, %v3400, %v3407
    %vm3410 = vcmp.eq.f32.partialorder %v3400, 0.0
    %v3411 = vand.u32 %v3400, 2147483648
    %v3412 = vsel %vm3410, %v3411, %v3409
    %v3413 = vadd.f32 %v3412, 1e-08
    %v3414 = vrcp.pop %v3413
    %v3415 = vmul.f32 %v3399, %v3414
    %v3416 = vsub.f32 %v3177, %v3415
    %3418 = vset.pattern.permute.xlu0 0
    %3419 = vperm.xlu0 %3418, %v3416
    %v3420 = vpop.permute.xlu0 %3419
    %3423 = vst [vmem:[#allocation1] ss:$2 sm:$0xff] %v3398
    %v3424 = vld.sshfl [vmem:[#allocation1] sm:$0xff pattern:$0x75316420]
    %v3425 = vld.sshfl [vmem:[#allocation1 + $0x8] sm:$0xff pattern:$0x75316420]
    %3428 = vmatpush.xpose.msra.mxu0 0.0
    %3429 = vmatpush.xpose.msra.mxu0 0.0
    %3430 = vmatpush.xpose.msra.mxu0 0.0
    %3431 = vmatpush.xpose.msra.mxu0 0.0
    %3432 = vmatpush.xpose.msra.mxu0 0.0
    %3433 = vmatpush.xpose.msra.mxu0 0.0
    %3434 = vmatpush.xpose.msra.mxu0 0.0
    %3435 = vmatpush.xpose.msra.mxu0 0.0
    %3436 = vmatpush.xpose.msra.mxu0 0.0
    %3437 = vmatpush.xpose.msra.mxu0 0.0
    %3438 = vmatpush.xpose.msra.mxu0 0.0
    %3439 = vmatpush.xpose.msra.mxu0 0.0
    %3440 = vmatpush.xpose.msra.mxu0 0.0
    %3441 = vmatpush.xpose.msra.mxu0 0.0
    %3442 = vmatpush.xpose.msra.mxu0 0.0
    %3443 = vmatpush.xpose.msra.mxu0 %v935
    %3444 = vmatmul.f32.gmra.mxu0 %v3424
    %v3445 = vpop.f32.mrf.mxu0
    %v3446 = vadd.f32 %v3420, %v3445
    %3447 = vdwg.mxu0
    %3448 = vmatpush.xpose.msra.mxu0 0.0
    %3449 = vmatpush.xpose.msra.mxu0 0.0
    %3450 = vmatpush.xpose.msra.mxu0 0.0
    %3451 = vmatpush.xpose.msra.mxu0 0.0
    %3452 = vmatpush.xpose.msra.mxu0 0.0
    %3453 = vmatpush.xpose.msra.mxu0 0.0
    %3454 = vmatpush.xpose.msra.mxu0 0.0
    %3455 = vmatpush.xpose.msra.mxu0 0.0
    %3456 = vmatpush.xpose.msra.mxu0 0.0
    %3457 = vmatpush.xpose.msra.mxu0 0.0
    %3458 = vmatpush.xpose.msra.mxu0 0.0
    %3459 = vmatpush.xpose.msra.mxu0 0.0
    %3460 = vmatpush.xpose.msra.mxu0 0.0
    %3461 = vmatpush.xpose.msra.mxu0 0.0
    %3462 = vmatpush.xpose.msra.mxu0 0.0
    %3463 = vmatpush.xpose.msra.mxu0 %v1039
    %3464 = vmatmul.f32.gmra.mxu0 %v3425
    %v3465 = vpop.f32.mrf.mxu0
    %v3466 = vadd.f32 %v3446, %v3465
    %3467 = vdwg.mxu0
    %v3468 = vsel %vm1320, %v3466, -inf
    %v3469 = vrot.slane %v3468, 4
    %v3470 = vmax.f32 %v3468, %v3469
    %v3471 = vrot.slane %v3470, 2
    %v3472 = vmax.f32 %v3470, %v3471
    %v3473 = vrot.slane %v3472, 1
    %v3474 = vmax.f32 %v3472, %v3473
    %v3475 = vsub.f32 %v3466, %v3474
    %v3476 = vmul.f32 %v3475, 1.442695
    %v3477 = vpow.pop %v3476
    %v3478 = vsel %vm1320, %v3477, 0.0
    %v3479 = vrot.slane %v3478, 4
    %v3480 = vadd.f32 %v3478, %v3479
    %v3481 = vrot.slane %v3480, 2
    %v3482 = vadd.f32 %v3480, %v3481
    %v3483 = vrot.slane %v3482, 1
    %v3484 = vadd.f32 %v3482, %v3483
    %v3485 = vrcp.pop %v3484
    %v3486 = vmul.f32 %v3477, %v3485
    %v3487 = vsel %vm1320, %v3486, -inf
    %v3488 = vrot.slane %v3487, 4
    %v3489 = vmax.f32 %v3487, %v3488
    %v3490 = vrot.slane %v3489, 2
    %v3491 = vmax.f32 %v3489, %v3490
    %v3492 = vrot.slane %v3491, 1
    %v3493 = vmax.f32 %v3491, %v3492
    %v3494 = vsub.f32 %v3486, %v3493
    %v3495 = vmul.f32 %v3494, 1.442695
    %v3496 = vpow.pop %v3495
    %v3497 = vsel %vm1320, %v3496, 0.0
    %v3498 = vrot.slane %v3497, 4
    %v3499 = vadd.f32 %v3497, %v3498
    %v3500 = vrot.slane %v3499, 2
    %v3501 = vadd.f32 %v3499, %v3500
    %v3502 = vrot.slane %v3501, 1
    %v3503 = vadd.f32 %v3501, %v3502
    %v3504 = vrcp.pop %v3503
    %v3505 = vmul.f32 %v3503, %v3504
    %v3506 = vsub.f32 1.0, %v3505
    %v3507 = vmul.f32 %v3504, %v3506
    %v3508 = vadd.f32 %v3504, %v3507
    %vm3509 = vweird.f32 %v3503
    %vm3510 = vweird.f32 %v3504
    %vm3511 = vmor %vm3509, %vm3510
    %v3512 = vsel %vm3511, %v3504, %v3508
    %v3513 = vand.u32 2147483647, %v3503
    %vm3514 = vcmp.eq.f32.partialorder %v3513, 8.507059e+37
    %v3515 = vand.u32 %v3503, 2147483648
    %v3516 = vor.u32 1.1754944e-38, %v3515
    %v3517 = vsel %vm3514, %v3516, %v3512
    %v3518 = vmul.f32 %v3496, %v3517
    %v3519 = vsub.f32 %v3518, %v1266
    %v3520 = vmul.f32 %v3519, 0.125
    %v3521 = vmul.f32 %v3520, %v3486
    %v3522 = vsel %vm1320, %v3521, 0.0
    %v3523 = vrot.slane %v3522, 4
    %v3524 = vadd.f32 %v3522, %v3523
    %v3525 = vrot.slane %v3524, 2
    %v3526 = vadd.f32 %v3524, %v3525
    %v3527 = vrot.slane %v3526, 1
    %v3528 = vadd.f32 %v3526, %v3527
    %v3529 = vsub.f32 %v3520, %v3528
    %v3530 = vmul.f32 %v3486, %v3529
    %v3532 = vsel %vm1384, %v3530, 0
    %3534 = vmatpush.msra.mxu0 0.0
    %3535 = vmatpush.msra.mxu0 0.0
    %3536 = vmatpush.msra.mxu0 0.0
    %3537 = vmatpush.msra.mxu0 0.0
    %3538 = vmatpush.msra.mxu0 0.0
    %3539 = vmatpush.msra.mxu0 0.0
    %3540 = vmatpush.msra.mxu0 0.0
    %3541 = vmatpush.msra.mxu0 0.0
    %3542 = vmatpush.msra.mxu0 0.0
    %3543 = vmatpush.msra.mxu0 0.0
    %3544 = vmatpush.msra.mxu0 0.0
    %3545 = vmatpush.msra.mxu0 0.0
    %3546 = vmatpush.msra.mxu0 0.0
    %3547 = vmatpush.msra.mxu0 0.0
    %3548 = vmatpush.msra.mxu0 0.0
    %3549 = vmatpush.msra.mxu0 %v935
    %3550 = vmatmul.f32.gmra.mxu0 %v3532
    %v3551 = vpop.f32.mrf.mxu0
    %v3552 = vadd.f32 0.0, %v3551
    %3553 = vdwg.mxu0
    %3554 = vmatpush.msra.mxu0 0.0
    %3555 = vmatpush.msra.mxu0 0.0
    %3556 = vmatpush.msra.mxu0 0.0
    %3557 = vmatpush.msra.mxu0 0.0
    %3558 = vmatpush.msra.mxu0 0.0
    %3559 = vmatpush.msra.mxu0 0.0
    %3560 = vmatpush.msra.mxu0 0.0
    %3561 = vmatpush.msra.mxu0 0.0
    %3562 = vmatpush.msra.mxu0 0.0
    %3563 = vmatpush.msra.mxu0 0.0
    %3564 = vmatpush.msra.mxu0 0.0
    %3565 = vmatpush.msra.mxu0 0.0
    %3566 = vmatpush.msra.mxu0 0.0
    %3567 = vmatpush.msra.mxu0 0.0
    %3568 = vmatpush.msra.mxu0 0.0
    %3569 = vmatpush.msra.mxu0 %v1039
    %3570 = vmatmul.f32.gmra.mxu0 %v3532
    %v3571 = vpop.f32.mrf.mxu0
    %v3572 = vadd.f32 0.0, %v3571
    %3573 = vdwg.mxu0
    %v3574 = vsel %vm1320, %v3530, 0.0
    %3575 = vadd.xlane.f32.xlu0 %v3574
    %v3576 = vpop.xlane.xlu0 %3575
    %v3577 = vmul.f32 %v3342, 0.9
    %v3578 = vmul.f32 %v3343, 0.9
    %v3579 = vmul.f32 %v3552, 0.1
    %v3580 = vmul.f32 %v3572, 0.1
    %v3581 = vadd.f32 %v3577, %v3579
    %v3582 = vadd.f32 %v3578, %v3580
    %v3583 = vmul.f32 %v3350, 0.999
    %v3584 = vmul.f32 %v3351, 0.999
    %v3585 = vmul.f32 %v3552, 0.001
    %v3586 = vmul.f32 %v3572, 0.001
    %v3587 = vmul.f32 %v3585, %v3552
    %v3588 = vmul.f32 %v3586, %v3572
    %v3589 = vadd.f32 %v3583, %v3587
    %v3590 = vadd.f32 %v3584, %v3588
    %v3591 = vmul.f32 %v3354, 0.9
    %v3592 = vmul.f32 %v3576, 0.1
    %v3593 = vadd.f32 %v3591, %v3592
    %v3594 = vmul.f32 %v3358, 0.999
    %v3595 = vmul.f32 %v3576, 0.001
    %v3596 = vmul.f32 %v3595, %v3576
    %v3597 = vadd.f32 %v3594, %v3596
    %v3598 = vmul.f32 %v3581, 0.00153534
    %v3599 = vmul.f32 %v3582, 0.00153534
    %v3600 = vmul.f32 %v3589, 100.45083
    %v3601 = vmul.f32 %v3590, 100.45083
    %v3602 = vrsqrt.pop %v3600
    %v3603 = vmul.f32 %v3602, %v3600
    %v3604 = vmul.f32 %v3603, %v3602
    %v3605 = vmul.f32 0.5, %v3604
    %v3606 = vsub.f32 1.5, %v3605
    %v3607 = vmul.f32 %v3602, %v3606
    %v3608 = vmul.f32 %v3600, %v3607
    %vm3609 = vcmp.eq.f32.partialorder %v3600, inf
    %v3610 = vsel %vm3609, %v3600, %v3608
    %vm3611 = vcmp.eq.f32.partialorder %v3600, 0.0
    %v3612 = vand.u32 %v3600, 2147483648
    %v3613 = vsel %vm3611, %v3612, %v3610
    %v3614 = vrsqrt.pop %v3601
    %v3615 = vmul.f32 %v3614, %v3601
    %v3616 = vmul.f32 %v3615, %v3614
    %v3617 = vmul.f32 0.5, %v3616
    %v3618 = vsub.f32 1.5, %v3617
    %v3619 = vmul.f32 %v3614, %v3618
    %v3620 = vmul.f32 %v3601, %v3619
    %vm3621 = vcmp.eq.f32.partialorder %v3601, inf
    %v3622 = vsel %vm3621, %v3601, %v3620
    %vm3623 = vcmp.eq.f32.partialorder %v3601, 0.0
    %v3624 = vand.u32 %v3601, 2147483648
    %v3625 = vsel %vm3623, %v3624, %v3622
    %v3626 = vadd.f32 %v3613, 1e-08
    %v3627 = vadd.f32 %v3625, 1e-08
    %v3628 = vrcp.pop %v3626
    %v3629 = vrcp.pop %v3627
    %v3630 = vmul.f32 %v3598, %v3628
    %v3631 = vmul.f32 %v3599, %v3629
    %v3634 = vrot.slane %v3631, 4
    %v3635 = vsel %vm1483, %v3630, %v3634
    %v3637 = vsub.f32 %v3398, %v3635
    %v3638 = vmul.f32 %v3593, 0.00153534
    %v3639 = vmul.f32 %v3597, 100.45083
    %v3640 = vrsqrt.pop %v3639
    %v3641 = vmul.f32 %v3640, %v3639
    %v3642 = vmul.f32 %v3641, %v3640
    %v3643 = vmul.f32 0.5, %v3642
    %v3644 = vsub.f32 1.5, %v3643
    %v3645 = vmul.f32 %v3640, %v3644
    %v3646 = vmul.f32 %v3639, %v3645
    %vm3647 = vcmp.eq.f32.partialorder %v3639, inf
    %v3648 = vsel %vm3647, %v3639, %v3646
    %vm3649 = vcmp.eq.f32.partialorder %v3639, 0.0
    %v3650 = vand.u32 %v3639, 2147483648
    %v3651 = vsel %vm3649, %v3650, %v3648
    %v3652 = vadd.f32 %v3651, 1e-08
    %v3653 = vrcp.pop %v3652
    %v3654 = vmul.f32 %v3638, %v3653
    %v3655 = vsub.f32 %v3416, %v3654
    %3657 = vset.pattern.permute.xlu0 0
    %3658 = vperm.xlu0 %3657, %v3655
    %v3659 = vpop.permute.xlu0 %3658
    %3662 = vst [vmem:[#allocation1] ss:$2 sm:$0xff] %v3637
    %v3663 = vld.sshfl [vmem:[#allocation1] sm:$0xff pattern:$0x75316420]
    %v3664 = vld.sshfl [vmem:[#allocation1 + $0x8] sm:$0xff pattern:$0x75316420]
    %3667 = vmatpush.xpose.msra.mxu0 0.0
    %3668 = vmatpush.xpose.msra.mxu0 0.0
    %3669 = vmatpush.xpose.msra.mxu0 0.0
    %3670 = vmatpush.xpose.msra.mxu0 0.0
    %3671 = vmatpush.xpose.msra.mxu0 0.0
    %3672 = vmatpush.xpose.msra.mxu0 0.0
    %3673 = vmatpush.xpose.msra.mxu0 0.0
    %3674 = vmatpush.xpose.msra.mxu0 0.0
    %3675 = vmatpush.xpose.msra.mxu0 0.0
    %3676 = vmatpush.xpose.msra.mxu0 0.0
    %3677 = vmatpush.xpose.msra.mxu0 0.0
    %3678 = vmatpush.xpose.msra.mxu0 0.0
    %3679 = vmatpush.xpose.msra.mxu0 0.0
    %3680 = vmatpush.xpose.msra.mxu0 0.0
    %3681 = vmatpush.xpose.msra.mxu0 0.0
    %3682 = vmatpush.xpose.msra.mxu0 %v935
    %3683 = vmatmul.f32.gmra.mxu0 %v3663
    %v3684 = vpop.f32.mrf.mxu0
    %v3685 = vadd.f32 %v3659, %v3684
    %3686 = vdwg.mxu0
    %3687 = vmatpush.xpose.msra.mxu0 0.0
    %3688 = vmatpush.xpose.msra.mxu0 0.0
    %3689 = vmatpush.xpose.msra.mxu0 0.0
    %3690 = vmatpush.xpose.msra.mxu0 0.0
    %3691 = vmatpush.xpose.msra.mxu0 0.0
    %3692 = vmatpush.xpose.msra.mxu0 0.0
    %3693 = vmatpush.xpose.msra.mxu0 0.0
    %3694 = vmatpush.xpose.msra.mxu0 0.0
    %3695 = vmatpush.xpose.msra.mxu0 0.0
    %3696 = vmatpush.xpose.msra.mxu0 0.0
    %3697 = vmatpush.xpose.msra.mxu0 0.0
    %3698 = vmatpush.xpose.msra.mxu0 0.0
    %3699 = vmatpush.xpose.msra.mxu0 0.0
    %3700 = vmatpush.xpose.msra.mxu0 0.0
    %3701 = vmatpush.xpose.msra.mxu0 0.0
    %3702 = vmatpush.xpose.msra.mxu0 %v1039
    %3703 = vmatmul.f32.gmra.mxu0 %v3664
    %v3704 = vpop.f32.mrf.mxu0
    %v3705 = vadd.f32 %v3685, %v3704
    %3706 = vdwg.mxu0
    %v3707 = vsel %vm1320, %v3705, -inf
    %v3708 = vrot.slane %v3707, 4
    %v3709 = vmax.f32 %v3707, %v3708
    %v3710 = vrot.slane %v3709, 2
    %v3711 = vmax.f32 %v3709, %v3710
    %v3712 = vrot.slane %v3711, 1
    %v3713 = vmax.f32 %v3711, %v3712
    %v3714 = vsub.f32 %v3705, %v3713
    %v3715 = vmul.f32 %v3714, 1.442695
    %v3716 = vpow.pop %v3715
    %v3717 = vsel %vm1320, %v3716, 0.0
    %v3718 = vrot.slane %v3717, 4
    %v3719 = vadd.f32 %v3717, %v3718
    %v3720 = vrot.slane %v3719, 2
    %v3721 = vadd.f32 %v3719, %v3720
    %v3722 = vrot.slane %v3721, 1
    %v3723 = vadd.f32 %v3721, %v3722
    %v3724 = vrcp.pop %v3723
    %v3725 = vmul.f32 %v3716, %v3724
    %v3726 = vsel %vm1320, %v3725, -inf
    %v3727 = vrot.slane %v3726, 4
    %v3728 = vmax.f32 %v3726, %v3727
    %v3729 = vrot.slane %v3728, 2
    %v3730 = vmax.f32 %v3728, %v3729
    %v3731 = vrot.slane %v3730, 1
    %v3732 = vmax.f32 %v3730, %v3731
    %v3733 = vsub.f32 %v3725, %v3732
    %v3734 = vmul.f32 %v3733, 1.442695
    %v3735 = vpow.pop %v3734
    %v3736 = vsel %vm1320, %v3735, 0.0
    %v3737 = vrot.slane %v3736, 4
    %v3738 = vadd.f32 %v3736, %v3737
    %v3739 = vrot.slane %v3738, 2
    %v3740 = vadd.f32 %v3738, %v3739
    %v3741 = vrot.slane %v3740, 1
    %v3742 = vadd.f32 %v3740, %v3741
    %v3743 = vrcp.pop %v3742
    %v3744 = vmul.f32 %v3742, %v3743
    %v3745 = vsub.f32 1.0, %v3744
    %v3746 = vmul.f32 %v3743, %v3745
    %v3747 = vadd.f32 %v3743, %v3746
    %vm3748 = vweird.f32 %v3742
    %vm3749 = vweird.f32 %v3743
    %vm3750 = vmor %vm3748, %vm3749
    %v3751 = vsel %vm3750, %v3743, %v3747
    %v3752 = vand.u32 2147483647, %v3742
    %vm3753 = vcmp.eq.f32.partialorder %v3752, 8.507059e+37
    %v3754 = vand.u32 %v3742, 2147483648
    %v3755 = vor.u32 1.1754944e-38, %v3754
    %v3756 = vsel %vm3753, %v3755, %v3751
    %v3757 = vmul.f32 %v3735, %v3756
    %v3758 = vsub.f32 %v3757, %v1266
    %v3759 = vmul.f32 %v3758, 0.125
    %v3760 = vmul.f32 %v3759, %v3725
    %v3761 = vsel %vm1320, %v3760, 0.0
    %v3762 = vrot.slane %v3761, 4
    %v3763 = vadd.f32 %v3761, %v3762
    %v3764 = vrot.slane %v3763, 2
    %v3765 = vadd.f32 %v3763, %v3764
    %v3766 = vrot.slane %v3765, 1
    %v3767 = vadd.f32 %v3765, %v3766
    %v3768 = vsub.f32 %v3759, %v3767
    %v3769 = vmul.f32 %v3725, %v3768
    %v3771 = vsel %vm1384, %v3769, 0
    %3773 = vmatpush.msra.mxu0 0.0
    %3774 = vmatpush.msra.mxu0 0.0
    %3775 = vmatpush.msra.mxu0 0.0
    %3776 = vmatpush.msra.mxu0 0.0
    %3777 = vmatpush.msra.mxu0 0.0
    %3778 = vmatpush.msra.mxu0 0.0
    %3779 = vmatpush.msra.mxu0 0.0
    %3780 = vmatpush.msra.mxu0 0.0
    %3781 = vmatpush.msra.mxu0 0.0
    %3782 = vmatpush.msra.mxu0 0.0
    %3783 = vmatpush.msra.mxu0 0.0
    %3784 = vmatpush.msra.mxu0 0.0
    %3785 = vmatpush.msra.mxu0 0.0
    %3786 = vmatpush.msra.mxu0 0.0
    %3787 = vmatpush.msra.mxu0 0.0
    %3788 = vmatpush.msra.mxu0 %v935
    %3789 = vmatmul.f32.gmra.mxu0 %v3771
    %v3790 = vpop.f32.mrf.mxu0
    %v3791 = vadd.f32 0.0, %v3790
    %3792 = vdwg.mxu0
    %3793 = vmatpush.msra.mxu0 0.0
    %3794 = vmatpush.msra.mxu0 0.0
    %3795 = vmatpush.msra.mxu0 0.0
    %3796 = vmatpush.msra.mxu0 0.0
    %3797 = vmatpush.msra.mxu0 0.0
    %3798 = vmatpush.msra.mxu0 0.0
    %3799 = vmatpush.msra.mxu0 0.0
    %3800 = vmatpush.msra.mxu0 0.0
    %3801 = vmatpush.msra.mxu0 0.0
    %3802 = vmatpush.msra.mxu0 0.0
    %3803 = vmatpush.msra.mxu0 0.0
    %3804 = vmatpush.msra.mxu0 0.0
    %3805 = vmatpush.msra.mxu0 0.0
    %3806 = vmatpush.msra.mxu0 0.0
    %3807 = vmatpush.msra.mxu0 0.0
    %3808 = vmatpush.msra.mxu0 %v1039
    %3809 = vmatmul.f32.gmra.mxu0 %v3771
    %v3810 = vpop.f32.mrf.mxu0
    %v3811 = vadd.f32 0.0, %v3810
    %3812 = vdwg.mxu0
    %v3813 = vsel %vm1320, %v3769, 0.0
    %3814 = vadd.xlane.f32.xlu0 %v3813
    %v3815 = vpop.xlane.xlu0 %3814
    %v3816 = vmul.f32 %v3581, 0.9
    %v3817 = vmul.f32 %v3582, 0.9
    %v3818 = vmul.f32 %v3791, 0.1
    %v3819 = vmul.f32 %v3811, 0.1
    %v3820 = vadd.f32 %v3816, %v3818
    %v3821 = vadd.f32 %v3817, %v3819
    %v3822 = vmul.f32 %v3589, 0.999
    %v3823 = vmul.f32 %v3590, 0.999
    %v3824 = vmul.f32 %v3791, 0.001
    %v3825 = vmul.f32 %v3811, 0.001
    %v3826 = vmul.f32 %v3824, %v3791
    %v3827 = vmul.f32 %v3825, %v3811
    %v3828 = vadd.f32 %v3822, %v3826
    %v3829 = vadd.f32 %v3823, %v3827
    %v3830 = vmul.f32 %v3593, 0.9
    %v3831 = vmul.f32 %v3815, 0.1
    %v3832 = vadd.f32 %v3830, %v3831
    %v3833 = vmul.f32 %v3597, 0.999
    %v3834 = vmul.f32 %v3815, 0.001
    %v3835 = vmul.f32 %v3834, %v3815
    %v3836 = vadd.f32 %v3833, %v3835
    %v3837 = vmul.f32 %v3820, 0.0014573236
    %v3838 = vmul.f32 %v3821, 0.0014573236
    %v3839 = vmul.f32 %v3828, 91.36455
    %v3840 = vmul.f32 %v3829, 91.36455
    %v3841 = vrsqrt.pop %v3839
    %v3842 = vmul.f32 %v3841, %v3839
    %v3843 = vmul.f32 %v3842, %v3841
    %v3844 = vmul.f32 0.5, %v3843
    %v3845 = vsub.f32 1.5, %v3844
    %v3846 = vmul.f32 %v3841, %v3845
    %v3847 = vmul.f32 %v3839, %v3846
    %vm3848 = vcmp.eq.f32.partialorder %v3839, inf
    %v3849 = vsel %vm3848, %v3839, %v3847
    %vm3850 = vcmp.eq.f32.partialorder %v3839, 0.0
    %v3851 = vand.u32 %v3839, 2147483648
    %v3852 = vsel %vm3850, %v3851, %v3849
    %v3853 = vrsqrt.pop %v3840
    %v3854 = vmul.f32 %v3853, %v3840
    %v3855 = vmul.f32 %v3854, %v3853
    %v3856 = vmul.f32 0.5, %v3855
    %v3857 = vsub.f32 1.5, %v3856
    %v3858 = vmul.f32 %v3853, %v3857
    %v3859 = vmul.f32 %v3840, %v3858
    %vm3860 = vcmp.eq.f32.partialorder %v3840, inf
    %v3861 = vsel %vm3860, %v3840, %v3859
    %vm3862 = vcmp.eq.f32.partialorder %v3840, 0.0
    %v3863 = vand.u32 %v3840, 2147483648
    %v3864 = vsel %vm3862, %v3863, %v3861
    %v3865 = vadd.f32 %v3852, 1e-08
    %v3866 = vadd.f32 %v3864, 1e-08
    %v3867 = vrcp.pop %v3865
    %v3868 = vrcp.pop %v3866
    %v3869 = vmul.f32 %v3837, %v3867
    %v3870 = vmul.f32 %v3838, %v3868
    %v3873 = vrot.slane %v3870, 4
    %v3874 = vsel %vm1483, %v3869, %v3873
    %v3876 = vsub.f32 %v3637, %v3874
    %v3877 = vmul.f32 %v3832, 0.0014573236
    %v3878 = vmul.f32 %v3836, 91.36455
    %v3879 = vrsqrt.pop %v3878
    %v3880 = vmul.f32 %v3879, %v3878
    %v3881 = vmul.f32 %v3880, %v3879
    %v3882 = vmul.f32 0.5, %v3881
    %v3883 = vsub.f32 1.5, %v3882
    %v3884 = vmul.f32 %v3879, %v3883
    %v3885 = vmul.f32 %v3878, %v3884
    %vm3886 = vcmp.eq.f32.partialorder %v3878, inf
    %v3887 = vsel %vm3886, %v3878, %v3885
    %vm3888 = vcmp.eq.f32.partialorder %v3878, 0.0
    %v3889 = vand.u32 %v3878, 2147483648
    %v3890 = vsel %vm3888, %v3889, %v3887
    %v3891 = vadd.f32 %v3890, 1e-08
    %v3892 = vrcp.pop %v3891
    %v3893 = vmul.f32 %v3877, %v3892
    %v3894 = vsub.f32 %v3655, %v3893
    %3896 = vset.pattern.permute.xlu0 0
    %3897 = vperm.xlu0 %3896, %v3894
    %v3898 = vpop.permute.xlu0 %3897
    %3901 = vst [vmem:[#allocation1] ss:$2 sm:$0xff] %v3876
    %v3902 = vld.sshfl [vmem:[#allocation1] sm:$0xff pattern:$0x75316420]
    %v3903 = vld.sshfl [vmem:[#allocation1 + $0x8] sm:$0xff pattern:$0x75316420]
    %3906 = vmatpush.xpose.msra.mxu0 0.0
    %3907 = vmatpush.xpose.msra.mxu0 0.0
    %3908 = vmatpush.xpose.msra.mxu0 0.0
    %3909 = vmatpush.xpose.msra.mxu0 0.0
    %3910 = vmatpush.xpose.msra.mxu0 0.0
    %3911 = vmatpush.xpose.msra.mxu0 0.0
    %3912 = vmatpush.xpose.msra.mxu0 0.0
    %3913 = vmatpush.xpose.msra.mxu0 0.0
    %3914 = vmatpush.xpose.msra.mxu0 0.0
    %3915 = vmatpush.xpose.msra.mxu0 0.0
    %3916 = vmatpush.xpose.msra.mxu0 0.0
    %3917 = vmatpush.xpose.msra.mxu0 0.0
    %3918 = vmatpush.xpose.msra.mxu0 0.0
    %3919 = vmatpush.xpose.msra.mxu0 0.0
    %3920 = vmatpush.xpose.msra.mxu0 0.0
    %3921 = vmatpush.xpose.msra.mxu0 %v1159
    %3922 = vmatmul.f32.gmra.mxu0 %v3902
    %v3923 = vpop.f32.mrf.mxu0
    %v3924 = vadd.f32 %v3898, %v3923
    %3925 = vdwg.mxu0
    %3926 = vmatpush.xpose.msra.mxu0 0.0
    %3927 = vmatpush.xpose.msra.mxu0 0.0
    %3928 = vmatpush.xpose.msra.mxu0 0.0
    %3929 = vmatpush.xpose.msra.mxu0 0.0
    %3930 = vmatpush.xpose.msra.mxu0 0.0
    %3931 = vmatpush.xpose.msra.mxu0 0.0
    %3932 = vmatpush.xpose.msra.mxu0 0.0
    %3933 = vmatpush.xpose.msra.mxu0 0.0
    %3934 = vmatpush.xpose.msra.mxu0 0.0
    %3935 = vmatpush.xpose.msra.mxu0 0.0
    %3936 = vmatpush.xpose.msra.mxu0 0.0
    %3937 = vmatpush.xpose.msra.mxu0 0.0
    %3938 = vmatpush.xpose.msra.mxu0 0.0
    %3939 = vmatpush.xpose.msra.mxu0 0.0
    %3940 = vmatpush.xpose.msra.mxu0 0.0
    %3941 = vmatpush.xpose.msra.mxu0 %v1263
    %3942 = vmatmul.f32.gmra.mxu0 %v3903
    %v3943 = vpop.f32.mrf.mxu0
    %v3944 = vadd.f32 %v3924, %v3943
    %3945 = vdwg.mxu0
    %v3946 = vsel %vm1320, %v3944, -inf
    %v3947 = vrot.slane %v3946, 4
    %v3948 = vmax.f32 %v3946, %v3947
    %v3949 = vrot.slane %v3948, 2
    %v3950 = vmax.f32 %v3948, %v3949
    %v3951 = vrot.slane %v3950, 1
    %v3952 = vmax.f32 %v3950, %v3951
    %v3953 = vsub.f32 %v3944, %v3952
    %v3954 = vmul.f32 %v3953, 1.442695
    %v3955 = vpow.pop %v3954
    %v3956 = vsel %vm1320, %v3955, 0.0
    %v3957 = vrot.slane %v3956, 4
    %v3958 = vadd.f32 %v3956, %v3957
    %v3959 = vrot.slane %v3958, 2
    %v3960 = vadd.f32 %v3958, %v3959
    %v3961 = vrot.slane %v3960, 1
    %v3962 = vadd.f32 %v3960, %v3961
    %v3963 = vrcp.pop %v3962
    %v3964 = vmul.f32 %v3962, %v3963
    %v3965 = vsub.f32 1.0, %v3964
    %v3966 = vmul.f32 %v3963, %v3965
    %v3967 = vadd.f32 %v3963, %v3966
    %vm3968 = vweird.f32 %v3962
    %vm3969 = vweird.f32 %v3963
    %vm3970 = vmor %vm3968, %vm3969
    %v3971 = vsel %vm3970, %v3963, %v3967
    %v3972 = vand.u32 2147483647, %v3962
    %vm3973 = vcmp.eq.f32.partialorder %v3972, 8.507059e+37
    %v3974 = vand.u32 %v3962, 2147483648
    %v3975 = vor.u32 1.1754944e-38, %v3974
    %v3976 = vsel %vm3973, %v3975, %v3971
    %v3977 = vmul.f32 %v3955, %v3976
    %3978 = vst [vmem:[%s7] sm:$0xf] 0.0
    %3979 = vst.msk [vmem:[%s7] sm:$0xf] %vm1320, %v3977
    %3980 = vst [vmem:[%s8] sm:$0xff] %v3876
    %3981 = vst [vmem:[%s8 + $0x8] sm:$0xf] %v3898
    // Predicated region
    $region34: #{_meta_forward_batched.1} parent=1 // pred_check
      _
    $region35: #{_meta_forward_batched.1} parent=1 // pred_check_branch
      %3983 = sbr.rel (0) target = $region37
    $region36: #{_meta_forward_batched.1} parent=1 // pred_region
      _
    $region37: #{_meta_forward_batched.1} parent=1 // pred_fallthru
      _
    // Predicated region
    $region38: #{_meta_forward_batched.1} parent=1 // pred_check
      _
    $region39: #{_meta_forward_batched.1} parent=1 // pred_check_branch
      %3985 = sbr.rel (0) target = $region41
    $region40: #{_meta_forward_batched.1} parent=1 // pred_region
      _
    $region41: #{_meta_forward_batched.1} parent=1 // pred_fallthru
      _
    // Predicated region
    $region42: #{_meta_forward_batched.1} parent=1 // pred_check
      _
    $region43: #{_meta_forward_batched.1} parent=1 // pred_check_branch
      %3987 = sbr.rel (0) target = $region45
    $region44: #{_meta_forward_batched.1} parent=1 // pred_region
      _
    $region45: #{_meta_forward_batched.1} parent=1 // pred_fallthru
      _
    // Predicated region
    $region46: #{_meta_forward_batched.1} parent=1 // pred_check
      _
    $region47: #{_meta_forward_batched.1} parent=1 // pred_check_branch
      %3989 = sbr.rel (0) target = $region49
    $region48: #{_meta_forward_batched.1} parent=1 // pred_region
      _
    $region49: #{_meta_forward_batched.1} parent=1 // pred_fallthru
      _
    %3990 = vsyncpa [#allocation3], 1

</llo_original>
